<compile_context>
chip_gen: v6e
topology: v6e:2x2x1
jax: 0.10.0
libtpu: 0.0.40
codegen_flags: <defaults>
</compile_context>

<pallas_src>
import functools

import jax
import jax.numpy as jnp
from jax.experimental import pallas as pl
from jax.experimental.pallas import tpu as pltpu

# ---- synthetic (scaled-down) BERT-like config ----
VOCAB = 64
SEQ = 8          # sequence length
HID = 32         # stand-in for 768
N_HEADS = 2
HEAD_DIM = HID // N_HEADS
FFN = 64
N_LAYERS = 2
PROJ = 16        # stand-in for the 100-dim fc in the 'bilinear' head
BATCH = 2

ENC_PARAM_NAMES = ("emb_ln_g", "emb_ln_b", "wqkv", "bqkv", "wo", "bo",
                   "ln1_g", "ln1_b", "w1", "b1", "w2", "b2", "ln2_g", "ln2_b")


def _vmem():
    return pl.BlockSpec(memory_space=pltpu.MemorySpace.VMEM)


# ---------------- fused encoder kernel ----------------

def encoder_kernel(x_ref, mask_ref, embg_ref, embb_ref,
                   wqkv_ref, bqkv_ref, wo_ref, bo_ref,
                   ln1g_ref, ln1b_ref, w1_ref, b1_ref, w2_ref, b2_ref,
                   ln2g_ref, ln2b_ref, cls_ref, *, batch, seq):
    """One grid step = one full encoder (emb-LN -> N_LAYERS transformer layers -> CLS)."""

    def ln(x, g, b):
        mu = jnp.mean(x, axis=-1, keepdims=True)
        var = jnp.mean((x - mu) ** 2, axis=-1, keepdims=True)
        return (x - mu) * jax.lax.rsqrt(var + 1e-12) * g + b

    x = x_ref[...].astype(jnp.float32)                          # (B*S, HID)
    x = ln(x, embg_ref[...], embb_ref[...])                     # embedding layernorm

    # Additive key mask built in-register: (B, 1, S); broadcasts over queries per head.
    mask = mask_ref[...]                                        # (B, S) f32
    bias = (1.0 - mask)[:, None, :] * (-1e9)

    scale = 1.0 / (HEAD_DIM ** 0.5)

    for l in range(N_LAYERS):                                   # static, fully unrolled
        # ---- fused QKV projection (one MXU pass, bf16 operands, f32 accumulation) ----
        xb = x.astype(jnp.bfloat16)
        qkv = jnp.dot(xb, wqkv_ref[l],
                      preferred_element_type=jnp.float32) + bqkv_ref[l]     # (B*S, 3*HID)

        # ---- attention, per head (static loop; everything stays in vregs) ----
        heads_out = []
        for h in range(N_HEADS):
            q0 = h * HEAD_DIM
            qh = qkv[:, q0:q0 + HEAD_DIM].reshape(batch, seq, HEAD_DIM)
            kh = qkv[:, HID + q0:HID + q0 + HEAD_DIM].reshape(batch, seq, HEAD_DIM)
            vh = qkv[:, 2 * HID + q0:2 * HID + q0 + HEAD_DIM].reshape(batch, seq, HEAD_DIM)

            s = jnp.einsum("bqd,bkd->bqk",
                           qh.astype(jnp.bfloat16), kh.astype(jnp.bfloat16),
                           preferred_element_type=jnp.float32) * scale       # (B, S, S)
            s = s + bias
            s = s - jnp.max(s, axis=-1, keepdims=True)
            p = jnp.exp(s)
            p = p * pl.reciprocal(jnp.sum(p, axis=-1, keepdims=True), approx=True)
            oh = jnp.einsum("bqk,bkd->bqd",
                            p.astype(jnp.bfloat16), vh.astype(jnp.bfloat16),
                            preferred_element_type=jnp.float32)              # (B, S, D)
            heads_out.append(oh.reshape(batch * seq, HEAD_DIM))
        ctx = jnp.concatenate(heads_out, axis=-1)                            # (B*S, HID)

        # ---- out-projection with residual + layernorm fused as epilogue ----
        attn_out = jnp.dot(ctx.astype(jnp.bfloat16), wo_ref[l],
                           preferred_element_type=jnp.float32) + bo_ref[l]
        h1 = ln(x + attn_out, ln1g_ref[l], ln1b_ref[l])

        # ---- FFN (bf16 MXU) with residual + layernorm fused as epilogue ----
        # TODO(synk): HF BERT uses erf-gelu; tanh approximation used here (synthetic weights anyway).
        ff = jnp.dot(h1.astype(jnp.bfloat16), w1_ref[l],
                     preferred_element_type=jnp.float32) + b1_ref[l]
        ff = jax.nn.gelu(ff, approximate=True)
        ff2 = jnp.dot(ff.astype(jnp.bfloat16), w2_ref[l],
                      preferred_element_type=jnp.float32) + b2_ref[l]
        x = ln(h1 + ff2, ln2g_ref[l], ln2b_ref[l])

    # CLS token of the last hidden state (TextEmbedding.forward semantics)
    cls_ref[...] = x.reshape(batch, seq, HID)[:, 0, :].astype(cls_ref.dtype)


def _enc_block_spec(arr):
    """Leading encoder axis squeezed; full block for remaining dims; per-grid-step slice."""
    zeros = (0,) * (arr.ndim - 1)
    return pl.BlockSpec((None,) + tuple(arr.shape[1:]), lambda e: (e,) + zeros)


def encode_both(params, ctx_ids, ctx_mask, asp_ids, asp_mask):
    """Run both encoders in ONE pallas_call: grid axis of size 2 over {context, aspect}."""
    B, S = ctx_ids.shape

    def embed(enc, ids):
        # TODO(synk): token-embedding gather stays in XLA; everything downstream is fused.
        x = enc["tok_emb"][ids] + enc["pos_emb"][None, :S, :]
        return x.reshape(B * S, HID)

    x_emb = jnp.stack([embed(params["context_encoder"], ctx_ids),
                       embed(params["aspect_encoder"], asp_ids)])            # (2, B*S, HID)
    masks = jnp.stack([ctx_mask, asp_mask]).astype(jnp.float32)              # (2, B, S)
    weights = [jnp.stack([params["context_encoder"][n], params["aspect_encoder"][n]])
               for n in ENC_PARAM_NAMES]

    operands = [x_emb, masks] + weights
    in_specs = [_enc_block_spec(a) for a in operands]

    kern = functools.partial(encoder_kernel, batch=B, seq=S)
    return pl.pallas_call(
        kern,
        out_shape=jax.ShapeDtypeStruct((2, B, HID), jnp.float32),
        grid=(2,),
        in_specs=in_specs,
        out_specs=pl.BlockSpec((None, B, HID), lambda e: (e, 0, 0)),
        # v7x: the two independent encoders land on the two TensorCores; no-op on v5e/v6e.
        compiler_params=pltpu.CompilerParams(dimension_semantics=("parallel",)),
    )(*operands)


# ---------------- scoring-head kernels (single tiny pallas_call each) ----------------

def linear_score_kernel(cls_ref, w_ref, b_ref, o_ref):
    # score(cat(ctx, asp)) == sum(ctx * W[:, :H]) + sum(asp * W[:, H:]) + b  (VPU reduction,
    # avoids an N=1 MXU matmul).
    ctx = cls_ref[0]
    asp = cls_ref[1]
    wc = w_ref[:, :HID]
    wa = w_ref[:, HID:]
    out = (jnp.sum(ctx * wc, axis=-1, keepdims=True)
           + jnp.sum(asp * wa, axis=-1, keepdims=True) + b_ref[...])
    o_ref[...] = out.astype(o_ref.dtype)


def linear_score(cls_both, w, b):
    B = cls_both.shape[1]
    return pl.pallas_call(
        linear_score_kernel,
        out_shape=jax.ShapeDtypeStruct((B, 1), jnp.float32),
        in_specs=[_vmem()] * 3,
        out_specs=_vmem(),
    )(cls_both, w, b)


def bilinear_score_kernel(cls_ref, fcw_ref, fcb_ref, bilw_ref, bilb_ref, o_ref):
    # fc projection fused with nn.Bilinear(out=1): y_b = sum_ij x1[b,i] W[i,j] x2[b,j] + bias
    ctx = cls_ref[0].astype(jnp.bfloat16)
    asp = cls_ref[1].astype(jnp.bfloat16)
    fcw = fcw_ref[...]                                                       # bf16 (HID, PROJ)
    ctx_p = jnp.dot(ctx, fcw, preferred_element_type=jnp.float32) + fcb_ref[...]
    asp_p = jnp.dot(asp, fcw, preferred_element_type=jnp.float32) + fcb_ref[...]
    t = jnp.dot(ctx_p.astype(jnp.bfloat16), bilw_ref[...],
                preferred_element_type=jnp.float32)                          # (B, PROJ)
    o_ref[...] = (jnp.sum(t * asp_p, axis=-1, keepdims=True)
                  + bilb_ref[...]).astype(o_ref.dtype)


def bilinear_score(cls_both, fc_w, fc_b, bil_w, bil_b):
    B = cls_both.shape[1]
    return pl.pallas_call(
        bilinear_score_kernel,
        out_shape=jax.ShapeDtypeStruct((B, 1), jnp.float32),
        in_specs=[_vmem()] * 5,
        out_specs=_vmem(),
    )(cls_both, fc_w, fc_b, bil_w, bil_b)


def cosine_score_kernel(cls_ref, o_ref):
    ctx = cls_ref[0].astype(jnp.float32)
    asp = cls_ref[1].astype(jnp.float32)
    eps = 1e-8
    dot = jnp.sum(ctx * asp, axis=-1, keepdims=True)
    inv_c = jax.lax.rsqrt(jnp.maximum(jnp.sum(ctx * ctx, axis=-1, keepdims=True), eps * eps))
    inv_a = jax.lax.rsqrt(jnp.maximum(jnp.sum(asp * asp, axis=-1, keepdims=True), eps * eps))
    o_ref[...] = (dot * inv_c * inv_a).astype(o_ref.dtype)


def cosine_score(cls_both):
    B = cls_both.shape[1]
    return pl.pallas_call(
        cosine_score_kernel,
        out_shape=jax.ShapeDtypeStruct((B, 1), jnp.float32),
        in_specs=[_vmem()],
        out_specs=_vmem(),
    )(cls_both)


# ---------------- model forward ----------------

def text_based_similarity(params, ctx_ids, ctx_mask, asp_ids, asp_mask, *, score_method):
    cls_both = encode_both(params, ctx_ids, ctx_mask, asp_ids, asp_mask)      # (2, B, HID)
    if score_method == "linear":
        return linear_score(cls_both, params["score_w"], params["score_b"])   # (B, 1)
    elif score_method == "bilinear":
        return bilinear_score(cls_both, params["fc_w"], params["fc_b"],
                              params["bil_w"], params["bil_b"])               # (B, 1)
    elif score_method == "cosine":
        return cosine_score(cls_both)[:, 0]                                   # (B,)
    raise ValueError(score_method)


# ---------------- deterministic parameter init ----------------

def init_encoder_params(key):
    std = 0.02
    ks = jax.random.split(key, 2 + N_LAYERS)
    p = {
        "tok_emb": jax.random.normal(ks[0], (VOCAB, HID), jnp.float32) * std,
        "pos_emb": jax.random.normal(ks[1], (SEQ, HID), jnp.float32) * std,
        "emb_ln_g": jnp.ones((1, HID), jnp.float32),
        "emb_ln_b": jnp.zeros((1, HID), jnp.float32),
    }
    wqkv, wo, w1, w2 = [], [], [], []
    for l in range(N_LAYERS):
        lk = jax.random.split(ks[2 + l], 6)
        wq = jax.random.normal(lk[0], (HID, HID)) * std
        wk = jax.random.normal(lk[1], (HID, HID)) * std
        wv = jax.random.normal(lk[2], (HID, HID)) * std
        wqkv.append(jnp.concatenate([wq, wk, wv], axis=1))   # fused QKV weight (HID, 3*HID)
        wo.append(jax.random.normal(lk[3], (HID, HID)) * std)
        w1.append(jax.random.normal(lk[4], (HID, FFN)) * std)
        w2.append(jax.random.normal(lk[5], (FFN, HID)) * std)
    # Matmul weights stored bf16 (MXU-native on v6e/v7x); LN params & biases stay f32.
    p["wqkv"] = jnp.stack(wqkv).astype(jnp.bfloat16)
    p["bqkv"] = jnp.zeros((N_LAYERS, 1, 3 * HID), jnp.float32)
    p["wo"] = jnp.stack(wo).astype(jnp.bfloat16)
    p["bo"] = jnp.zeros((N_LAYERS, 1, HID), jnp.float32)
    p["ln1_g"] = jnp.ones((N_LAYERS, 1, HID), jnp.float32)
    p["ln1_b"] = jnp.zeros((N_LAYERS, 1, HID), jnp.float32)
    p["w1"] = jnp.stack(w1).astype(jnp.bfloat16)
    p["b1"] = jnp.zeros((N_LAYERS, 1, FFN), jnp.float32)
    p["w2"] = jnp.stack(w2).astype(jnp.bfloat16)
    p["b2"] = jnp.zeros((N_LAYERS, 1, HID), jnp.float32)
    p["ln2_g"] = jnp.ones((N_LAYERS, 1, HID), jnp.float32)
    p["ln2_b"] = jnp.zeros((N_LAYERS, 1, HID), jnp.float32)
    return p


def init_model_params(key):
    k = jax.random.split(key, 5)
    return {
        # two encoders (PyTorch instantiates two TextEmbedding modules)
        "context_encoder": init_encoder_params(k[0]),
        "aspect_encoder": init_encoder_params(k[1]),
        # 'linear' head: nn.Linear(2*HID, 1) stored as a (1, 2*HID) row for VPU reduction
        "score_w": (jax.random.normal(k[2], (1, 2 * HID)) * 0.02).astype(jnp.float32),
        "score_b": jnp.zeros((1, 1), jnp.float32),
        # 'bilinear' head: fc = nn.Linear(HID, PROJ); score = nn.Bilinear(PROJ, PROJ, 1)
        "fc_w": (jax.random.normal(k[3], (HID, PROJ)) * 0.02).astype(jnp.bfloat16),
        "fc_b": jnp.zeros((1, PROJ), jnp.float32),
        "bil_w": (jax.random.normal(k[4], (PROJ, PROJ)) * 0.02).astype(jnp.bfloat16),
        "bil_b": jnp.zeros((1, 1), jnp.float32),
    }


if __name__ == "__main__":
    key = jax.random.PRNGKey(0)
    pk, dk = jax.random.split(key)
    params = init_model_params(pk)

    k1, k2 = jax.random.split(dk)
    ctx_ids = jax.random.randint(k1, (BATCH, SEQ), 0, VOCAB)
    asp_ids = jax.random.randint(k2, (BATCH, SEQ), 0, VOCAB)
    ctx_mask = jnp.ones((BATCH, SEQ), jnp.int32)
    asp_mask = jnp.ones((BATCH, SEQ), jnp.int32).at[:, SEQ - 2:].set(0)  # ragged aspect seq

    fwd = jax.jit(text_based_similarity, static_argnames=("score_method",))

    outs = {}
    for method in ("linear", "bilinear", "cosine"):
        out = fwd(params, ctx_ids, ctx_mask, asp_ids, asp_mask, score_method=method)
        outs[method] = jax.block_until_ready(out)

    assert outs["linear"].shape == (BATCH, 1)
    assert outs["bilinear"].shape == (BATCH, 1)
    assert outs["cosine"].shape == (BATCH,)
    assert all(bool(jnp.all(jnp.isfinite(v))) for v in outs.values())
    print("KERNEL_OK")
</pallas_src>

<mosaic_0001>
module attributes {stable_mosaic.version = 11 : i64} {
  func.func @linear_score_kernel(%arg0: memref<2x2x32xf32, #tpu.memory_space<vmem>>, %arg1: memref<1x64xf32, #tpu.memory_space<vmem>>, %arg2: memref<1x1xf32, #tpu.memory_space<vmem>>, %arg3: memref<2x1xf32, #tpu.memory_space<vmem>>) attributes {dimension_semantics = [], scalar_prefetch = 0 : i64, scratch_operands = 0 : i64, tpu.core_type = #tpu.core_type<tc>} {
    %c0 = arith.constant 0 : index
    %c0_0 = arith.constant 0 : index
    %c0_1 = arith.constant 0 : index
    %0 = vector.load %arg0[%c0, %c0_0, %c0_1] : memref<2x2x32xf32, #tpu.memory_space<vmem>>, vector<1x2x32xf32>
    %1 = vector.shape_cast %0 : vector<1x2x32xf32> to vector<2x32xf32>
    %c1 = arith.constant 1 : index
    %c0_2 = arith.constant 0 : index
    %c0_3 = arith.constant 0 : index
    %2 = vector.load %arg0[%c1, %c0_2, %c0_3] : memref<2x2x32xf32, #tpu.memory_space<vmem>>, vector<1x2x32xf32>
    %3 = vector.shape_cast %2 : vector<1x2x32xf32> to vector<2x32xf32>
    %c0_4 = arith.constant 0 : index
    %c0_5 = arith.constant 0 : index
    %4 = vector.load %arg1[%c0_4, %c0_5] : memref<1x64xf32, #tpu.memory_space<vmem>>, vector<1x32xf32>
    %c0_6 = arith.constant 0 : index
    %c32 = arith.constant 32 : index
    %5 = vector.load %arg1[%c0_6, %c32] : memref<1x64xf32, #tpu.memory_space<vmem>>, vector<1x32xf32>
    %6 = vector.broadcast %4 : vector<1x32xf32> to vector<2x32xf32>
    %7 = arith.mulf %1, %6 : vector<2x32xf32>
    %cst = arith.constant dense<0.000000e+00> : vector<2xf32>
    %8 = vector.multi_reduction <add>, %7, %cst [1] : vector<2x32xf32> to vector<2xf32>
    %9 = vector.shape_cast %8 : vector<2xf32> to vector<2x1xf32>
    %10 = vector.broadcast %5 : vector<1x32xf32> to vector<2x32xf32>
    %11 = arith.mulf %3, %10 : vector<2x32xf32>
    %cst_7 = arith.constant dense<0.000000e+00> : vector<2xf32>
    %12 = vector.multi_reduction <add>, %11, %cst_7 [1] : vector<2x32xf32> to vector<2xf32>
    %13 = vector.shape_cast %12 : vector<2xf32> to vector<2x1xf32>
    %14 = arith.addf %9, %13 : vector<2x1xf32>
    %c0_8 = arith.constant 0 : index
    %c0_9 = arith.constant 0 : index
    %15 = vector.load %arg2[%c0_8, %c0_9] : memref<1x1xf32, #tpu.memory_space<vmem>>, vector<1x1xf32>
    %16 = vector.broadcast %15 : vector<1x1xf32> to vector<2x1xf32>
    %17 = arith.addf %14, %16 : vector<2x1xf32>
    %c0_10 = arith.constant 0 : index
    %c0_11 = arith.constant 0 : index
    %18 = vector.load %arg3[%c0_10, %c0_11] : memref<2x1xf32, #tpu.memory_space<vmem>>, vector<2x1xf32>
    tpu.vector_store %arg3[%c0_10, %c0_11], %17 {strides = array<i32>} : memref<2x1xf32, #tpu.memory_space<vmem>>, vector<2x1xf32>,
    return
  }
}

module attributes {stable_mosaic.version = 11 : i64} {
  func.func @encoder_kernel(%arg0: i32, %arg1: memref<1x16x32xf32, #tpu.memory_space<vmem>>, %arg2: memref<1x2x8xf32, #tpu.memory_space<vmem>>, %arg3: memref<1x1x32xf32, #tpu.memory_space<vmem>>, %arg4: memref<1x1x32xf32, #tpu.memory_space<vmem>>, %arg5: memref<1x2x32x96xbf16, #tpu.memory_space<vmem>>, %arg6: memref<1x2x1x96xf32, #tpu.memory_space<vmem>>, %arg7: memref<1x2x32x32xbf16, #tpu.memory_space<vmem>>, %arg8: memref<1x2x1x32xf32, #tpu.memory_space<vmem>>, %arg9: memref<1x2x1x32xf32, #tpu.memory_space<vmem>>, %arg10: memref<1x2x1x32xf32, #tpu.memory_space<vmem>>, %arg11: memref<1x2x32x64xbf16, #tpu.memory_space<vmem>>, %arg12: memref<1x2x1x64xf32, #tpu.memory_space<vmem>>, %arg13: memref<1x2x64x32xbf16, #tpu.memory_space<vmem>>, %arg14: memref<1x2x1x32xf32, #tpu.memory_space<vmem>>, %arg15: memref<1x2x1x32xf32, #tpu.memory_space<vmem>>, %arg16: memref<1x2x1x32xf32, #tpu.memory_space<vmem>>, %arg17: memref<1x2x32xf32, #tpu.memory_space<vmem>>) attributes {dimension_semantics = [#tpu.dimension_semantics<parallel>], iteration_bounds = array<i64: 2>, scalar_prefetch = 0 : i64, scratch_operands = 0 : i64, tpu.core_type = #tpu.core_type<tc>, window_params = [{transform_indices = @transform_0, window_bounds = array<i64: 1, 16, 32>}, {transform_indices = @transform_1, window_bounds = array<i64: 1, 2, 8>}, {transform_indices = @transform_2, window_bounds = array<i64: 1, 1, 32>}, {transform_indices = @transform_3, window_bounds = array<i64: 1, 1, 32>}, {transform_indices = @transform_4, window_bounds = array<i64: 1, 2, 32, 96>}, {transform_indices = @transform_5, window_bounds = array<i64: 1, 2, 1, 96>}, {transform_indices = @transform_6, window_bounds = array<i64: 1, 2, 32, 32>}, {transform_indices = @transform_7, window_bounds = array<i64: 1, 2, 1, 32>}, {transform_indices = @transform_8, window_bounds = array<i64: 1, 2, 1, 32>}, {transform_indices = @transform_9, window_bounds = array<i64: 1, 2, 1, 32>}, {transform_indices = @transform_10, window_bounds = array<i64: 1, 2, 32, 64>}, {transform_indices = @transform_11, window_bounds = array<i64: 1, 2, 1, 64>}, {transform_indices = @transform_12, window_bounds = array<i64: 1, 2, 64, 32>}, {transform_indices = @transform_13, window_bounds = array<i64: 1, 2, 1, 32>}, {transform_indices = @transform_14, window_bounds = array<i64: 1, 2, 1, 32>}, {transform_indices = @transform_15, window_bounds = array<i64: 1, 2, 1, 32>}, {transform_indices = @transform_16, window_bounds = array<i64: 1, 2, 32>}]} {
    %c0 = arith.constant 0 : index
    %c0_0 = arith.constant 0 : index
    %c0_1 = arith.constant 0 : index
    %0 = vector.load %arg1[%c0, %c0_0, %c0_1] : memref<1x16x32xf32, #tpu.memory_space<vmem>>, vector<1x16x32xf32>
    %1 = vector.shape_cast %0 : vector<1x16x32xf32> to vector<16x32xf32>
    %c0_2 = arith.constant 0 : index
    %c0_3 = arith.constant 0 : index
    %c0_4 = arith.constant 0 : index
    %2 = vector.load %arg3[%c0_2, %c0_3, %c0_4] : memref<1x1x32xf32, #tpu.memory_space<vmem>>, vector<1x1x32xf32>
    %3 = vector.shape_cast %2 : vector<1x1x32xf32> to vector<1x32xf32>
    %c0_5 = arith.constant 0 : index
    %c0_6 = arith.constant 0 : index
    %c0_7 = arith.constant 0 : index
    %4 = vector.load %arg4[%c0_5, %c0_6, %c0_7] : memref<1x1x32xf32, #tpu.memory_space<vmem>>, vector<1x1x32xf32>
    %5 = vector.shape_cast %4 : vector<1x1x32xf32> to vector<1x32xf32>
    %cst = arith.constant dense<0.000000e+00> : vector<16xf32>
    %6 = vector.multi_reduction <add>, %1, %cst [1] : vector<16x32xf32> to vector<16xf32>
    %7 = vector.shape_cast %6 : vector<16xf32> to vector<16x1xf32>
    %cst_8 = arith.constant 3.200000e+01 : f32
    %8 = vector.broadcast %cst_8 : f32 to vector<16x1xf32>
    %9 = arith.divf %7, %8 : vector<16x1xf32>
    %10 = vector.broadcast %9 : vector<16x1xf32> to vector<16x32xf32>
    %11 = arith.subf %1, %10 : vector<16x32xf32>
    %12 = arith.mulf %11, %11 : vector<16x32xf32>
    %cst_9 = arith.constant dense<0.000000e+00> : vector<16xf32>
    %13 = vector.multi_reduction <add>, %12, %cst_9 [1] : vector<16x32xf32> to vector<16xf32>
    %14 = vector.shape_cast %13 : vector<16xf32> to vector<16x1xf32>
    %cst_10 = arith.constant 3.200000e+01 : f32
    %15 = vector.broadcast %cst_10 : f32 to vector<16x1xf32>
    %16 = arith.divf %14, %15 : vector<16x1xf32>
    %17 = vector.broadcast %9 : vector<16x1xf32> to vector<16x32xf32>
    %18 = arith.subf %1, %17 : vector<16x32xf32>
    %cst_11 = arith.constant 9.99999996E-13 : f32
    %19 = vector.broadcast %cst_11 : f32 to vector<16x1xf32>
    %20 = arith.addf %16, %19 : vector<16x1xf32>
    %21 = math.rsqrt %20 : vector<16x1xf32>
    %22 = vector.broadcast %21 : vector<16x1xf32> to vector<16x32xf32>
    %23 = arith.mulf %18, %22 : vector<16x32xf32>
    %24 = vector.broadcast %3 : vector<1x32xf32> to vector<16x32xf32>
    %25 = arith.mulf %23, %24 : vector<16x32xf32>
    %26 = vector.broadcast %5 : vector<1x32xf32> to vector<16x32xf32>
    %27 = arith.addf %25, %26 : vector<16x32xf32>
    %c0_12 = arith.constant 0 : index
    %c0_13 = arith.constant 0 : index
    %c0_14 = arith.constant 0 : index
    %28 = vector.load %arg2[%c0_12, %c0_13, %c0_14] : memref<1x2x8xf32, #tpu.memory_space<vmem>>, vector<1x2x8xf32>
    %29 = vector.shape_cast %28 : vector<1x2x8xf32> to vector<2x8xf32>
    %cst_15 = arith.constant 1.000000e+00 : f32
    %30 = vector.broadcast %cst_15 : f32 to vector<2x8xf32>
    %31 = arith.subf %30, %29 : vector<2x8xf32>
    %32 = vector.shape_cast %31 : vector<2x8xf32> to vector<2x1x8xf32>
    %cst_16 = arith.constant -1.000000e+09 : f32
    %33 = vector.broadcast %cst_16 : f32 to vector<2x1x8xf32>
    %34 = arith.mulf %32, %33 : vector<2x1x8xf32>
    %35 = arith.truncf %27 : vector<16x32xf32> to vector<16x32xbf16>
    %c0_17 = arith.constant 0 : index
    %c0_18 = arith.constant 0 : index
    %c0_19 = arith.constant 0 : index
    %c0_20 = arith.constant 0 : index
    %36 = vector.load %arg5[%c0_17, %c0_18, %c0_19, %c0_20] : memref<1x2x32x96xbf16, #tpu.memory_space<vmem>>, vector<1x1x32x96xbf16>
    %37 = vector.shape_cast %36 : vector<1x1x32x96xbf16> to vector<32x96xbf16>
    %cst_21 = arith.constant dense<0.000000e+00> : vector<16x96xf32>
    %38 = tpu.matmul %35, %37, %cst_21 {dimension_numbers = #tpu.dot_dimension_numbers<[1], [0], [0], [1], [0, 0, 1, 1], [], []>} : vector<16x32xbf16>, vector<32x96xbf16>, vector<16x96xf32> -> vector<16x96xf32>
    %c0_22 = arith.constant 0 : index
    %c0_23 = arith.constant 0 : index
    %c0_24 = arith.constant 0 : index
    %c0_25 = arith.constant 0 : index
    %39 = vector.load %arg6[%c0_22, %c0_23, %c0_24, %c0_25] : memref<1x2x1x96xf32, #tpu.memory_space<vmem>>, vector<1x1x1x96xf32>
    %40 = vector.shape_cast %39 : vector<1x1x1x96xf32> to vector<1x96xf32>
    %41 = vector.broadcast %40 : vector<1x96xf32> to vector<16x96xf32>
    %42 = arith.addf %38, %41 : vector<16x96xf32>
    %43 = vector.extract_strided_slice %42 {offsets = [0, 0], sizes = [16, 16], strides = [1, 1]} : vector<16x96xf32> to vector<16x16xf32>
    %44 = vector.shape_cast %43 : vector<16x16xf32> to vector<2x8x16xf32>
    %45 = vector.extract_strided_slice %42 {offsets = [0, 32], sizes = [16, 16], strides = [1, 1]} : vector<16x96xf32> to vector<16x16xf32>
    %46 = vector.shape_cast %45 : vector<16x16xf32> to vector<2x8x16xf32>
    %47 = vector.extract_strided_slice %42 {offsets = [0, 64], sizes = [16, 16], strides = [1, 1]} : vector<16x96xf32> to vector<16x16xf32>
    %48 = vector.shape_cast %47 : vector<16x16xf32> to vector<2x8x16xf32>
    %49 = arith.truncf %44 : vector<2x8x16xf32> to vector<2x8x16xbf16>
    %50 = arith.truncf %46 : vector<2x8x16xf32> to vector<2x8x16xbf16>
    "tpu.trace_start"() <{level = 10 : i32, message = "bqd,bkd->bqk"}> : () -> ()
    %cst_26 = arith.constant dense<0.000000e+00> : vector<2x8x8xf32>
    %51 = tpu.matmul %49, %50, %cst_26 {dimension_numbers = #tpu.dot_dimension_numbers<[2], [2], [1], [1], [0, 0, 0, 1, 1, 1], [0], [0]>} : vector<2x8x16xbf16>, vector<2x8x16xbf16>, vector<2x8x8xf32> -> vector<2x8x8xf32>
    "tpu.trace_stop"() : () -> ()
    %cst_27 = arith.constant 2.500000e-01 : f32
    %52 = vector.broadcast %cst_27 : f32 to vector<2x8x8xf32>
    %53 = arith.mulf %51, %52 : vector<2x8x8xf32>
    %54 = vector.broadcast %34 : vector<2x1x8xf32> to vector<2x8x8xf32>
    %55 = arith.addf %53, %54 : vector<2x8x8xf32>
    %cst_28 = arith.constant dense<0xFF800000> : vector<2x8xf32>
    %56 = vector.multi_reduction <maximumf>, %55, %cst_28 [2] : vector<2x8x8xf32> to vector<2x8xf32>
    %57 = vector.shape_cast %56 : vector<2x8xf32> to vector<2x8x1xf32>
    %58 = vector.broadcast %57 : vector<2x8x1xf32> to vector<2x8x8xf32>
    %59 = arith.subf %55, %58 : vector<2x8x8xf32>
    %60 = math.exp %59 : vector<2x8x8xf32>
    %cst_29 = arith.constant dense<0.000000e+00> : vector<2x8xf32>
    %61 = vector.multi_reduction <add>, %60, %cst_29 [2] : vector<2x8x8xf32> to vector<2x8xf32>
    %62 = vector.shape_cast %61 : vector<2x8xf32> to vector<2x8x1xf32>
    %63 = tpu.reciprocal %62 {approx = true} : vector<2x8x1xf32> -> vector<2x8x1xf32>
    %64 = vector.broadcast %63 : vector<2x8x1xf32> to vector<2x8x8xf32>
    %65 = arith.mulf %60, %64 : vector<2x8x8xf32>
    %66 = arith.truncf %65 : vector<2x8x8xf32> to vector<2x8x8xbf16>
    %67 = arith.truncf %48 : vector<2x8x16xf32> to vector<2x8x16xbf16>
    "tpu.trace_start"() <{level = 10 : i32, message = "bqk,bkd->bqd"}> : () -> ()
    %cst_30 = arith.constant dense<0.000000e+00> : vector<2x8x16xf32>
    %68 = tpu.matmul %66, %67, %cst_30 {dimension_numbers = #tpu.dot_dimension_numbers<[2], [1], [1], [2], [0, 0, 0, 1, 1, 2], [0], [0]>} : vector<2x8x8xbf16>, vector<2x8x16xbf16>, vector<2x8x16xf32> -> vector<2x8x16xf32>
    "tpu.trace_stop"() : () -> ()
    %69 = vector.shape_cast %68 : vector<2x8x16xf32> to vector<16x16xf32>
    %70 = vector.extract_strided_slice %42 {offsets = [0, 16], sizes = [16, 16], strides = [1, 1]} : vector<16x96xf32> to vector<16x16xf32>
    %71 = vector.shape_cast %70 : vector<16x16xf32> to vector<2x8x16xf32>
    %72 = vector.extract_strided_slice %42 {offsets = [0, 48], sizes = [16, 16], strides = [1, 1]} : vector<16x96xf32> to vector<16x16xf32>
    %73 = vector.shape_cast %72 : vector<16x16xf32> to vector<2x8x16xf32>
    %74 = vector.extract_strided_slice %42 {offsets = [0, 80], sizes = [16, 16], strides = [1, 1]} : vector<16x96xf32> to vector<16x16xf32>
    %75 = vector.shape_cast %74 : vector<16x16xf32> to vector<2x8x16xf32>
    %76 = arith.truncf %71 : vector<2x8x16xf32> to vector<2x8x16xbf16>
    %77 = arith.truncf %73 : vector<2x8x16xf32> to vector<2x8x16xbf16>
    "tpu.trace_start"() <{level = 10 : i32, message = "bqd,bkd->bqk"}> : () -> ()
    %cst_31 = arith.constant dense<0.000000e+00> : vector<2x8x8xf32>
    %78 = tpu.matmul %76, %77, %cst_31 {dimension_numbers = #tpu.dot_dimension_numbers<[2], [2], [1], [1], [0, 0, 0, 1, 1, 1], [0], [0]>} : vector<2x8x16xbf16>, vector<2x8x16xbf16>, vector<2x8x8xf32> -> vector<2x8x8xf32>
    "tpu.trace_stop"() : () -> ()
    %cst_32 = arith.constant 2.500000e-01 : f32
    %79 = vector.broadcast %cst_32 : f32 to vector<2x8x8xf32>
    %80 = arith.mulf %78, %79 : vector<2x8x8xf32>
    %81 = vector.broadcast %34 : vector<2x1x8xf32> to vector<2x8x8xf32>
    %82 = arith.addf %80, %81 : vector<2x8x8xf32>
    %cst_33 = arith.constant dense<0xFF800000> : vector<2x8xf32>
    %83 = vector.multi_reduction <maximumf>, %82, %cst_33 [2] : vector<2x8x8xf32> to vector<2x8xf32>
    %84 = vector.shape_cast %83 : vector<2x8xf32> to vector<2x8x1xf32>
    %85 = vector.broadcast %84 : vector<2x8x1xf32> to vector<2x8x8xf32>
    %86 = arith.subf %82, %85 : vector<2x8x8xf32>
    %87 = math.exp %86 : vector<2x8x8xf32>
    %cst_34 = arith.constant dense<0.000000e+00> : vector<2x8xf32>
    %88 = vector.multi_reduction <add>, %87, %cst_34 [2] : vector<2x8x8xf32> to vector<2x8xf32>
    %89 = vector.shape_cast %88 : vector<2x8xf32> to vector<2x8x1xf32>
    %90 = tpu.reciprocal %89 {approx = true} : vector<2x8x1xf32> -> vector<2x8x1xf32>
    %91 = vector.broadcast %90 : vector<2x8x1xf32> to vector<2x8x8xf32>
    %92 = arith.mulf %87, %91 : vector<2x8x8xf32>
    %93 = arith.truncf %92 : vector<2x8x8xf32> to vector<2x8x8xbf16>
    %94 = arith.truncf %75 : vector<2x8x16xf32> to vector<2x8x16xbf16>
    "tpu.trace_start"() <{level = 10 : i32, message = "bqk,bkd->bqd"}> : () -> ()
    %cst_35 = arith.constant dense<0.000000e+00> : vector<2x8x16xf32>
    %95 = tpu.matmul %93, %94, %cst_35 {dimension_numbers = #tpu.dot_dimension_numbers<[2], [1], [1], [2], [0, 0, 0, 1, 1, 2], [0], [0]>} : vector<2x8x8xbf16>, vector<2x8x16xbf16>, vector<2x8x16xf32> -> vector<2x8x16xf32>
    "tpu.trace_stop"() : () -> ()
    %96 = vector.shape_cast %95 : vector<2x8x16xf32> to vector<16x16xf32>
    %97 = tpu.concatenate %69, %96 in 1 : vector<16x16xf32>, vector<16x16xf32> -> vector<16x32xf32>
    %98 = arith.truncf %97 : vector<16x32xf32> to vector<16x32xbf16>
    %c0_36 = arith.constant 0 : index
    %c0_37 = arith.constant 0 : index
    %c0_38 = arith.constant 0 : index
    %c0_39 = arith.constant 0 : index
    %99 = vector.load %arg7[%c0_36, %c0_37, %c0_38, %c0_39] : memref<1x2x32x32xbf16, #tpu.memory_space<vmem>>, vector<1x1x32x32xbf16>
    %100 = vector.shape_cast %99 : vector<1x1x32x32xbf16> to vector<32x32xbf16>
    %cst_40 = arith.constant dense<0.000000e+00> : vector<16x32xf32>
    %101 = tpu.matmul %98, %100, %cst_40 {dimension_numbers = #tpu.dot_dimension_numbers<[1], [0], [0], [1], [0, 0, 1, 1], [], []>} : vector<16x32xbf16>, vector<32x32xbf16>, vector<16x32xf32> -> vector<16x32xf32>
    %c0_41 = arith.constant 0 : index
    %c0_42 = arith.constant 0 : index
    %c0_43 = arith.constant 0 : index
    %c0_44 = arith.constant 0 : index
    %102 = vector.load %arg8[%c0_41, %c0_42, %c0_43, %c0_44] : memref<1x2x1x32xf32, #tpu.memory_space<vmem>>, vector<1x1x1x32xf32>
    %103 = vector.shape_cast %102 : vector<1x1x1x32xf32> to vector<1x32xf32>
    %104 = vector.broadcast %103 : vector<1x32xf32> to vector<16x32xf32>
    %105 = arith.addf %101, %104 : vector<16x32xf32>
    %106 = arith.addf %27, %105 : vector<16x32xf32>
    %c0_45 = arith.constant 0 : index
    %c0_46 = arith.constant 0 : index
    %c0_47 = arith.constant 0 : index
    %c0_48 = arith.constant 0 : index
    %107 = vector.load %arg9[%c0_45, %c0_46, %c0_47, %c0_48] : memref<1x2x1x32xf32, #tpu.memory_space<vmem>>, vector<1x1x1x32xf32>
    %108 = vector.shape_cast %107 : vector<1x1x1x32xf32> to vector<1x32xf32>
    %c0_49 = arith.constant 0 : index
    %c0_50 = arith.constant 0 : index
    %c0_51 = arith.constant 0 : index
    %c0_52 = arith.constant 0 : index
    %109 = vector.load %arg10[%c0_49, %c0_50, %c0_51, %c0_52] : memref<1x2x1x32xf32, #tpu.memory_space<vmem>>, vector<1x1x1x32xf32>
    %110 = vector.shape_cast %109 : vector<1x1x1x32xf32> to vector<1x32xf32>
    %cst_53 = arith.constant dense<0.000000e+00> : vector<16xf32>
    %111 = vector.multi_reduction <add>, %106, %cst_53 [1] : vector<16x32xf32> to vector<16xf32>
    %112 = vector.shape_cast %111 : vector<16xf32> to vector<16x1xf32>
    %cst_54 = arith.constant 3.200000e+01 : f32
    %113 = vector.broadcast %cst_54 : f32 to vector<16x1xf32>
    %114 = arith.divf %112, %113 : vector<16x1xf32>
    %115 = vector.broadcast %114 : vector<16x1xf32> to vector<16x32xf32>
    %116 = arith.subf %106, %115 : vector<16x32xf32>
    %117 = arith.mulf %116, %116 : vector<16x32xf32>
    %cst_55 = arith.constant dense<0.000000e+00> : vector<16xf32>
    %118 = vector.multi_reduction <add>, %117, %cst_55 [1] : vector<16x32xf32> to vector<16xf32>
    %119 = vector.shape_cast %118 : vector<16xf32> to vector<16x1xf32>
    %cst_56 = arith.constant 3.200000e+01 : f32
    %120 = vector.broadcast %cst_56 : f32 to vector<16x1xf32>
    %121 = arith.divf %119, %120 : vector<16x1xf32>
    %122 = vector.broadcast %114 : vector<16x1xf32> to vector<16x32xf32>
    %123 = arith.subf %106, %122 : vector<16x32xf32>
    %cst_57 = arith.constant 9.99999996E-13 : f32
    %124 = vector.broadcast %cst_57 : f32 to vector<16x1xf32>
    %125 = arith.addf %121, %124 : vector<16x1xf32>
    %126 = math.rsqrt %125 : vector<16x1xf32>
    %127 = vector.broadcast %126 : vector<16x1xf32> to vector<16x32xf32>
    %128 = arith.mulf %123, %127 : vector<16x32xf32>
    %129 = vector.broadcast %108 : vector<1x32xf32> to vector<16x32xf32>
    %130 = arith.mulf %128, %129 : vector<16x32xf32>
    %131 = vector.broadcast %110 : vector<1x32xf32> to vector<16x32xf32>
    %132 = arith.addf %130, %131 : vector<16x32xf32>
    %133 = arith.truncf %132 : vector<16x32xf32> to vector<16x32xbf16>
    %c0_58 = arith.constant 0 : index
    %c0_59 = arith.constant 0 : index
    %c0_60 = arith.constant 0 : index
    %c0_61 = arith.constant 0 : index
    %134 = vector.load %arg11[%c0_58, %c0_59, %c0_60, %c0_61] : memref<1x2x32x64xbf16, #tpu.memory_space<vmem>>, vector<1x1x32x64xbf16>
    %135 = vector.shape_cast %134 : vector<1x1x32x64xbf16> to vector<32x64xbf16>
    %cst_62 = arith.constant dense<0.000000e+00> : vector<16x64xf32>
    %136 = tpu.matmul %133, %135, %cst_62 {dimension_numbers = #tpu.dot_dimension_numbers<[1], [0], [0], [1], [0, 0, 1, 1], [], []>} : vector<16x32xbf16>, vector<32x64xbf16>, vector<16x64xf32> -> vector<16x64xf32>
    %c0_63 = arith.constant 0 : index
    %c0_64 = arith.constant 0 : index
    %c0_65 = arith.constant 0 : index
    %c0_66 = arith.constant 0 : index
    %137 = vector.load %arg12[%c0_63, %c0_64, %c0_65, %c0_66] : memref<1x2x1x64xf32, #tpu.memory_space<vmem>>, vector<1x1x1x64xf32>
    %138 = vector.shape_cast %137 : vector<1x1x1x64xf32> to vector<1x64xf32>
    %139 = vector.broadcast %138 : vector<1x64xf32> to vector<16x64xf32>
    %140 = arith.addf %136, %139 : vector<16x64xf32>
    %141 = arith.mulf %140, %140 : vector<16x64xf32>
    %142 = arith.mulf %140, %141 : vector<16x64xf32>
    %cst_67 = arith.constant 4.471500e-02 : f32
    %143 = vector.broadcast %cst_67 : f32 to vector<16x64xf32>
    %144 = arith.mulf %143, %142 : vector<16x64xf32>
    %145 = arith.addf %140, %144 : vector<16x64xf32>
    %cst_68 = arith.constant 0.797884583 : f32
    %146 = vector.broadcast %cst_68 : f32 to vector<16x64xf32>
    %147 = arith.mulf %146, %145 : vector<16x64xf32>
    %148 = math.tanh %147 : vector<16x64xf32>
    %cst_69 = arith.constant 1.000000e+00 : f32
    %149 = vector.broadcast %cst_69 : f32 to vector<16x64xf32>
    %150 = arith.addf %149, %148 : vector<16x64xf32>
    %cst_70 = arith.constant 5.000000e-01 : f32
    %151 = vector.broadcast %cst_70 : f32 to vector<16x64xf32>
    %152 = arith.mulf %151, %150 : vector<16x64xf32>
    %153 = arith.mulf %140, %152 : vector<16x64xf32>
    %154 = arith.truncf %153 : vector<16x64xf32> to vector<16x64xbf16>
    %c0_71 = arith.constant 0 : index
    %c0_72 = arith.constant 0 : index
    %c0_73 = arith.constant 0 : index
    %c0_74 = arith.constant 0 : index
    %155 = vector.load %arg13[%c0_71, %c0_72, %c0_73, %c0_74] : memref<1x2x64x32xbf16, #tpu.memory_space<vmem>>, vector<1x1x64x32xbf16>
    %156 = vector.shape_cast %155 : vector<1x1x64x32xbf16> to vector<64x32xbf16>
    %cst_75 = arith.constant dense<0.000000e+00> : vector<16x32xf32>
    %157 = tpu.matmul %154, %156, %cst_75 {dimension_numbers = #tpu.dot_dimension_numbers<[1], [0], [0], [1], [0, 0, 1, 1], [], []>} : vector<16x64xbf16>, vector<64x32xbf16>, vector<16x32xf32> -> vector<16x32xf32>
    %c0_76 = arith.constant 0 : index
    %c0_77 = arith.constant 0 : index
    %c0_78 = arith.constant 0 : index
    %c0_79 = arith.constant 0 : index
    %158 = vector.load %arg14[%c0_76, %c0_77, %c0_78, %c0_79] : memref<1x2x1x32xf32, #tpu.memory_space<vmem>>, vector<1x1x1x32xf32>
    %159 = vector.shape_cast %158 : vector<1x1x1x32xf32> to vector<1x32xf32>
    %160 = vector.broadcast %159 : vector<1x32xf32> to vector<16x32xf32>
    %161 = arith.addf %157, %160 : vector<16x32xf32>
    %162 = arith.addf %132, %161 : vector<16x32xf32>
    %c0_80 = arith.constant 0 : index
    %c0_81 = arith.constant 0 : index
    %c0_82 = arith.constant 0 : index
    %c0_83 = arith.constant 0 : index
    %163 = vector.load %arg15[%c0_80, %c0_81, %c0_82, %c0_83] : memref<1x2x1x32xf32, #tpu.memory_space<vmem>>, vector<1x1x1x32xf32>
    %164 = vector.shape_cast %163 : vector<1x1x1x32xf32> to vector<1x32xf32>
    %c0_84 = arith.constant 0 : index
    %c0_85 = arith.constant 0 : index
    %c0_86 = arith.constant 0 : index
    %c0_87 = arith.constant 0 : index
    %165 = vector.load %arg16[%c0_84, %c0_85, %c0_86, %c0_87] : memref<1x2x1x32xf32, #tpu.memory_space<vmem>>, vector<1x1x1x32xf32>
    %166 = vector.shape_cast %165 : vector<1x1x1x32xf32> to vector<1x32xf32>
    %cst_88 = arith.constant dense<0.000000e+00> : vector<16xf32>
    %167 = vector.multi_reduction <add>, %162, %cst_88 [1] : vector<16x32xf32> to vector<16xf32>
    %168 = vector.shape_cast %167 : vector<16xf32> to vector<16x1xf32>
    %cst_89 = arith.constant 3.200000e+01 : f32
    %169 = vector.broadcast %cst_89 : f32 to vector<16x1xf32>
    %170 = arith.divf %168, %169 : vector<16x1xf32>
    %171 = vector.broadcast %170 : vector<16x1xf32> to vector<16x32xf32>
    %172 = arith.subf %162, %171 : vector<16x32xf32>
    %173 = arith.mulf %172, %172 : vector<16x32xf32>
    %cst_90 = arith.constant dense<0.000000e+00> : vector<16xf32>
    %174 = vector.multi_reduction <add>, %173, %cst_90 [1] : vector<16x32xf32> to vector<16xf32>
    %175 = vector.shape_cast %174 : vector<16xf32> to vector<16x1xf32>
    %cst_91 = arith.constant 3.200000e+01 : f32
    %176 = vector.broadcast %cst_91 : f32 to vector<16x1xf32>
    %177 = arith.divf %175, %176 : vector<16x1xf32>
    %178 = vector.broadcast %170 : vector<16x1xf32> to vector<16x32xf32>
    %179 = arith.subf %162, %178 : vector<16x32xf32>
    %cst_92 = arith.constant 9.99999996E-13 : f32
    %180 = vector.broadcast %cst_92 : f32 to vector<16x1xf32>
    %181 = arith.addf %177, %180 : vector<16x1xf32>
    %182 = math.rsqrt %181 : vector<16x1xf32>
    %183 = vector.broadcast %182 : vector<16x1xf32> to vector<16x32xf32>
    %184 = arith.mulf %179, %183 : vector<16x32xf32>
    %185 = vector.broadcast %164 : vector<1x32xf32> to vector<16x32xf32>
    %186 = arith.mulf %184, %185 : vector<16x32xf32>
    %187 = vector.broadcast %166 : vector<1x32xf32> to vector<16x32xf32>
    %188 = arith.addf %186, %187 : vector<16x32xf32>
    %189 = arith.truncf %188 : vector<16x32xf32> to vector<16x32xbf16>
    %c0_93 = arith.constant 0 : index
    %c1 = arith.constant 1 : index
    %c0_94 = arith.constant 0 : index
    %c0_95 = arith.constant 0 : index
    %190 = vector.load %arg5[%c0_93, %c1, %c0_94, %c0_95] : memref<1x2x32x96xbf16, #tpu.memory_space<vmem>>, vector<1x1x32x96xbf16>
    %191 = vector.shape_cast %190 : vector<1x1x32x96xbf16> to vector<32x96xbf16>
    %cst_96 = arith.constant dense<0.000000e+00> : vector<16x96xf32>
    %192 = tpu.matmul %189, %191, %cst_96 {dimension_numbers = #tpu.dot_dimension_numbers<[1], [0], [0], [1], [0, 0, 1, 1], [], []>} : vector<16x32xbf16>, vector<32x96xbf16>, vector<16x96xf32> -> vector<16x96xf32>
    %c0_97 = arith.constant 0 : index
    %c1_98 = arith.constant 1 : index
    %c0_99 = arith.constant 0 : index
    %c0_100 = arith.constant 0 : index
    %193 = vector.load %arg6[%c0_97, %c1_98, %c0_99, %c0_100] : memref<1x2x1x96xf32, #tpu.memory_space<vmem>>, vector<1x1x1x96xf32>
    %194 = vector.shape_cast %193 : vector<1x1x1x96xf32> to vector<1x96xf32>
    %195 = vector.broadcast %194 : vector<1x96xf32> to vector<16x96xf32>
    %196 = arith.addf %192, %195 : vector<16x96xf32>
    %197 = vector.extract_strided_slice %196 {offsets = [0, 0], sizes = [16, 16], strides = [1, 1]} : vector<16x96xf32> to vector<16x16xf32>
    %198 = vector.shape_cast %197 : vector<16x16xf32> to vector<2x8x16xf32>
    %199 = vector.extract_strided_slice %196 {offsets = [0, 32], sizes = [16, 16], strides = [1, 1]} : vector<16x96xf32> to vector<16x16xf32>
    %200 = vector.shape_cast %199 : vector<16x16xf32> to vector<2x8x16xf32>
    %201 = vector.extract_strided_slice %196 {offsets = [0, 64], sizes = [16, 16], strides = [1, 1]} : vector<16x96xf32> to vector<16x16xf32>
    %202 = vector.shape_cast %201 : vector<16x16xf32> to vector<2x8x16xf32>
    %203 = arith.truncf %198 : vector<2x8x16xf32> to vector<2x8x16xbf16>
    %204 = arith.truncf %200 : vector<2x8x16xf32> to vector<2x8x16xbf16>
    "tpu.trace_start"() <{level = 10 : i32, message = "bqd,bkd->bqk"}> : () -> ()
    %cst_101 = arith.constant dense<0.000000e+00> : vector<2x8x8xf32>
    %205 = tpu.matmul %203, %204, %cst_101 {dimension_numbers = #tpu.dot_dimension_numbers<[2], [2], [1], [1], [0, 0, 0, 1, 1, 1], [0], [0]>} : vector<2x8x16xbf16>, vector<2x8x16xbf16>, vector<2x8x8xf32> -> vector<2x8x8xf32>
    "tpu.trace_stop"() : () -> ()
    %cst_102 = arith.constant 2.500000e-01 : f32
    %206 = vector.broadcast %cst_102 : f32 to vector<2x8x8xf32>
    %207 = arith.mulf %205, %206 : vector<2x8x8xf32>
    %208 = vector.broadcast %34 : vector<2x1x8xf32> to vector<2x8x8xf32>
    %209 = arith.addf %207, %208 : vector<2x8x8xf32>
    %cst_103 = arith.constant dense<0xFF800000> : vector<2x8xf32>
    %210 = vector.multi_reduction <maximumf>, %209, %cst_103 [2] : vector<2x8x8xf32> to vector<2x8xf32>
    %211 = vector.shape_cast %210 : vector<2x8xf32> to vector<2x8x1xf32>
    %212 = vector.broadcast %211 : vector<2x8x1xf32> to vector<2x8x8xf32>
    %213 = arith.subf %209, %212 : vector<2x8x8xf32>
    %214 = math.exp %213 : vector<2x8x8xf32>
    %cst_104 = arith.constant dense<0.000000e+00> : vector<2x8xf32>
    %215 = vector.multi_reduction <add>, %214, %cst_104 [2] : vector<2x8x8xf32> to vector<2x8xf32>
    %216 = vector.shape_cast %215 : vector<2x8xf32> to vector<2x8x1xf32>
    %217 = tpu.reciprocal %216 {approx = true} : vector<2x8x1xf32> -> vector<2x8x1xf32>
    %218 = vector.broadcast %217 : vector<2x8x1xf32> to vector<2x8x8xf32>
    %219 = arith.mulf %214, %218 : vector<2x8x8xf32>
    %220 = arith.truncf %219 : vector<2x8x8xf32> to vector<2x8x8xbf16>
    %221 = arith.truncf %202 : vector<2x8x16xf32> to vector<2x8x16xbf16>
    "tpu.trace_start"() <{level = 10 : i32, message = "bqk,bkd->bqd"}> : () -> ()
    %cst_105 = arith.constant dense<0.000000e+00> : vector<2x8x16xf32>
    %222 = tpu.matmul %220, %221, %cst_105 {dimension_numbers = #tpu.dot_dimension_numbers<[2], [1], [1], [2], [0, 0, 0, 1, 1, 2], [0], [0]>} : vector<2x8x8xbf16>, vector<2x8x16xbf16>, vector<2x8x16xf32> -> vector<2x8x16xf32>
    "tpu.trace_stop"() : () -> ()
    %223 = vector.shape_cast %222 : vector<2x8x16xf32> to vector<16x16xf32>
    %224 = vector.extract_strided_slice %196 {offsets = [0, 16], sizes = [16, 16], strides = [1, 1]} : vector<16x96xf32> to vector<16x16xf32>
    %225 = vector.shape_cast %224 : vector<16x16xf32> to vector<2x8x16xf32>
    %226 = vector.extract_strided_slice %196 {offsets = [0, 48], sizes = [16, 16], strides = [1, 1]} : vector<16x96xf32> to vector<16x16xf32>
    %227 = vector.shape_cast %226 : vector<16x16xf32> to vector<2x8x16xf32>
    %228 = vector.extract_strided_slice %196 {offsets = [0, 80], sizes = [16, 16], strides = [1, 1]} : vector<16x96xf32> to vector<16x16xf32>
    %229 = vector.shape_cast %228 : vector<16x16xf32> to vector<2x8x16xf32>
    %230 = arith.truncf %225 : vector<2x8x16xf32> to vector<2x8x16xbf16>
    %231 = arith.truncf %227 : vector<2x8x16xf32> to vector<2x8x16xbf16>
    "tpu.trace_start"() <{level = 10 : i32, message = "bqd,bkd->bqk"}> : () -> ()
    %cst_106 = arith.constant dense<0.000000e+00> : vector<2x8x8xf32>
    %232 = tpu.matmul %230, %231, %cst_106 {dimension_numbers = #tpu.dot_dimension_numbers<[2], [2], [1], [1], [0, 0, 0, 1, 1, 1], [0], [0]>} : vector<2x8x16xbf16>, vector<2x8x16xbf16>, vector<2x8x8xf32> -> vector<2x8x8xf32>
    "tpu.trace_stop"() : () -> ()
    %cst_107 = arith.constant 2.500000e-01 : f32
    %233 = vector.broadcast %cst_107 : f32 to vector<2x8x8xf32>
    %234 = arith.mulf %232, %233 : vector<2x8x8xf32>
    %235 = vector.broadcast %34 : vector<2x1x8xf32> to vector<2x8x8xf32>
    %236 = arith.addf %234, %235 : vector<2x8x8xf32>
    %cst_108 = arith.constant dense<0xFF800000> : vector<2x8xf32>
    %237 = vector.multi_reduction <maximumf>, %236, %cst_108 [2] : vector<2x8x8xf32> to vector<2x8xf32>
    %238 = vector.shape_cast %237 : vector<2x8xf32> to vector<2x8x1xf32>
    %239 = vector.broadcast %238 : vector<2x8x1xf32> to vector<2x8x8xf32>
    %240 = arith.subf %236, %239 : vector<2x8x8xf32>
    %241 = math.exp %240 : vector<2x8x8xf32>
    %cst_109 = arith.constant dense<0.000000e+00> : vector<2x8xf32>
    %242 = vector.multi_reduction <add>, %241, %cst_109 [2] : vector<2x8x8xf32> to vector<2x8xf32>
    %243 = vector.shape_cast %242 : vector<2x8xf32> to vector<2x8x1xf32>
    %244 = tpu.reciprocal %243 {approx = true} : vector<2x8x1xf32> -> vector<2x8x1xf32>
    %245 = vector.broadcast %244 : vector<2x8x1xf32> to vector<2x8x8xf32>
    %246 = arith.mulf %241, %245 : vector<2x8x8xf32>
    %247 = arith.truncf %246 : vector<2x8x8xf32> to vector<2x8x8xbf16>
    %248 = arith.truncf %229 : vector<2x8x16xf32> to vector<2x8x16xbf16>
    "tpu.trace_start"() <{level = 10 : i32, message = "bqk,bkd->bqd"}> : () -> ()
    %cst_110 = arith.constant dense<0.000000e+00> : vector<2x8x16xf32>
    %249 = tpu.matmul %247, %248, %cst_110 {dimension_numbers = #tpu.dot_dimension_numbers<[2], [1], [1], [2], [0, 0, 0, 1, 1, 2], [0], [0]>} : vector<2x8x8xbf16>, vector<2x8x16xbf16>, vector<2x8x16xf32> -> vector<2x8x16xf32>
    "tpu.trace_stop"() : () -> ()
    %250 = vector.shape_cast %249 : vector<2x8x16xf32> to vector<16x16xf32>
    %251 = tpu.concatenate %223, %250 in 1 : vector<16x16xf32>, vector<16x16xf32> -> vector<16x32xf32>
    %252 = arith.truncf %251 : vector<16x32xf32> to vector<16x32xbf16>
    %c0_111 = arith.constant 0 : index
    %c1_112 = arith.constant 1 : index
    %c0_113 = arith.constant 0 : index
    %c0_114 = arith.constant 0 : index
    %253 = vector.load %arg7[%c0_111, %c1_112, %c0_113, %c0_114] : memref<1x2x32x32xbf16, #tpu.memory_space<vmem>>, vector<1x1x32x32xbf16>
    %254 = vector.shape_cast %253 : vector<1x1x32x32xbf16> to vector<32x32xbf16>
    %cst_115 = arith.constant dense<0.000000e+00> : vector<16x32xf32>
    %255 = tpu.matmul %252, %254, %cst_115 {dimension_numbers = #tpu.dot_dimension_numbers<[1], [0], [0], [1], [0, 0, 1, 1], [], []>} : vector<16x32xbf16>, vector<32x32xbf16>, vector<16x32xf32> -> vector<16x32xf32>
    %c0_116 = arith.constant 0 : index
    %c1_117 = arith.constant 1 : index
    %c0_118 = arith.constant 0 : index
    %c0_119 = arith.constant 0 : index
    %256 = vector.load %arg8[%c0_116, %c1_117, %c0_118, %c0_119] : memref<1x2x1x32xf32, #tpu.memory_space<vmem>>, vector<1x1x1x32xf32>
    %257 = vector.shape_cast %256 : vector<1x1x1x32xf32> to vector<1x32xf32>
    %258 = vector.broadcast %257 : vector<1x32xf32> to vector<16x32xf32>
    %259 = arith.addf %255, %258 : vector<16x32xf32>
    %260 = arith.addf %188, %259 : vector<16x32xf32>
    %c0_120 = arith.constant 0 : index
    %c1_121 = arith.constant 1 : index
    %c0_122 = arith.constant 0 : index
    %c0_123 = arith.constant 0 : index
    %261 = vector.load %arg9[%c0_120, %c1_121, %c0_122, %c0_123] : memref<1x2x1x32xf32, #tpu.memory_space<vmem>>, vector<1x1x1x32xf32>
    %262 = vector.shape_cast %261 : vector<1x1x1x32xf32> to vector<1x32xf32>
    %c0_124 = arith.constant 0 : index
    %c1_125 = arith.constant 1 : index
    %c0_126 = arith.constant 0 : index
    %c0_127 = arith.constant 0 : index
    %263 = vector.load %arg10[%c0_124, %c1_125, %c0_126, %c0_127] : memref<1x2x1x32xf32, #tpu.memory_space<vmem>>, vector<1x1x1x32xf32>
    %264 = vector.shape_cast %263 : vector<1x1x1x32xf32> to vector<1x32xf32>
    %cst_128 = arith.constant dense<0.000000e+00> : vector<16xf32>
    %265 = vector.multi_reduction <add>, %260, %cst_128 [1] : vector<16x32xf32> to vector<16xf32>
    %266 = vector.shape_cast %265 : vector<16xf32> to vector<16x1xf32>
    %cst_129 = arith.constant 3.200000e+01 : f32
    %267 = vector.broadcast %cst_129 : f32 to vector<16x1xf32>
    %268 = arith.divf %266, %267 : vector<16x1xf32>
    %269 = vector.broadcast %268 : vector<16x1xf32> to vector<16x32xf32>
    %270 = arith.subf %260, %269 : vector<16x32xf32>
    %271 = arith.mulf %270, %270 : vector<16x32xf32>
    %cst_130 = arith.constant dense<0.000000e+00> : vector<16xf32>
    %272 = vector.multi_reduction <add>, %271, %cst_130 [1] : vector<16x32xf32> to vector<16xf32>
    %273 = vector.shape_cast %272 : vector<16xf32> to vector<16x1xf32>
    %cst_131 = arith.constant 3.200000e+01 : f32
    %274 = vector.broadcast %cst_131 : f32 to vector<16x1xf32>
    %275 = arith.divf %273, %274 : vector<16x1xf32>
    %276 = vector.broadcast %268 : vector<16x1xf32> to vector<16x32xf32>
    %277 = arith.subf %260, %276 : vector<16x32xf32>
    %cst_132 = arith.constant 9.99999996E-13 : f32
    %278 = vector.broadcast %cst_132 : f32 to vector<16x1xf32>
    %279 = arith.addf %275, %278 : vector<16x1xf32>
    %280 = math.rsqrt %279 : vector<16x1xf32>
    %281 = vector.broadcast %280 : vector<16x1xf32> to vector<16x32xf32>
    %282 = arith.mulf %277, %281 : vector<16x32xf32>
    %283 = vector.broadcast %262 : vector<1x32xf32> to vector<16x32xf32>
    %284 = arith.mulf %282, %283 : vector<16x32xf32>
    %285 = vector.broadcast %264 : vector<1x32xf32> to vector<16x32xf32>
    %286 = arith.addf %284, %285 : vector<16x32xf32>
    %287 = arith.truncf %286 : vector<16x32xf32> to vector<16x32xbf16>
    %c0_133 = arith.constant 0 : index
    %c1_134 = arith.constant 1 : index
    %c0_135 = arith.constant 0 : index
    %c0_136 = arith.constant 0 : index
    %288 = vector.load %arg11[%c0_133, %c1_134, %c0_135, %c0_136] : memref<1x2x32x64xbf16, #tpu.memory_space<vmem>>, vector<1x1x32x64xbf16>
    %289 = vector.shape_cast %288 : vector<1x1x32x64xbf16> to vector<32x64xbf16>
    %cst_137 = arith.constant dense<0.000000e+00> : vector<16x64xf32>
    %290 = tpu.matmul %287, %289, %cst_137 {dimension_numbers = #tpu.dot_dimension_numbers<[1], [0], [0], [1], [0, 0, 1, 1], [], []>} : vector<16x32xbf16>, vector<32x64xbf16>, vector<16x64xf32> -> vector<16x64xf32>
    %c0_138 = arith.constant 0 : index
    %c1_139 = arith.constant 1 : index
    %c0_140 = arith.constant 0 : index
    %c0_141 = arith.constant 0 : index
    %291 = vector.load %arg12[%c0_138, %c1_139, %c0_140, %c0_141] : memref<1x2x1x64xf32, #tpu.memory_space<vmem>>, vector<1x1x1x64xf32>
    %292 = vector.shape_cast %291 : vector<1x1x1x64xf32> to vector<1x64xf32>
    %293 = vector.broadcast %292 : vector<1x64xf32> to vector<16x64xf32>
    %294 = arith.addf %290, %293 : vector<16x64xf32>
    %295 = arith.mulf %294, %294 : vector<16x64xf32>
    %296 = arith.mulf %294, %295 : vector<16x64xf32>
    %cst_142 = arith.constant 4.471500e-02 : f32
    %297 = vector.broadcast %cst_142 : f32 to vector<16x64xf32>
    %298 = arith.mulf %297, %296 : vector<16x64xf32>
    %299 = arith.addf %294, %298 : vector<16x64xf32>
    %cst_143 = arith.constant 0.797884583 : f32
    %300 = vector.broadcast %cst_143 : f32 to vector<16x64xf32>
    %301 = arith.mulf %300, %299 : vector<16x64xf32>
    %302 = math.tanh %301 : vector<16x64xf32>
    %cst_144 = arith.constant 1.000000e+00 : f32
    %303 = vector.broadcast %cst_144 : f32 to vector<16x64xf32>
    %304 = arith.addf %303, %302 : vector<16x64xf32>
    %cst_145 = arith.constant 5.000000e-01 : f32
    %305 = vector.broadcast %cst_145 : f32 to vector<16x64xf32>
    %306 = arith.mulf %305, %304 : vector<16x64xf32>
    %307 = arith.mulf %294, %306 : vector<16x64xf32>
    %308 = arith.truncf %307 : vector<16x64xf32> to vector<16x64xbf16>
    %c0_146 = arith.constant 0 : index
    %c1_147 = arith.constant 1 : index
    %c0_148 = arith.constant 0 : index
    %c0_149 = arith.constant 0 : index
    %309 = vector.load %arg13[%c0_146, %c1_147, %c0_148, %c0_149] : memref<1x2x64x32xbf16, #tpu.memory_space<vmem>>, vector<1x1x64x32xbf16>
    %310 = vector.shape_cast %309 : vector<1x1x64x32xbf16> to vector<64x32xbf16>
    %cst_150 = arith.constant dense<0.000000e+00> : vector<16x32xf32>
    %311 = tpu.matmul %308, %310, %cst_150 {dimension_numbers = #tpu.dot_dimension_numbers<[1], [0], [0], [1], [0, 0, 1, 1], [], []>} : vector<16x64xbf16>, vector<64x32xbf16>, vector<16x32xf32> -> vector<16x32xf32>
    %c0_151 = arith.constant 0 : index
    %c1_152 = arith.constant 1 : index
    %c0_153 = arith.constant 0 : index
    %c0_154 = arith.constant 0 : index
    %312 = vector.load %arg14[%c0_151, %c1_152, %c0_153, %c0_154] : memref<1x2x1x32xf32, #tpu.memory_space<vmem>>, vector<1x1x1x32xf32>
    %313 = vector.shape_cast %312 : vector<1x1x1x32xf32> to vector<1x32xf32>
    %314 = vector.broadcast %313 : vector<1x32xf32> to vector<16x32xf32>
    %315 = arith.addf %311, %314 : vector<16x32xf32>
    %316 = arith.addf %286, %315 : vector<16x32xf32>
    %c0_155 = arith.constant 0 : index
    %c1_156 = arith.constant 1 : index
    %c0_157 = arith.constant 0 : index
    %c0_158 = arith.constant 0 : index
    %317 = vector.load %arg15[%c0_155, %c1_156, %c0_157, %c0_158] : memref<1x2x1x32xf32, #tpu.memory_space<vmem>>, vector<1x1x1x32xf32>
    %318 = vector.shape_cast %317 : vector<1x1x1x32xf32> to vector<1x32xf32>
    %c0_159 = arith.constant 0 : index
    %c1_160 = arith.constant 1 : index
    %c0_161 = arith.constant 0 : index
    %c0_162 = arith.constant 0 : index
    %319 = vector.load %arg16[%c0_159, %c1_160, %c0_161, %c0_162] : memref<1x2x1x32xf32, #tpu.memory_space<vmem>>, vector<1x1x1x32xf32>
    %320 = vector.shape_cast %319 : vector<1x1x1x32xf32> to vector<1x32xf32>
    %cst_163 = arith.constant dense<0.000000e+00> : vector<16xf32>
    %321 = vector.multi_reduction <add>, %316, %cst_163 [1] : vector<16x32xf32> to vector<16xf32>
    %322 = vector.shape_cast %321 : vector<16xf32> to vector<16x1xf32>
    %cst_164 = arith.constant 3.200000e+01 : f32
    %323 = vector.broadcast %cst_164 : f32 to vector<16x1xf32>
    %324 = arith.divf %322, %323 : vector<16x1xf32>
    %325 = vector.broadcast %324 : vector<16x1xf32> to vector<16x32xf32>
    %326 = arith.subf %316, %325 : vector<16x32xf32>
    %327 = arith.mulf %326, %326 : vector<16x32xf32>
    %cst_165 = arith.constant dense<0.000000e+00> : vector<16xf32>
    %328 = vector.multi_reduction <add>, %327, %cst_165 [1] : vector<16x32xf32> to vector<16xf32>
    %329 = vector.shape_cast %328 : vector<16xf32> to vector<16x1xf32>
    %cst_166 = arith.constant 3.200000e+01 : f32
    %330 = vector.broadcast %cst_166 : f32 to vector<16x1xf32>
    %331 = arith.divf %329, %330 : vector<16x1xf32>
    %332 = vector.broadcast %324 : vector<16x1xf32> to vector<16x32xf32>
    %333 = arith.subf %316, %332 : vector<16x32xf32>
    %cst_167 = arith.constant 9.99999996E-13 : f32
    %334 = vector.broadcast %cst_167 : f32 to vector<16x1xf32>
    %335 = arith.addf %331, %334 : vector<16x1xf32>
    %336 = math.rsqrt %335 : vector<16x1xf32>
    %337 = vector.broadcast %336 : vector<16x1xf32> to vector<16x32xf32>
    %338 = arith.mulf %333, %337 : vector<16x32xf32>
    %339 = vector.broadcast %318 : vector<1x32xf32> to vector<16x32xf32>
    %340 = arith.mulf %338, %339 : vector<16x32xf32>
    %341 = vector.broadcast %320 : vector<1x32xf32> to vector<16x32xf32>
    %342 = arith.addf %340, %341 : vector<16x32xf32>
    %343 = vector.shape_cast %342 : vector<16x32xf32> to vector<2x8x32xf32>
    %344 = vector.extract_strided_slice %343 {offsets = [0, 0, 0], sizes = [2, 1, 32], strides = [1, 1, 1]} : vector<2x8x32xf32> to vector<2x1x32xf32>
    %345 = vector.shape_cast %344 : vector<2x1x32xf32> to vector<2x32xf32>
    %c0_168 = arith.constant 0 : index
    %c0_169 = arith.constant 0 : index
    %c0_170 = arith.constant 0 : index
    %346 = vector.load %arg17[%c0_168, %c0_169, %c0_170] : memref<1x2x32xf32, #tpu.memory_space<vmem>>, vector<1x2x32xf32>
    %347 = vector.shape_cast %346 : vector<1x2x32xf32> to vector<2x32xf32>
    %348 = vector.shape_cast %345 : vector<2x32xf32> to vector<1x2x32xf32>
    tpu.vector_store %arg17[%c0_168, %c0_169, %c0_170], %348 {strides = array<i32>} : memref<1x2x32xf32, #tpu.memory_space<vmem>>, vector<1x2x32xf32>,
    return
  }
  func.func @transform_0(%arg0: i32) -> (i32, i32, i32) {
    %c0_i32 = arith.constant 0 : i32
    %c0_i32_0 = arith.constant 0 : i32
    %c0_i32_1 = arith.constant 0 : i32
    return %arg0, %c0_i32, %c0_i32_0 : i32, i32, i32
  }
  func.func @transform_1(%arg0: i32) -> (i32, i32, i32) {
    %c0_i32 = arith.constant 0 : i32
    %c0_i32_0 = arith.constant 0 : i32
    %c0_i32_1 = arith.constant 0 : i32
    return %arg0, %c0_i32, %c0_i32_0 : i32, i32, i32
  }
  func.func @transform_2(%arg0: i32) -> (i32, i32, i32) {
    %c0_i32 = arith.constant 0 : i32
    %c0_i32_0 = arith.constant 0 : i32
    %c0_i32_1 = arith.constant 0 : i32
    return %arg0, %c0_i32, %c0_i32_0 : i32, i32, i32
  }
  func.func @transform_3(%arg0: i32) -> (i32, i32, i32) {
    %c0_i32 = arith.constant 0 : i32
    %c0_i32_0 = arith.constant 0 : i32
    %c0_i32_1 = arith.constant 0 : i32
    return %arg0, %c0_i32, %c0_i32_0 : i32, i32, i32
  }
  func.func @transform_4(%arg0: i32) -> (i32, i32, i32, i32) {
    %c0_i32 = arith.constant 0 : i32
    %c0_i32_0 = arith.constant 0 : i32
    %c0_i32_1 = arith.constant 0 : i32
    %c0_i32_2 = arith.constant 0 : i32
    return %arg0, %c0_i32, %c0_i32_0, %c0_i32_1 : i32, i32, i32, i32
  }
  func.func @transform_5(%arg0: i32) -> (i32, i32, i32, i32) {
    %c0_i32 = arith.constant 0 : i32
    %c0_i32_0 = arith.constant 0 : i32
    %c0_i32_1 = arith.constant 0 : i32
    %c0_i32_2 = arith.constant 0 : i32
    return %arg0, %c0_i32, %c0_i32_0, %c0_i32_1 : i32, i32, i32, i32
  }
  func.func @transform_6(%arg0: i32) -> (i32, i32, i32, i32) {
    %c0_i32 = arith.constant 0 : i32
    %c0_i32_0 = arith.constant 0 : i32
    %c0_i32_1 = arith.constant 0 : i32
    %c0_i32_2 = arith.constant 0 : i32
    return %arg0, %c0_i32, %c0_i32_0, %c0_i32_1 : i32, i32, i32, i32
  }
  func.func @transform_7(%arg0: i32) -> (i32, i32, i32, i32) {
    %c0_i32 = arith.constant 0 : i32
    %c0_i32_0 = arith.constant 0 : i32
    %c0_i32_1 = arith.constant 0 : i32
    %c0_i32_2 = arith.constant 0 : i32
    return %arg0, %c0_i32, %c0_i32_0, %c0_i32_1 : i32, i32, i32, i32
  }
  func.func @transform_8(%arg0: i32) -> (i32, i32, i32, i32) {
    %c0_i32 = arith.constant 0 : i32
    %c0_i32_0 = arith.constant 0 : i32
    %c0_i32_1 = arith.constant 0 : i32
    %c0_i32_2 = arith.constant 0 : i32
    return %arg0, %c0_i32, %c0_i32_0, %c0_i32_1 : i32, i32, i32, i32
  }
  func.func @transform_9(%arg0: i32) -> (i32, i32, i32, i32) {
    %c0_i32 = arith.constant 0 : i32
    %c0_i32_0 = arith.constant 0 : i32
    %c0_i32_1 = arith.constant 0 : i32
    %c0_i32_2 = arith.constant 0 : i32
    return %arg0, %c0_i32, %c0_i32_0, %c0_i32_1 : i32, i32, i32, i32
  }
  func.func @transform_10(%arg0: i32) -> (i32, i32, i32, i32) {
    %c0_i32 = arith.constant 0 : i32
    %c0_i32_0 = arith.constant 0 : i32
    %c0_i32_1 = arith.constant 0 : i32
    %c0_i32_2 = arith.constant 0 : i32
    return %arg0, %c0_i32, %c0_i32_0, %c0_i32_1 : i32, i32, i32, i32
  }
  func.func @transform_11(%arg0: i32) -> (i32, i32, i32, i32) {
    %c0_i32 = arith.constant 0 : i32
    %c0_i32_0 = arith.constant 0 : i32
    %c0_i32_1 = arith.constant 0 : i32
    %c0_i32_2 = arith.constant 0 : i32
    return %arg0, %c0_i32, %c0_i32_0, %c0_i32_1 : i32, i32, i32, i32
  }
  func.func @transform_12(%arg0: i32) -> (i32, i32, i32, i32) {
    %c0_i32 = arith.constant 0 : i32
    %c0_i32_0 = arith.constant 0 : i32
    %c0_i32_1 = arith.constant 0 : i32
    %c0_i32_2 = arith.constant 0 : i32
    return %arg0, %c0_i32, %c0_i32_0, %c0_i32_1 : i32, i32, i32, i32
  }
  func.func @transform_13(%arg0: i32) -> (i32, i32, i32, i32) {
    %c0_i32 = arith.constant 0 : i32
    %c0_i32_0 = arith.constant 0 : i32
    %c0_i32_1 = arith.constant 0 : i32
    %c0_i32_2 = arith.constant 0 : i32
    return %arg0, %c0_i32, %c0_i32_0, %c0_i32_1 : i32, i32, i32, i32
  }
  func.func @transform_14(%arg0: i32) -> (i32, i32, i32, i32) {
    %c0_i32 = arith.constant 0 : i32
    %c0_i32_0 = arith.constant 0 : i32
    %c0_i32_1 = arith.constant 0 : i32
    %c0_i32_2 = arith.constant 0 : i32
    return %arg0, %c0_i32, %c0_i32_0, %c0_i32_1 : i32, i32, i32, i32
  }
  func.func @transform_15(%arg0: i32) -> (i32, i32, i32, i32) {
    %c0_i32 = arith.constant 0 : i32
    %c0_i32_0 = arith.constant 0 : i32
    %c0_i32_1 = arith.constant 0 : i32
    %c0_i32_2 = arith.constant 0 : i32
    return %arg0, %c0_i32, %c0_i32_0, %c0_i32_1 : i32, i32, i32, i32
  }
  func.func @transform_16(%arg0: i32) -> (i32, i32, i32) {
    %c0_i32 = arith.constant 0 : i32
    %c0_i32_0 = arith.constant 0 : i32
    %c0_i32_1 = arith.constant 0 : i32
    return %arg0, %c0_i32, %c0_i32_0 : i32, i32, i32
  }
}

</mosaic_0001>

<llo_original>
// kernel: text_based_similarity.3
$region0: #{text_based_similarity.3}
  #allocation0 [shape = 'u32[]', space=smem, size = 0x4, offset = 0x4, fixed_abs, tag = 'smem constant byte address 0x4 - core index']
  #allocation1 [shape = 'u32[144,128]{1,0:T(1,128)}', space=vmem, size = 0x12000, scoped, tag = 'internal scratch']
  #allocation2 [shape = 'f32[1,1]{1,0:T(1,128)S(1)}', space=vmem, size = 0x200, scoped, tag = 'scoped memory for text_based_similarity.3']
  %s0 = inlined_call_operand.vmem [shape: f32[2,2,32], index: 0, kind: input, shape index: {}]
  %s1 = inlined_call_operand.vmem [shape: f32[1,64], index: 1, kind: input, shape index: {}]
  %s2 = inlined_call_operand.<no memory space> [shape: f32[1,1], index: 2, kind: input, shape index: {}]
  %s3 = inlined_call_operand.vmem [shape: f32[2,1], index: 3, kind: output, shape index: {}]
  %s4 = sld [smem:[#allocation0]]
  $region22: #{text_based_similarity.3} parent=0
    _
  %s6 = ssub.s32 1, %s4
  %s7 = scalar_select 0, %s6, %s4
  %v8 = vstv %s2
  %9 = vst [vmem:[#allocation2] sm:$0x1] %v8
  // Predicated region
  $region2: #{text_based_similarity.3} parent=0 // pred_check
    _
  $region3: #{text_based_similarity.3} parent=0 // pred_check_branch
    %11 = sbr.rel (0) target = $region5
  $region4: #{text_based_similarity.3} parent=0 // pred_region
    _
  $region5: #{text_based_similarity.3} parent=0 // pred_fallthru
    _
  // Predicated region
  $region6: #{text_based_similarity.3} parent=0 // pred_check
    _
  $region7: #{text_based_similarity.3} parent=0 // pred_check_branch
    %13 = sbr.rel (0) target = $region9
  $region8: #{text_based_similarity.3} parent=0 // pred_region
    _
  $region9: #{text_based_similarity.3} parent=0 // pred_fallthru
    _
  // Predicated region
  $region10: #{text_based_similarity.3} parent=0 // pred_check
    _
  $region11: #{text_based_similarity.3} parent=0 // pred_check_branch
    %15 = sbr.rel (0) target = $region13
  $region12: #{text_based_similarity.3} parent=0 // pred_region
    _
  $region13: #{text_based_similarity.3} parent=0 // pred_fallthru
    _
  %v16 = vld [vmem:[%s0] sm:$0x3]
  %s17 = scalar_lea.vmem %s0, 2
  %v18 = vld [vmem:[%s17] sm:$0x3]
  %v19 = vld [vmem:[%s1] sm:$0x1]
  %v21 = vlaneseq
  %v22 = vshrl.u32 %v21, 7
  %v23 = vsub.s32 0, %v22
  %v24 = vrot.slane %v19, %v23
  %v26 = vmul.f32 %v16, %v24
  %vm27 = vcmask 254976
  %v28 = vsel %vm27, %v26, 0.0
  %29 = vadd.xlane.f32.xlu0 %v28
  %v30 = vpop.xlane.xlu0 %29
  %31 = vrot.lane.b32.xlu0 %v24, 96
  %v32 = vpop.permute.xlu0 %31
  %v34 = vmul.f32 %v18, %v32
  %v35 = vsel %vm27, %v34, 0.0
  %36 = vadd.xlane.f32.xlu0 %v35
  %v37 = vpop.xlane.xlu0 %36
  %v38 = vadd.f32 %v30, %v37
  %v39 = vld [vmem:[#allocation2] sm:$0x1]
  %v41 = vlaneseq
  %v42 = vshrl.u32 %v41, 7
  %v43 = vsub.s32 0, %v42
  %v44 = vrot.slane %v39, %v43
  %v46 = vadd.f32 %v38, %v44
  %vm47 = vcmask 1024
  %48 = vst.msk [vmem:[%s3] sm:$0x3] %vm47, %v46
  // Predicated region
  $region14: #{text_based_similarity.3} parent=0 // pred_check
    _
  $region15: #{text_based_similarity.3} parent=0 // pred_check_branch
    %50 = sbr.rel (0) target = $region17
  $region16: #{text_based_similarity.3} parent=0 // pred_region
    _
  $region17: #{text_based_similarity.3} parent=0 // pred_fallthru
    _
  // Predicated region
  $region18: #{text_based_similarity.3} parent=0 // pred_check
    _
  $region19: #{text_based_similarity.3} parent=0 // pred_check_branch
    %52 = sbr.rel (0) target = $region21
  $region20: #{text_based_similarity.3} parent=0 // pred_region
    _
  $region21: #{text_based_similarity.3} parent=0 // pred_fallthru
    _

// kernel: text_based_similarity.2
$region0: #{text_based_similarity.2}
  #allocation0 [shape = 'u32[]', space=smem, size = 0x4, offset = 0x4, fixed_abs, tag = 'smem constant byte address 0x4 - core index']
  #allocation1 [shape = 'u32[144,128]{1,0:T(1,128)}', space=vmem, size = 0x12000, scoped, tag = 'internal scratch']
  %s0 = inlined_call_operand.vmem [shape: f32[2,16,32], index: 0, kind: input, shape index: {}]
  %s1 = inlined_call_operand.vmem [shape: f32[2,2,8], index: 1, kind: input, shape index: {}]
  %s2 = inlined_call_operand.vmem [shape: f32[2,1,32], index: 2, kind: input, shape index: {}]
  %s3 = inlined_call_operand.vmem [shape: f32[2,1,32], index: 3, kind: input, shape index: {}]
  %s4 = inlined_call_operand.vmem [shape: bf16[2,2,32,96], index: 4, kind: input, shape index: {}]
  %s5 = inlined_call_operand.vmem [shape: f32[2,2,1,96], index: 5, kind: input, shape index: {}]
  %s6 = inlined_call_operand.vmem [shape: bf16[2,2,32,32], index: 6, kind: input, shape index: {}]
  %s7 = inlined_call_operand.vmem [shape: f32[2,2,1,32], index: 7, kind: input, shape index: {}]
  %s8 = inlined_call_operand.vmem [shape: f32[2,2,1,32], index: 8, kind: input, shape index: {}]
  %s9 = inlined_call_operand.vmem [shape: f32[2,2,1,32], index: 9, kind: input, shape index: {}]
  %s10 = inlined_call_operand.vmem [shape: bf16[2,2,32,64], index: 10, kind: input, shape index: {}]
  %s11 = inlined_call_operand.vmem [shape: f32[2,2,1,64], index: 11, kind: input, shape index: {}]
  %s12 = inlined_call_operand.vmem [shape: bf16[2,2,64,32], index: 12, kind: input, shape index: {}]
  %s13 = inlined_call_operand.vmem [shape: f32[2,2,1,32], index: 13, kind: input, shape index: {}]
  %s14 = inlined_call_operand.vmem [shape: f32[2,2,1,32], index: 14, kind: input, shape index: {}]
  %s15 = inlined_call_operand.vmem [shape: f32[2,2,1,32], index: 15, kind: input, shape index: {}]
  %s16 = inlined_call_operand.vmem [shape: f32[2,2,32], index: 16, kind: output, shape index: {}]
  %s17 = sld [smem:[#allocation0]]
  $region97: #{text_based_similarity.2} parent=0
    _
  %s19 = ssub.s32 1, %s17
  %s20 = scalar_select 0, %s19, %s17
  loop: start=0, step=1, limit=4
  $region2: #{text_based_similarity.2} parent=0 // loop_pre_header
    _
  $region3: #{text_based_similarity.2} parent=0 // loop_header
    %s22 = sphi 0, %s26
    %p23 = scmp.ge.s32.totalorder %s22, 4
    %s32 = sphi 0, %s34
    %s35 = sphi 0, %s32
    %s36 = sphi 0, %s35
    %s52 = sphi 0, %s36
    %s58 = sphi 0, %s60
    %s61 = sphi 0, %s58
    %s62 = sphi 0, %s61
    %s78 = sphi 0, %s62
    %s84 = sphi 0, %s86
    %s87 = sphi 0, %s84
    %s88 = sphi 0, %s87
    %s104 = sphi 0, %s88
    %s110 = sphi 0, %s112
    %s113 = sphi 0, %s110
    %s114 = sphi 0, %s113
    %s130 = sphi 0, %s114
    %s136 = sphi 0, %s138
    %s139 = sphi 0, %s136
    %s140 = sphi 0, %s139
    %s156 = sphi 0, %s140
    %s162 = sphi 0, %s164
    %s165 = sphi 0, %s162
    %s166 = sphi 0, %s165
    %s182 = sphi 0, %s166
    %s188 = sphi 0, %s190
    %s191 = sphi 0, %s188
    %s192 = sphi 0, %s191
    %s208 = sphi 0, %s192
    %s214 = sphi 0, %s216
    %s217 = sphi 0, %s214
    %s218 = sphi 0, %s217
    %s234 = sphi 0, %s218
    %s240 = sphi 0, %s242
    %s243 = sphi 0, %s240
    %s244 = sphi 0, %s243
    %s260 = sphi 0, %s244
    %s266 = sphi 0, %s268
    %s269 = sphi 0, %s266
    %s270 = sphi 0, %s269
    %s286 = sphi 0, %s270
    %s292 = sphi 0, %s294
    %s295 = sphi 0, %s292
    %s296 = sphi 0, %s295
    %s312 = sphi 0, %s296
    %s318 = sphi 0, %s320
    %s321 = sphi 0, %s318
    %s322 = sphi 0, %s321
    %s338 = sphi 0, %s322
    %s344 = sphi 0, %s346
    %s347 = sphi 0, %s344
    %s348 = sphi 0, %s347
    %s364 = sphi 0, %s348
    %s370 = sphi 0, %s372
    %s373 = sphi 0, %s370
    %s374 = sphi 0, %s373
    %s390 = sphi 0, %s374
    %s396 = sphi 0, %s398
    %s399 = sphi 0, %s396
    %s400 = sphi 0, %s399
    %s416 = sphi 0, %s400
    %s422 = sphi 0, %s424
    %s425 = sphi 0, %s422
    %s426 = sphi 0, %s425
    %s442 = sphi 0, %s426
    %s448 = sphi 0, %s450
    %s451 = sphi 0, %s448
    %s452 = sphi 0, %s451
    %s468 = sphi 0, %s452
  $region4: #{text_based_similarity.2} parent=0 // loop_header_branch
    %25 = sbr.rel (%p23) target = $region8
  $region5: #{text_based_similarity.2} parent=0 // loop_body
    %s27 = ssub.s32 %s22, 1
    %s28 = ssub.s32 %s22, 2
    %s29 = sadd.s32 %s22, 1
    %s30 = ssub.s32 %s22, %s29
    %p31 = scmp.eq.s32.totalorder %s30, 0
    %s33 = sadd.s32 %s32, 1
    %s34 = scalar_select %p31, %s32, %s33
    %p37 = pneg %p31
    %p38 = scmp.eq.s32.totalorder %s22, 1
    %p39 = por %p37, %p38
    %p40 = scmp.ne.s32.totalorder %s32, %s35
    %p41 = scmp.eq.s32.totalorder %s22, 0
    %p42 = por %p40, %p41
    %p43 = scmp.ne.s32.totalorder %s32, %s35
    %p44 = scmp.eq.s32.totalorder %s27, 1
    %p45 = por %p43, %p44
    %p46 = scmp.ne.s32.totalorder %s35, %s36
    %p47 = scmp.eq.s32.totalorder %s27, 0
    %p48 = por %p46, %p47
    %p49 = scmp.ne.s32.totalorder %s35, %s36
    %p50 = scmp.eq.s32.totalorder %s28, 1
    %p51 = por %p49, %p50
    %p53 = scmp.ne.s32.totalorder %s36, %s52
    %p54 = scmp.eq.s32.totalorder %s28, 0
    %p55 = por %p53, %p54
    %s56 = ssub.s32 %s22, %s29
    %p57 = scmp.eq.s32.totalorder %s56, 0
    %s59 = sadd.s32 %s58, 1
    %s60 = scalar_select %p57, %s58, %s59
    %p63 = pneg %p57
    %p64 = scmp.eq.s32.totalorder %s22, 1
    %p65 = por %p63, %p64
    %p66 = scmp.ne.s32.totalorder %s58, %s61
    %p67 = scmp.eq.s32.totalorder %s22, 0
    %p68 = por %p66, %p67
    %p69 = scmp.ne.s32.totalorder %s58, %s61
    %p70 = scmp.eq.s32.totalorder %s27, 1
    %p71 = por %p69, %p70
    %p72 = scmp.ne.s32.totalorder %s61, %s62
    %p73 = scmp.eq.s32.totalorder %s27, 0
    %p74 = por %p72, %p73
    %p75 = scmp.ne.s32.totalorder %s61, %s62
    %p76 = scmp.eq.s32.totalorder %s28, 1
    %p77 = por %p75, %p76
    %p79 = scmp.ne.s32.totalorder %s62, %s78
    %p80 = scmp.eq.s32.totalorder %s28, 0
    %p81 = por %p79, %p80
    %s82 = ssub.s32 %s22, %s29
    %p83 = scmp.eq.s32.totalorder %s82, 0
    %s85 = sadd.s32 %s84, 1
    %s86 = scalar_select %p83, %s84, %s85
    %p89 = pneg %p83
    %p90 = scmp.eq.s32.totalorder %s22, 1
    %p91 = por %p89, %p90
    %p92 = scmp.ne.s32.totalorder %s84, %s87
    %p93 = scmp.eq.s32.totalorder %s22, 0
    %p94 = por %p92, %p93
    %p95 = scmp.ne.s32.totalorder %s84, %s87
    %p96 = scmp.eq.s32.totalorder %s27, 1
    %p97 = por %p95, %p96
    %p98 = scmp.ne.s32.totalorder %s87, %s88
    %p99 = scmp.eq.s32.totalorder %s27, 0
    %p100 = por %p98, %p99
    %p101 = scmp.ne.s32.totalorder %s87, %s88
    %p102 = scmp.eq.s32.totalorder %s28, 1
    %p103 = por %p101, %p102
    %p105 = scmp.ne.s32.totalorder %s88, %s104
    %p106 = scmp.eq.s32.totalorder %s28, 0
    %p107 = por %p105, %p106
    %s108 = ssub.s32 %s22, %s29
    %p109 = scmp.eq.s32.totalorder %s108, 0
    %s111 = sadd.s32 %s110, 1
    %s112 = scalar_select %p109, %s110, %s111
    %p115 = pneg %p109
    %p116 = scmp.eq.s32.totalorder %s22, 1
    %p117 = por %p115, %p116
    %p118 = scmp.ne.s32.totalorder %s110, %s113
    %p119 = scmp.eq.s32.totalorder %s22, 0
    %p120 = por %p118, %p119
    %p121 = scmp.ne.s32.totalorder %s110, %s113
    %p122 = scmp.eq.s32.totalorder %s27, 1
    %p123 = por %p121, %p122
    %p124 = scmp.ne.s32.totalorder %s113, %s114
    %p125 = scmp.eq.s32.totalorder %s27, 0
    %p126 = por %p124, %p125
    %p127 = scmp.ne.s32.totalorder %s113, %s114
    %p128 = scmp.eq.s32.totalorder %s28, 1
    %p129 = por %p127, %p128
    %p131 = scmp.ne.s32.totalorder %s114, %s130
    %p132 = scmp.eq.s32.totalorder %s28, 0
    %p133 = por %p131, %p132
    %s134 = ssub.s32 %s22, %s29
    %p135 = scmp.eq.s32.totalorder %s134, 0
    %s137 = sadd.s32 %s136, 1
    %s138 = scalar_select %p135, %s136, %s137
    %p141 = pneg %p135
    %p142 = scmp.eq.s32.totalorder %s22, 1
    %p143 = por %p141, %p142
    %p144 = scmp.ne.s32.totalorder %s136, %s139
    %p145 = scmp.eq.s32.totalorder %s22, 0
    %p146 = por %p144, %p145
    %p147 = scmp.ne.s32.totalorder %s136, %s139
    %p148 = scmp.eq.s32.totalorder %s27, 1
    %p149 = por %p147, %p148
    %p150 = scmp.ne.s32.totalorder %s139, %s140
    %p151 = scmp.eq.s32.totalorder %s27, 0
    %p152 = por %p150, %p151
    %p153 = scmp.ne.s32.totalorder %s139, %s140
    %p154 = scmp.eq.s32.totalorder %s28, 1
    %p155 = por %p153, %p154
    %p157 = scmp.ne.s32.totalorder %s140, %s156
    %p158 = scmp.eq.s32.totalorder %s28, 0
    %p159 = por %p157, %p158
    %s160 = ssub.s32 %s22, %s29
    %p161 = scmp.eq.s32.totalorder %s160, 0
    %s163 = sadd.s32 %s162, 1
    %s164 = scalar_select %p161, %s162, %s163
    %p167 = pneg %p161
    %p168 = scmp.eq.s32.totalorder %s22, 1
    %p169 = por %p167, %p168
    %p170 = scmp.ne.s32.totalorder %s162, %s165
    %p171 = scmp.eq.s32.totalorder %s22, 0
    %p172 = por %p170, %p171
    %p173 = scmp.ne.s32.totalorder %s162, %s165
    %p174 = scmp.eq.s32.totalorder %s27, 1
    %p175 = por %p173, %p174
    %p176 = scmp.ne.s32.totalorder %s165, %s166
    %p177 = scmp.eq.s32.totalorder %s27, 0
    %p178 = por %p176, %p177
    %p179 = scmp.ne.s32.totalorder %s165, %s166
    %p180 = scmp.eq.s32.totalorder %s28, 1
    %p181 = por %p179, %p180
    %p183 = scmp.ne.s32.totalorder %s166, %s182
    %p184 = scmp.eq.s32.totalorder %s28, 0
    %p185 = por %p183, %p184
    %s186 = ssub.s32 %s22, %s29
    %p187 = scmp.eq.s32.totalorder %s186, 0
    %s189 = sadd.s32 %s188, 1
    %s190 = scalar_select %p187, %s188, %s189
    %p193 = pneg %p187
    %p194 = scmp.eq.s32.totalorder %s22, 1
    %p195 = por %p193, %p194
    %p196 = scmp.ne.s32.totalorder %s188, %s191
    %p197 = scmp.eq.s32.totalorder %s22, 0
    %p198 = por %p196, %p197
    %p199 = scmp.ne.s32.totalorder %s188, %s191
    %p200 = scmp.eq.s32.totalorder %s27, 1
    %p201 = por %p199, %p200
    %p202 = scmp.ne.s32.totalorder %s191, %s192
    %p203 = scmp.eq.s32.totalorder %s27, 0
    %p204 = por %p202, %p203
    %p205 = scmp.ne.s32.totalorder %s191, %s192
    %p206 = scmp.eq.s32.totalorder %s28, 1
    %p207 = por %p205, %p206
    %p209 = scmp.ne.s32.totalorder %s192, %s208
    %p210 = scmp.eq.s32.totalorder %s28, 0
    %p211 = por %p209, %p210
    %s212 = ssub.s32 %s22, %s29
    %p213 = scmp.eq.s32.totalorder %s212, 0
    %s215 = sadd.s32 %s214, 1
    %s216 = scalar_select %p213, %s214, %s215
    %p219 = pneg %p213
    %p220 = scmp.eq.s32.totalorder %s22, 1
    %p221 = por %p219, %p220
    %p222 = scmp.ne.s32.totalorder %s214, %s217
    %p223 = scmp.eq.s32.totalorder %s22, 0
    %p224 = por %p222, %p223
    %p225 = scmp.ne.s32.totalorder %s214, %s217
    %p226 = scmp.eq.s32.totalorder %s27, 1
    %p227 = por %p225, %p226
    %p228 = scmp.ne.s32.totalorder %s217, %s218
    %p229 = scmp.eq.s32.totalorder %s27, 0
    %p230 = por %p228, %p229
    %p231 = scmp.ne.s32.totalorder %s217, %s218
    %p232 = scmp.eq.s32.totalorder %s28, 1
    %p233 = por %p231, %p232
    %p235 = scmp.ne.s32.totalorder %s218, %s234
    %p236 = scmp.eq.s32.totalorder %s28, 0
    %p237 = por %p235, %p236
    %s238 = ssub.s32 %s22, %s29
    %p239 = scmp.eq.s32.totalorder %s238, 0
    %s241 = sadd.s32 %s240, 1
    %s242 = scalar_select %p239, %s240, %s241
    %p245 = pneg %p239
    %p246 = scmp.eq.s32.totalorder %s22, 1
    %p247 = por %p245, %p246
    %p248 = scmp.ne.s32.totalorder %s240, %s243
    %p249 = scmp.eq.s32.totalorder %s22, 0
    %p250 = por %p248, %p249
    %p251 = scmp.ne.s32.totalorder %s240, %s243
    %p252 = scmp.eq.s32.totalorder %s27, 1
    %p253 = por %p251, %p252
    %p254 = scmp.ne.s32.totalorder %s243, %s244
    %p255 = scmp.eq.s32.totalorder %s27, 0
    %p256 = por %p254, %p255
    %p257 = scmp.ne.s32.totalorder %s243, %s244
    %p258 = scmp.eq.s32.totalorder %s28, 1
    %p259 = por %p257, %p258
    %p261 = scmp.ne.s32.totalorder %s244, %s260
    %p262 = scmp.eq.s32.totalorder %s28, 0
    %p263 = por %p261, %p262
    %s264 = ssub.s32 %s22, %s29
    %p265 = scmp.eq.s32.totalorder %s264, 0
    %s267 = sadd.s32 %s266, 1
    %s268 = scalar_select %p265, %s266, %s267
    %p271 = pneg %p265
    %p272 = scmp.eq.s32.totalorder %s22, 1
    %p273 = por %p271, %p272
    %p274 = scmp.ne.s32.totalorder %s266, %s269
    %p275 = scmp.eq.s32.totalorder %s22, 0
    %p276 = por %p274, %p275
    %p277 = scmp.ne.s32.totalorder %s266, %s269
    %p278 = scmp.eq.s32.totalorder %s27, 1
    %p279 = por %p277, %p278
    %p280 = scmp.ne.s32.totalorder %s269, %s270
    %p281 = scmp.eq.s32.totalorder %s27, 0
    %p282 = por %p280, %p281
    %p283 = scmp.ne.s32.totalorder %s269, %s270
    %p284 = scmp.eq.s32.totalorder %s28, 1
    %p285 = por %p283, %p284
    %p287 = scmp.ne.s32.totalorder %s270, %s286
    %p288 = scmp.eq.s32.totalorder %s28, 0
    %p289 = por %p287, %p288
    %s290 = ssub.s32 %s22, %s29
    %p291 = scmp.eq.s32.totalorder %s290, 0
    %s293 = sadd.s32 %s292, 1
    %s294 = scalar_select %p291, %s292, %s293
    %p297 = pneg %p291
    %p298 = scmp.eq.s32.totalorder %s22, 1
    %p299 = por %p297, %p298
    %p300 = scmp.ne.s32.totalorder %s292, %s295
    %p301 = scmp.eq.s32.totalorder %s22, 0
    %p302 = por %p300, %p301
    %p303 = scmp.ne.s32.totalorder %s292, %s295
    %p304 = scmp.eq.s32.totalorder %s27, 1
    %p305 = por %p303, %p304
    %p306 = scmp.ne.s32.totalorder %s295, %s296
    %p307 = scmp.eq.s32.totalorder %s27, 0
    %p308 = por %p306, %p307
    %p309 = scmp.ne.s32.totalorder %s295, %s296
    %p310 = scmp.eq.s32.totalorder %s28, 1
    %p311 = por %p309, %p310
    %p313 = scmp.ne.s32.totalorder %s296, %s312
    %p314 = scmp.eq.s32.totalorder %s28, 0
    %p315 = por %p313, %p314
    %s316 = ssub.s32 %s22, %s29
    %p317 = scmp.eq.s32.totalorder %s316, 0
    %s319 = sadd.s32 %s318, 1
    %s320 = scalar_select %p317, %s318, %s319
    %p323 = pneg %p317
    %p324 = scmp.eq.s32.totalorder %s22, 1
    %p325 = por %p323, %p324
    %p326 = scmp.ne.s32.totalorder %s318, %s321
    %p327 = scmp.eq.s32.totalorder %s22, 0
    %p328 = por %p326, %p327
    %p329 = scmp.ne.s32.totalorder %s318, %s321
    %p330 = scmp.eq.s32.totalorder %s27, 1
    %p331 = por %p329, %p330
    %p332 = scmp.ne.s32.totalorder %s321, %s322
    %p333 = scmp.eq.s32.totalorder %s27, 0
    %p334 = por %p332, %p333
    %p335 = scmp.ne.s32.totalorder %s321, %s322
    %p336 = scmp.eq.s32.totalorder %s28, 1
    %p337 = por %p335, %p336
    %p339 = scmp.ne.s32.totalorder %s322, %s338
    %p340 = scmp.eq.s32.totalorder %s28, 0
    %p341 = por %p339, %p340
    %s342 = ssub.s32 %s22, %s29
    %p343 = scmp.eq.s32.totalorder %s342, 0
    %s345 = sadd.s32 %s344, 1
    %s346 = scalar_select %p343, %s344, %s345
    %p349 = pneg %p343
    %p350 = scmp.eq.s32.totalorder %s22, 1
    %p351 = por %p349, %p350
    %p352 = scmp.ne.s32.totalorder %s344, %s347
    %p353 = scmp.eq.s32.totalorder %s22, 0
    %p354 = por %p352, %p353
    %p355 = scmp.ne.s32.totalorder %s344, %s347
    %p356 = scmp.eq.s32.totalorder %s27, 1
    %p357 = por %p355, %p356
    %p358 = scmp.ne.s32.totalorder %s347, %s348
    %p359 = scmp.eq.s32.totalorder %s27, 0
    %p360 = por %p358, %p359
    %p361 = scmp.ne.s32.totalorder %s347, %s348
    %p362 = scmp.eq.s32.totalorder %s28, 1
    %p363 = por %p361, %p362
    %p365 = scmp.ne.s32.totalorder %s348, %s364
    %p366 = scmp.eq.s32.totalorder %s28, 0
    %p367 = por %p365, %p366
    %s368 = ssub.s32 %s22, %s29
    %p369 = scmp.eq.s32.totalorder %s368, 0
    %s371 = sadd.s32 %s370, 1
    %s372 = scalar_select %p369, %s370, %s371
    %p375 = pneg %p369
    %p376 = scmp.eq.s32.totalorder %s22, 1
    %p377 = por %p375, %p376
    %p378 = scmp.ne.s32.totalorder %s370, %s373
    %p379 = scmp.eq.s32.totalorder %s22, 0
    %p380 = por %p378, %p379
    %p381 = scmp.ne.s32.totalorder %s370, %s373
    %p382 = scmp.eq.s32.totalorder %s27, 1
    %p383 = por %p381, %p382
    %p384 = scmp.ne.s32.totalorder %s373, %s374
    %p385 = scmp.eq.s32.totalorder %s27, 0
    %p386 = por %p384, %p385
    %p387 = scmp.ne.s32.totalorder %s373, %s374
    %p388 = scmp.eq.s32.totalorder %s28, 1
    %p389 = por %p387, %p388
    %p391 = scmp.ne.s32.totalorder %s374, %s390
    %p392 = scmp.eq.s32.totalorder %s28, 0
    %p393 = por %p391, %p392
    %s394 = ssub.s32 %s22, %s29
    %p395 = scmp.eq.s32.totalorder %s394, 0
    %s397 = sadd.s32 %s396, 1
    %s398 = scalar_select %p395, %s396, %s397
    %p401 = pneg %p395
    %p402 = scmp.eq.s32.totalorder %s22, 1
    %p403 = por %p401, %p402
    %p404 = scmp.ne.s32.totalorder %s396, %s399
    %p405 = scmp.eq.s32.totalorder %s22, 0
    %p406 = por %p404, %p405
    %p407 = scmp.ne.s32.totalorder %s396, %s399
    %p408 = scmp.eq.s32.totalorder %s27, 1
    %p409 = por %p407, %p408
    %p410 = scmp.ne.s32.totalorder %s399, %s400
    %p411 = scmp.eq.s32.totalorder %s27, 0
    %p412 = por %p410, %p411
    %p413 = scmp.ne.s32.totalorder %s399, %s400
    %p414 = scmp.eq.s32.totalorder %s28, 1
    %p415 = por %p413, %p414
    %p417 = scmp.ne.s32.totalorder %s400, %s416
    %p418 = scmp.eq.s32.totalorder %s28, 0
    %p419 = por %p417, %p418
    %s420 = ssub.s32 %s22, %s29
    %p421 = scmp.eq.s32.totalorder %s420, 0
    %s423 = sadd.s32 %s422, 1
    %s424 = scalar_select %p421, %s422, %s423
    %p427 = pneg %p421
    %p428 = scmp.eq.s32.totalorder %s22, 1
    %p429 = por %p427, %p428
    %p430 = scmp.ne.s32.totalorder %s422, %s425
    %p431 = scmp.eq.s32.totalorder %s22, 0
    %p432 = por %p430, %p431
    %p433 = scmp.ne.s32.totalorder %s422, %s425
    %p434 = scmp.eq.s32.totalorder %s27, 1
    %p435 = por %p433, %p434
    %p436 = scmp.ne.s32.totalorder %s425, %s426
    %p437 = scmp.eq.s32.totalorder %s27, 0
    %p438 = por %p436, %p437
    %p439 = scmp.ne.s32.totalorder %s425, %s426
    %p440 = scmp.eq.s32.totalorder %s28, 1
    %p441 = por %p439, %p440
    %p443 = scmp.ne.s32.totalorder %s426, %s442
    %p444 = scmp.eq.s32.totalorder %s28, 0
    %p445 = por %p443, %p444
    %s446 = ssub.s32 %s22, %s29
    %p447 = scmp.eq.s32.totalorder %s446, 0
    %s449 = sadd.s32 %s448, 1
    %s450 = scalar_select %p447, %s448, %s449
    %p453 = pneg %p447
    %p454 = scmp.eq.s32.totalorder %s22, 1
    %p455 = por %p453, %p454
    %p456 = scmp.ne.s32.totalorder %s448, %s451
    %p457 = scmp.eq.s32.totalorder %s22, 0
    %p458 = por %p456, %p457
    %p459 = scmp.ne.s32.totalorder %s448, %s451
    %p460 = scmp.eq.s32.totalorder %s27, 1
    %p461 = por %p459, %p460
    %p462 = scmp.ne.s32.totalorder %s451, %s452
    %p463 = scmp.eq.s32.totalorder %s27, 0
    %p464 = por %p462, %p463
    %p465 = scmp.ne.s32.totalorder %s451, %s452
    %p466 = scmp.eq.s32.totalorder %s28, 1
    %p467 = por %p465, %p466
    %p469 = scmp.ne.s32.totalorder %s452, %s468
    %p470 = scmp.eq.s32.totalorder %s28, 0
    %p471 = por %p469, %p470
    %p472 = scmp.le.s32.totalorder 1, %s22
    %p473 = scmp.lt.s32.totalorder %s22, 3
    %p474 = pnand %p472, %p473
    %p475 = pneg %p474
    // Predicated region
    $region9: #{text_based_similarity.2} parent=5 // pred_check
      _
    $region10: #{text_based_similarity.2} parent=5 // pred_check_branch
      %477 = sbr.rel (%p474) target = $region12
    $region11: #{text_based_similarity.2} parent=5 // pred_region
      %s478 = ssub.s32 %s22, 1
    $region12: #{text_based_similarity.2} parent=5 // pred_fallthru
      _
    %p479 = scmp.lt.s32.totalorder %s22, 2
    // Predicated region
    $region13: #{text_based_similarity.2} parent=5 // pred_check
      %p480 = pneg %p479
    $region14: #{text_based_similarity.2} parent=5 // pred_check_branch
      %482 = sbr.rel (%p480) target = $region16
    $region15: #{text_based_similarity.2} parent=5 // pred_region
      // Predicated region
      $region17: #{text_based_similarity.2} parent=15 // pred_check
        %p483 = pneg %p42
      $region18: #{text_based_similarity.2} parent=15 // pred_check_branch
        %485 = sbr.rel (%p483) target = $region20
      $region19: #{text_based_similarity.2} parent=15 // pred_region
        %p486 = scmp.lt.s32.totalorder %s22, 1
        %s487 = scalar_select %p486, %s22, 1
        %s488 = smul.addr %s487, 2
        %s489 = smul.addr %s488, 8
        %s490 = scalar_lea.vmem %s0, %s489
      $region20: #{text_based_similarity.2} parent=15 // pred_fallthru
        _
      // Predicated region
      $region21: #{text_based_similarity.2} parent=15 // pred_check
        %p491 = pneg %p68
      $region22: #{text_based_similarity.2} parent=15 // pred_check_branch
        %493 = sbr.rel (%p491) target = $region24
      $region23: #{text_based_similarity.2} parent=15 // pred_region
        %p494 = scmp.lt.s32.totalorder %s22, 1
        %s495 = scalar_select %p494, %s22, 1
        %s496 = smul.addr %s495, 2
        %s497 = scalar_lea.vmem %s1, %s496
      $region24: #{text_based_similarity.2} parent=15 // pred_fallthru
        _
      // Predicated region
      $region25: #{text_based_similarity.2} parent=15 // pred_check
        %p498 = pneg %p94
      $region26: #{text_based_similarity.2} parent=15 // pred_check_branch
        %500 = sbr.rel (%p498) target = $region28
      $region27: #{text_based_similarity.2} parent=15 // pred_region
        %p501 = scmp.lt.s32.totalorder %s22, 1
        %s502 = scalar_select %p501, %s22, 1
        %s503 = scalar_lea.vmem %s2, %s502
      $region28: #{text_based_similarity.2} parent=15 // pred_fallthru
        _
      // Predicated region
      $region29: #{text_based_similarity.2} parent=15 // pred_check
        %p504 = pneg %p120
      $region30: #{text_based_similarity.2} parent=15 // pred_check_branch
        %506 = sbr.rel (%p504) target = $region32
      $region31: #{text_based_similarity.2} parent=15 // pred_region
        %p507 = scmp.lt.s32.totalorder %s22, 1
        %s508 = scalar_select %p507, %s22, 1
        %s509 = scalar_lea.vmem %s3, %s508
      $region32: #{text_based_similarity.2} parent=15 // pred_fallthru
        _
      // Predicated region
      $region33: #{text_based_similarity.2} parent=15 // pred_check
        %p510 = pneg %p146
      $region34: #{text_based_similarity.2} parent=15 // pred_check_branch
        %512 = sbr.rel (%p510) target = $region36
      $region35: #{text_based_similarity.2} parent=15 // pred_region
        %p513 = scmp.lt.s32.totalorder %s22, 1
        %s514 = scalar_select %p513, %s22, 1
        %s515 = smul.addr %s514, 8
        %s516 = smul.addr %s515, 4
        %s517 = scalar_lea.vmem %s4, %s516
      $region36: #{text_based_similarity.2} parent=15 // pred_fallthru
        _
      // Predicated region
      $region37: #{text_based_similarity.2} parent=15 // pred_check
        %p518 = pneg %p172
      $region38: #{text_based_similarity.2} parent=15 // pred_check_branch
        %520 = sbr.rel (%p518) target = $region40
      $region39: #{text_based_similarity.2} parent=15 // pred_region
        %p521 = scmp.lt.s32.totalorder %s22, 1
        %s522 = scalar_select %p521, %s22, 1
        %s523 = smul.addr %s522, 2
        %s524 = scalar_lea.vmem %s5, %s523
      $region40: #{text_based_similarity.2} parent=15 // pred_fallthru
        _
      // Predicated region
      $region41: #{text_based_similarity.2} parent=15 // pred_check
        %p525 = pneg %p198
      $region42: #{text_based_similarity.2} parent=15 // pred_check_branch
        %527 = sbr.rel (%p525) target = $region44
      $region43: #{text_based_similarity.2} parent=15 // pred_region
        %p528 = scmp.lt.s32.totalorder %s22, 1
        %s529 = scalar_select %p528, %s22, 1
        %s530 = smul.addr %s529, 8
        %s531 = smul.addr %s530, 4
        %s532 = scalar_lea.vmem %s6, %s531
      $region44: #{text_based_similarity.2} parent=15 // pred_fallthru
        _
      // Predicated region
      $region45: #{text_based_similarity.2} parent=15 // pred_check
        %p533 = pneg %p224
      $region46: #{text_based_similarity.2} parent=15 // pred_check_branch
        %535 = sbr.rel (%p533) target = $region48
      $region47: #{text_based_similarity.2} parent=15 // pred_region
        %p536 = scmp.lt.s32.totalorder %s22, 1
        %s537 = scalar_select %p536, %s22, 1
        %s538 = smul.addr %s537, 2
        %s539 = scalar_lea.vmem %s7, %s538
      $region48: #{text_based_similarity.2} parent=15 // pred_fallthru
        _
      // Predicated region
      $region49: #{text_based_similarity.2} parent=15 // pred_check
        %p540 = pneg %p250
      $region50: #{text_based_similarity.2} parent=15 // pred_check_branch
        %542 = sbr.rel (%p540) target = $region52
      $region51: #{text_based_similarity.2} parent=15 // pred_region
        %p543 = scmp.lt.s32.totalorder %s22, 1
        %s544 = scalar_select %p543, %s22, 1
        %s545 = smul.addr %s544, 2
        %s546 = scalar_lea.vmem %s8, %s545
      $region52: #{text_based_similarity.2} parent=15 // pred_fallthru
        _
      // Predicated region
      $region53: #{text_based_similarity.2} parent=15 // pred_check
        %p547 = pneg %p276
      $region54: #{text_based_similarity.2} parent=15 // pred_check_branch
        %549 = sbr.rel (%p547) target = $region56
      $region55: #{text_based_similarity.2} parent=15 // pred_region
        %p550 = scmp.lt.s32.totalorder %s22, 1
        %s551 = scalar_select %p550, %s22, 1
        %s552 = smul.addr %s551, 2
        %s553 = scalar_lea.vmem %s9, %s552
      $region56: #{text_based_similarity.2} parent=15 // pred_fallthru
        _
      // Predicated region
      $region57: #{text_based_similarity.2} parent=15 // pred_check
        %p554 = pneg %p302
      $region58: #{text_based_similarity.2} parent=15 // pred_check_branch
        %556 = sbr.rel (%p554) target = $region60
      $region59: #{text_based_similarity.2} parent=15 // pred_region
        %p557 = scmp.lt.s32.totalorder %s22, 1
        %s558 = scalar_select %p557, %s22, 1
        %s559 = smul.addr %s558, 8
        %s560 = smul.addr %s559, 4
        %s561 = scalar_lea.vmem %s10, %s560
      $region60: #{text_based_similarity.2} parent=15 // pred_fallthru
        _
      // Predicated region
      $region61: #{text_based_similarity.2} parent=15 // pred_check
        %p562 = pneg %p328
      $region62: #{text_based_similarity.2} parent=15 // pred_check_branch
        %564 = sbr.rel (%p562) target = $region64
      $region63: #{text_based_similarity.2} parent=15 // pred_region
        %p565 = scmp.lt.s32.totalorder %s22, 1
        %s566 = scalar_select %p565, %s22, 1
        %s567 = smul.addr %s566, 2
        %s568 = scalar_lea.vmem %s11, %s567
      $region64: #{text_based_similarity.2} parent=15 // pred_fallthru
        _
      // Predicated region
      $region65: #{text_based_similarity.2} parent=15 // pred_check
        %p569 = pneg %p354
      $region66: #{text_based_similarity.2} parent=15 // pred_check_branch
        %571 = sbr.rel (%p569) target = $region68
      $region67: #{text_based_similarity.2} parent=15 // pred_region
        %p572 = scmp.lt.s32.totalorder %s22, 1
        %s573 = scalar_select %p572, %s22, 1
        %s574 = smul.addr %s573, 16
        %s575 = smul.addr %s574, 4
        %s576 = scalar_lea.vmem %s12, %s575
      $region68: #{text_based_similarity.2} parent=15 // pred_fallthru
        _
      // Predicated region
      $region69: #{text_based_similarity.2} parent=15 // pred_check
        %p577 = pneg %p380
      $region70: #{text_based_similarity.2} parent=15 // pred_check_branch
        %579 = sbr.rel (%p577) target = $region72
      $region71: #{text_based_similarity.2} parent=15 // pred_region
        %p580 = scmp.lt.s32.totalorder %s22, 1
        %s581 = scalar_select %p580, %s22, 1
        %s582 = smul.addr %s581, 2
        %s583 = scalar_lea.vmem %s13, %s582
      $region72: #{text_based_similarity.2} parent=15 // pred_fallthru
        _
      // Predicated region
      $region73: #{text_based_similarity.2} parent=15 // pred_check
        %p584 = pneg %p406
      $region74: #{text_based_similarity.2} parent=15 // pred_check_branch
        %586 = sbr.rel (%p584) target = $region76
      $region75: #{text_based_similarity.2} parent=15 // pred_region
        %p587 = scmp.lt.s32.totalorder %s22, 1
        %s588 = scalar_select %p587, %s22, 1
        %s589 = smul.addr %s588, 2
        %s590 = scalar_lea.vmem %s14, %s589
      $region76: #{text_based_similarity.2} parent=15 // pred_fallthru
        _
      // Predicated region
      $region77: #{text_based_similarity.2} parent=15 // pred_check
        %p591 = pneg %p432
      $region78: #{text_based_similarity.2} parent=15 // pred_check_branch
        %593 = sbr.rel (%p591) target = $region80
      $region79: #{text_based_similarity.2} parent=15 // pred_region
        %p594 = scmp.lt.s32.totalorder %s22, 1
        %s595 = scalar_select %p594, %s22, 1
        %s596 = smul.addr %s595, 2
        %s597 = scalar_lea.vmem %s15, %s596
      $region80: #{text_based_similarity.2} parent=15 // pred_fallthru
        _
    $region16: #{text_based_similarity.2} parent=5 // pred_fallthru
      _
    %p598 = scmp.le.s32.totalorder 1, %s22
    %p599 = scmp.lt.s32.totalorder %s22, 3
    %p600 = pnand %p598, %p599
    %p601 = pneg %p600
    // Predicated region
    $region81: #{text_based_similarity.2} parent=5 // pred_check
      _
    $region82: #{text_based_similarity.2} parent=5 // pred_check_branch
      %603 = sbr.rel (%p600) target = $region84
    $region83: #{text_based_similarity.2} parent=5 // pred_region
      %s604 = ssub.s32 %s22, 1
      %p605 = scmp.lt.s32.totalorder %s27, 1
      %s606 = scalar_select %p605, %s27, 1
      %s607 = smul.addr %s606, 2
      %s608 = smul.addr %s607, 8
      %s609 = scalar_lea.vmem %s0, %s608
      %p610 = pneg %p48
      %p611 = pneg %p45
      %p612 = scmp.lt.s32.totalorder %s27, 1
      %s613 = scalar_select %p612, %s27, 1
      %s614 = smul.addr %s613, 2
      %s615 = scalar_lea.vmem %s1, %s614
      %p616 = pneg %p74
      %p617 = pneg %p71
      %p618 = scmp.lt.s32.totalorder %s27, 1
      %s619 = scalar_select %p618, %s27, 1
      %s620 = scalar_lea.vmem %s2, %s619
      %p621 = pneg %p100
      %p622 = pneg %p97
      %p623 = scmp.lt.s32.totalorder %s27, 1
      %s624 = scalar_select %p623, %s27, 1
      %s625 = scalar_lea.vmem %s3, %s624
      %p626 = pneg %p126
      %p627 = pneg %p123
      %p628 = scmp.lt.s32.totalorder %s27, 1
      %s629 = scalar_select %p628, %s27, 1
      %s630 = smul.addr %s629, 8
      %s631 = smul.addr %s630, 4
      %s632 = scalar_lea.vmem %s4, %s631
      %p633 = pneg %p152
      %p634 = pneg %p149
      %p635 = scmp.lt.s32.totalorder %s27, 1
      %s636 = scalar_select %p635, %s27, 1
      %s637 = smul.addr %s636, 2
      %s638 = scalar_lea.vmem %s5, %s637
      %p639 = pneg %p178
      %p640 = pneg %p175
      %p641 = scmp.lt.s32.totalorder %s27, 1
      %s642 = scalar_select %p641, %s27, 1
      %s643 = smul.addr %s642, 8
      %s644 = smul.addr %s643, 4
      %s645 = scalar_lea.vmem %s6, %s644
      %p646 = pneg %p204
      %p647 = pneg %p201
      %p648 = scmp.lt.s32.totalorder %s27, 1
      %s649 = scalar_select %p648, %s27, 1
      %s650 = smul.addr %s649, 2
      %s651 = scalar_lea.vmem %s7, %s650
      %p652 = pneg %p230
      %p653 = pneg %p227
      %p654 = scmp.lt.s32.totalorder %s27, 1
      %s655 = scalar_select %p654, %s27, 1
      %s656 = smul.addr %s655, 2
      %s657 = scalar_lea.vmem %s8, %s656
      %p658 = pneg %p256
      %p659 = pneg %p253
      %p660 = scmp.lt.s32.totalorder %s27, 1
      %s661 = scalar_select %p660, %s27, 1
      %s662 = smul.addr %s661, 2
      %s663 = scalar_lea.vmem %s9, %s662
      %p664 = pneg %p282
      %p665 = pneg %p279
      %p666 = scmp.lt.s32.totalorder %s27, 1
      %s667 = scalar_select %p666, %s27, 1
      %s668 = smul.addr %s667, 8
      %s669 = smul.addr %s668, 4
      %s670 = scalar_lea.vmem %s10, %s669
      %p671 = pneg %p308
      %p672 = pneg %p305
      %p673 = scmp.lt.s32.totalorder %s27, 1
      %s674 = scalar_select %p673, %s27, 1
      %s675 = smul.addr %s674, 2
      %s676 = scalar_lea.vmem %s11, %s675
      %p677 = pneg %p334
      %p678 = pneg %p331
      %p679 = scmp.lt.s32.totalorder %s27, 1
      %s680 = scalar_select %p679, %s27, 1
      %s681 = smul.addr %s680, 16
      %s682 = smul.addr %s681, 4
      %s683 = scalar_lea.vmem %s12, %s682
      %p684 = pneg %p360
      %p685 = pneg %p357
      %p686 = scmp.lt.s32.totalorder %s27, 1
      %s687 = scalar_select %p686, %s27, 1
      %s688 = smul.addr %s687, 2
      %s689 = scalar_lea.vmem %s13, %s688
      %p690 = pneg %p386
      %p691 = pneg %p383
      %p692 = scmp.lt.s32.totalorder %s27, 1
      %s693 = scalar_select %p692, %s27, 1
      %s694 = smul.addr %s693, 2
      %s695 = scalar_lea.vmem %s14, %s694
      %p696 = pneg %p412
      %p697 = pneg %p409
      %p698 = scmp.lt.s32.totalorder %s27, 1
      %s699 = scalar_select %p698, %s27, 1
      %s700 = smul.addr %s699, 2
      %s701 = scalar_lea.vmem %s15, %s700
      %p702 = pneg %p438
      %p703 = pneg %p435
      %p704 = pneg %p464
      %p705 = pneg %p461
      %p706 = scmp.lt.s32.totalorder %s27, 1
      %s707 = scalar_select %p706, %s27, 1
      %s708 = smul.addr %s707, 2
      %s709 = scalar_lea.vmem %s16, %s708
      %p710 = scmp.lt.s32.totalorder %s27, 1
      %s711 = scalar_select %p710, %s27, 1
      %s712 = smul.addr %s711, 2
      %s713 = smul.addr %s712, 8
      %s714 = scalar_lea.vmem %s0, %s713
      %p715 = scmp.lt.s32.totalorder %s27, 1
      %s716 = scalar_select %p715, %s27, 1
      %s717 = smul.addr %s716, 2
      %s718 = scalar_lea.vmem %s1, %s717
      %p719 = scmp.lt.s32.totalorder %s27, 1
      %s720 = scalar_select %p719, %s27, 1
      %s721 = scalar_lea.vmem %s2, %s720
      %p722 = scmp.lt.s32.totalorder %s27, 1
      %s723 = scalar_select %p722, %s27, 1
      %s724 = scalar_lea.vmem %s3, %s723
      %p725 = scmp.lt.s32.totalorder %s27, 1
      %s726 = scalar_select %p725, %s27, 1
      %s727 = smul.addr %s726, 8
      %s728 = smul.addr %s727, 4
      %s729 = scalar_lea.vmem %s4, %s728
      %p730 = scmp.lt.s32.totalorder %s27, 1
      %s731 = scalar_select %p730, %s27, 1
      %s732 = smul.addr %s731, 2
      %s733 = scalar_lea.vmem %s5, %s732
      %p734 = scmp.lt.s32.totalorder %s27, 1
      %s735 = scalar_select %p734, %s27, 1
      %s736 = smul.addr %s735, 8
      %s737 = smul.addr %s736, 4
      %s738 = scalar_lea.vmem %s6, %s737
      %p739 = scmp.lt.s32.totalorder %s27, 1
      %s740 = scalar_select %p739, %s27, 1
      %s741 = smul.addr %s740, 2
      %s742 = scalar_lea.vmem %s7, %s741
      %p743 = scmp.lt.s32.totalorder %s27, 1
      %s744 = scalar_select %p743, %s27, 1
      %s745 = smul.addr %s744, 2
      %s746 = scalar_lea.vmem %s8, %s745
      %p747 = scmp.lt.s32.totalorder %s27, 1
      %s748 = scalar_select %p747, %s27, 1
      %s749 = smul.addr %s748, 2
      %s750 = scalar_lea.vmem %s9, %s749
      %p751 = scmp.lt.s32.totalorder %s27, 1
      %s752 = scalar_select %p751, %s27, 1
      %s753 = smul.addr %s752, 8
      %s754 = smul.addr %s753, 4
      %s755 = scalar_lea.vmem %s10, %s754
      %p756 = scmp.lt.s32.totalorder %s27, 1
      %s757 = scalar_select %p756, %s27, 1
      %s758 = smul.addr %s757, 2
      %s759 = scalar_lea.vmem %s11, %s758
      %p760 = scmp.lt.s32.totalorder %s27, 1
      %s761 = scalar_select %p760, %s27, 1
      %s762 = smul.addr %s761, 16
      %s763 = smul.addr %s762, 4
      %s764 = scalar_lea.vmem %s12, %s763
      %p765 = scmp.lt.s32.totalorder %s27, 1
      %s766 = scalar_select %p765, %s27, 1
      %s767 = smul.addr %s766, 2
      %s768 = scalar_lea.vmem %s13, %s767
      %p769 = scmp.lt.s32.totalorder %s27, 1
      %s770 = scalar_select %p769, %s27, 1
      %s771 = smul.addr %s770, 2
      %s772 = scalar_lea.vmem %s14, %s771
      %p773 = scmp.lt.s32.totalorder %s27, 1
      %s774 = scalar_select %p773, %s27, 1
      %s775 = smul.addr %s774, 2
      %s776 = scalar_lea.vmem %s15, %s775
      %p777 = scmp.lt.s32.totalorder %s27, 1
      %s778 = scalar_select %p777, %s27, 1
      %s779 = smul.addr %s778, 2
      %s780 = scalar_lea.vmem %s16, %s779
      %v782 = vld [vmem:[%s714] sm:$0xff]
      %v783 = vld [vmem:[%s714 + $0x8] sm:$0xff]
      %v784 = vld [vmem:[%s721] sm:$0x1]
      %v785 = vld [vmem:[%s724] sm:$0x1]
      %vm786 = vcmask 261120
      %v787 = vsel %vm786, %v782, 0.0
      %788 = vadd.xlane.f32.xlu0 %v787
      %v789 = vpop.xlane.xlu0 %788
      %v790 = vsel %vm786, %v783, 0.0
      %791 = vadd.xlane.f32.xlu0 %v790
      %v792 = vpop.xlane.xlu0 %791
      %v793 = vrcp.pop 32.0
      %v794 = vmul.f32 %v789, %v793
      %v795 = vmul.f32 %v792, %v793
      %v796 = vsub.f32 %v782, %v794
      %v797 = vsub.f32 %v783, %v795
      %v798 = vmul.f32 %v796, %v796
      %v799 = vmul.f32 %v797, %v797
      %v800 = vsel %vm786, %v798, 0.0
      %801 = vadd.xlane.f32.xlu0 %v800
      %v802 = vpop.xlane.xlu0 %801
      %v803 = vsel %vm786, %v799, 0.0
      %804 = vadd.xlane.f32.xlu0 %v803
      %v805 = vpop.xlane.xlu0 %804
      %v806 = vmul.f32 %v802, %v793
      %v807 = vmul.f32 %v805, %v793
      %v808 = vadd.f32 %v806, 1e-12
      %v809 = vadd.f32 %v807, 1e-12
      %v810 = vrsqrt.pop %v808
      %v811 = vrsqrt.pop %v809
      %v812 = vmul.f32 %v796, %v810
      %v813 = vmul.f32 %v797, %v811
      %v815 = vlaneseq
      %v816 = vshrl.u32 %v815, 7
      %v817 = vsub.s32 0, %v816
      %v818 = vrot.slane %v784, %v817
      %v820 = vmul.f32 %v812, %v818
      %v821 = vmul.f32 %v813, %v818
      %v823 = vlaneseq
      %v824 = vshrl.u32 %v823, 7
      %v825 = vsub.s32 0, %v824
      %v826 = vrot.slane %v785, %v825
      %v828 = vadd.f32 %v820, %v826
      %v829 = vadd.f32 %v821, %v826
      %v830 = vld [vmem:[%s718] sm:$0x3]
      %v831 = vsub.f32 1.0, %v830
      %v834 = vunpack.c.l.s4 1966171168
      %v835 = vunpack.c.0.s8 %v834
      %v836 = vlaneseq
      %v837 = vshrl.u32 %v836, 7
      %v838 = vsub.s32 %v835, %v837
      %v839 = vrot.slane %v831, %v838
      %v840 = vcombine.high %v839, %v839
      %v842 = vunpack.c.l.s4 1966171168
      %v843 = vunpack.c.0.s8 %v842
      %v844 = vlaneseq
      %v845 = vshrl.u32 %v844, 7
      %v846 = vsub.s32 %v843, %v845
      %v847 = vrot.slane %v839, %v846
      %v849 = vunpack.c.l.s4 1966171168
      %v850 = vunpack.c.0.s8 %v849
      %v851 = vlaneseq
      %v852 = vshrl.u32 %v851, 7
      %v853 = vsub.s32 %v850, %v852
      %v854 = vrot.slane %v840, %v853
      %v857 = vmul.f32 %v847, -1e+09
      %v858 = vmul.f32 %v854, -1e+09
      %v859 = vpack.c.bf16 %v829, %v828
      %v860 = vld [vmem:[%s729] sm:$0xf]
      %v861 = vld [vmem:[%s729 + $0x4] sm:$0xf]
      %v862 = vld [vmem:[%s729 + $0x8] sm:$0xf]
      %v863 = vld [vmem:[%s729 + $0xc] sm:$0xf]
      %v864 = vld [vmem:[%s733] sm:$0x1]
      %v866 = vlaneseq
      %v867 = vshrl.u32 %v866, 7
      %v868 = vsub.s32 0, %v867
      %v869 = vrot.slane %v864, %v868
      %v875 = vunpack.c.l.b16 %v860
      %v876 = vunpack.c.l.b16 %v861
      %v877 = vunpack.c.l.b16 %v862
      %v878 = vunpack.c.l.b16 %v863
      %v879 = vpack.c.b16 %v876, %v875
      %v880 = vpack.c.b16 %v878, %v877
      %v884 = vsel %vm786, %v859, 0
      %886 = vmatprep.subr.bf16.mxu0 0
      %887 = vmatpush1.bf16.msra.mxu0 0
      %888 = vmatprep.subr.bf16.mxu0 0
      %889 = vmatpush1.bf16.msra.mxu0 0
      %890 = vmatprep.subr.bf16.mxu0 0
      %891 = vmatpush1.bf16.msra.mxu0 0
      %892 = vmatprep.subr.bf16.mxu0 0
      %893 = vmatpush1.bf16.msra.mxu0 0
      %894 = vmatprep.subr.bf16.mxu0 0
      %895 = vmatpush1.bf16.msra.mxu0 0
      %896 = vmatprep.subr.bf16.mxu0 0
      %897 = vmatpush1.bf16.msra.mxu0 0
      %898 = vmatprep.subr.bf16.mxu0 0
      %899 = vmatpush1.bf16.msra.mxu0 %v880
      %900 = vmatprep.subr.bf16.mxu0 0
      %901 = vmatpush1.bf16.msra.mxu0 %v879
      %902 = vmatprep.subr.bf16.mxu0 0
      %903 = vmatpush2.bf16.msra.mxu0 0
      %904 = vmatprep.subr.bf16.mxu0 0
      %905 = vmatpush2.bf16.msra.mxu0 0
      %906 = vmatprep.subr.bf16.mxu0 0
      %907 = vmatpush2.bf16.msra.mxu0 0
      %908 = vmatprep.subr.bf16.mxu0 0
      %909 = vmatpush2.bf16.msra.mxu0 0
      %910 = vmatprep.subr.bf16.mxu0 0
      %911 = vmatpush2.bf16.msra.mxu0 0
      %912 = vmatprep.subr.bf16.mxu0 0
      %913 = vmatpush2.bf16.msra.mxu0 0
      %914 = vmatprep.subr.bf16.mxu0 0
      %915 = vmatpush2.bf16.msra.mxu0 0
      %916 = vmatprep.subr.bf16.mxu0 0
      %917 = vmatpush2.bf16.msra.mxu0 0
      %918 = vmatprep.mubr.bf16.mxu0 0
      %919 = vmatmul.mubr.bf16.gmra.mxu0 %v884
      %v920 = vpop.f32.mrf.mxu0
      %v921 = vadd.f32 %v869, %v920
      %v922 = vpop.f32.mrf.mxu0
      %v923 = vpop.f32.mrf.mxu0
      %v924 = vadd.f32 %v869, %v923
      %v925 = vpop.f32.mrf.mxu0
      %926 = vdwg.mxu0
      %v927 = vpack.c.bf16 %v921, %v921
      %v928 = vpack.c.bf16 %v924, %v924
      %930 = vrot.lane.b32.xlu0 %v927, 96
      %v931 = vpop.permute.xlu0 %930
      %vm932 = vcmask 130048
      %v934 = vsel %vm932, %v927, 0
      %v937 = vsel %vm932, %v931, 0
      %939 = vmatprep.subr.bf16.mxu0 0
      %940 = vmatpush1.bf16.xpose.msra.mxu0 0
      %941 = vmatprep.subr.bf16.mxu0 0
      %942 = vmatpush1.bf16.xpose.msra.mxu0 0
      %943 = vmatprep.subr.bf16.mxu0 0
      %944 = vmatpush1.bf16.xpose.msra.mxu0 0
      %945 = vmatprep.subr.bf16.mxu0 0
      %946 = vmatpush1.bf16.xpose.msra.mxu0 0
      %947 = vmatprep.subr.bf16.mxu0 0
      %948 = vmatpush1.bf16.xpose.msra.mxu0 0
      %949 = vmatprep.subr.bf16.mxu0 0
      %950 = vmatpush1.bf16.xpose.msra.mxu0 0
      %951 = vmatprep.subr.bf16.mxu0 0
      %952 = vmatpush1.bf16.xpose.msra.mxu0 0
      %953 = vmatprep.subr.bf16.mxu0 0
      %954 = vmatpush1.bf16.xpose.msra.mxu0 %v937
      %955 = vmatprep.subr.bf16.mxu0 0
      %956 = vmatpush2.bf16.xpose.msra.mxu0 0
      %957 = vmatprep.subr.bf16.mxu0 0
      %958 = vmatpush2.bf16.xpose.msra.mxu0 0
      %959 = vmatprep.subr.bf16.mxu0 0
      %960 = vmatpush2.bf16.xpose.msra.mxu0 0
      %961 = vmatprep.subr.bf16.mxu0 0
      %962 = vmatpush2.bf16.xpose.msra.mxu0 0
      %963 = vmatprep.subr.bf16.mxu0 0
      %964 = vmatpush2.bf16.xpose.msra.mxu0 0
      %965 = vmatprep.subr.bf16.mxu0 0
      %966 = vmatpush2.bf16.xpose.msra.mxu0 0
      %967 = vmatprep.subr.bf16.mxu0 0
      %968 = vmatpush2.bf16.xpose.msra.mxu0 0
      %969 = vmatprep.subr.bf16.mxu0 0
      %970 = vmatpush2.bf16.xpose.msra.mxu0 0
      %971 = vmatprep.mubr.bf16.mxu0 0
      %972 = vmatmul.mubr.bf16.gmra.mxu0 %v934
      %v973 = vpop.f32.mrf.mxu0
      %v974 = vadd.f32 0.0, %v973
      %v975 = vpop.f32.mrf.mxu0
      %v976 = vpop.f32.mrf.mxu0
      %v977 = vpop.f32.mrf.mxu0
      %978 = vdwg.mxu0
      %980 = vrot.lane.b32.xlu0 %v928, 96
      %v981 = vpop.permute.xlu0 %980
      %v983 = vsel %vm932, %v928, 0
      %v986 = vsel %vm932, %v981, 0
      %988 = vmatprep.subr.bf16.mxu0 0
      %989 = vmatpush1.bf16.xpose.msra.mxu0 0
      %990 = vmatprep.subr.bf16.mxu0 0
      %991 = vmatpush1.bf16.xpose.msra.mxu0 0
      %992 = vmatprep.subr.bf16.mxu0 0
      %993 = vmatpush1.bf16.xpose.msra.mxu0 0
      %994 = vmatprep.subr.bf16.mxu0 0
      %995 = vmatpush1.bf16.xpose.msra.mxu0 0
      %996 = vmatprep.subr.bf16.mxu0 0
      %997 = vmatpush1.bf16.xpose.msra.mxu0 0
      %998 = vmatprep.subr.bf16.mxu0 0
      %999 = vmatpush1.bf16.xpose.msra.mxu0 0
      %1000 = vmatprep.subr.bf16.mxu0 0
      %1001 = vmatpush1.bf16.xpose.msra.mxu0 0
      %1002 = vmatprep.subr.bf16.mxu0 0
      %1003 = vmatpush1.bf16.xpose.msra.mxu0 %v986
      %1004 = vmatprep.subr.bf16.mxu0 0
      %1005 = vmatpush2.bf16.xpose.msra.mxu0 0
      %1006 = vmatprep.subr.bf16.mxu0 0
      %1007 = vmatpush2.bf16.xpose.msra.mxu0 0
      %1008 = vmatprep.subr.bf16.mxu0 0
      %1009 = vmatpush2.bf16.xpose.msra.mxu0 0
      %1010 = vmatprep.subr.bf16.mxu0 0
      %1011 = vmatpush2.bf16.xpose.msra.mxu0 0
      %1012 = vmatprep.subr.bf16.mxu0 0
      %1013 = vmatpush2.bf16.xpose.msra.mxu0 0
      %1014 = vmatprep.subr.bf16.mxu0 0
      %1015 = vmatpush2.bf16.xpose.msra.mxu0 0
      %1016 = vmatprep.subr.bf16.mxu0 0
      %1017 = vmatpush2.bf16.xpose.msra.mxu0 0
      %1018 = vmatprep.subr.bf16.mxu0 0
      %1019 = vmatpush2.bf16.xpose.msra.mxu0 0
      %1020 = vmatprep.mubr.bf16.mxu0 0
      %1021 = vmatmul.mubr.bf16.gmra.mxu0 %v983
      %v1022 = vpop.f32.mrf.mxu0
      %v1023 = vadd.f32 0.0, %v1022
      %v1024 = vpop.f32.mrf.mxu0
      %v1025 = vpop.f32.mrf.mxu0
      %v1026 = vpop.f32.mrf.mxu0
      %1027 = vdwg.mxu0
      %v1028 = vmul.f32 %v974, 0.25
      %v1029 = vmul.f32 %v1023, 0.25
      %v1032 = vlaneseq
      %v1033 = vshrl.u32 %v1032, 7
      %v1034 = vsub.s32 0, %v1033
      %v1035 = vrot.slane %v857, %v1034
      %v1036 = vlaneseq
      %v1037 = vshrl.u32 %v1036, 7
      %v1038 = vsub.s32 0, %v1037
      %v1039 = vrot.slane %v858, %v1038
      %v1042 = vadd.f32 %v1028, %v1035
      %v1043 = vadd.f32 %v1029, %v1039
      %vm1044 = vcmask 64512
      %v1045 = vsel %vm1044, %v1042, -inf
      %1046 = vmax.xlane.f32.xlu0 %v1045
      %v1047 = vpop.xlane.xlu0 %1046
      %v1048 = vsel %vm1044, %v1043, -inf
      %1049 = vmax.xlane.f32.xlu0 %v1048
      %v1050 = vpop.xlane.xlu0 %1049
      %v1051 = vsub.f32 %v1042, %v1047
      %v1052 = vsub.f32 %v1043, %v1050
      %v1053 = vmul.f32 %v1051, 1.442695
      %v1054 = vpow.pop %v1053
      %v1055 = vmul.f32 %v1052, 1.442695
      %v1056 = vpow.pop %v1055
      %v1057 = vsel %vm1044, %v1054, 0.0
      %1058 = vadd.xlane.f32.xlu0 %v1057
      %v1059 = vpop.xlane.xlu0 %1058
      %v1060 = vsel %vm1044, %v1056, 0.0
      %1061 = vadd.xlane.f32.xlu0 %v1060
      %v1062 = vpop.xlane.xlu0 %1061
      %v1063 = vrcp.pop %v1059
      %v1064 = vrcp.pop %v1062
      %v1065 = vmul.f32 %v1054, %v1063
      %v1066 = vmul.f32 %v1056, %v1064
      %v1067 = vpack.c.bf16 %v1065, %v1065
      %v1068 = vpack.c.bf16 %v1066, %v1066
      %1069 = vrot.lane.b32.xlu0 %v927, 64
      %v1070 = vpop.permute.xlu0 %1069
      %v1072 = vsel %vm1044, %v1067, 0
      %vm1074 = vcmask 1043456
      %v1076 = vsel %vm1074, %v1070, 0
      %1078 = vmatprep.subr.bf16.mxu0 0
      %1079 = vmatpush1.bf16.msra.mxu0 0
      %1080 = vmatprep.subr.bf16.mxu0 0
      %1081 = vmatpush1.bf16.msra.mxu0 0
      %1082 = vmatprep.subr.bf16.mxu0 0
      %1083 = vmatpush1.bf16.msra.mxu0 0
      %1084 = vmatprep.subr.bf16.mxu0 0
      %1085 = vmatpush1.bf16.msra.mxu0 0
      %1086 = vmatprep.subr.bf16.mxu0 0
      %1087 = vmatpush1.bf16.msra.mxu0 0
      %1088 = vmatprep.subr.bf16.mxu0 0
      %1089 = vmatpush1.bf16.msra.mxu0 0
      %1090 = vmatprep.subr.bf16.mxu0 0
      %1091 = vmatpush1.bf16.msra.mxu0 0
      %1092 = vmatprep.subr.bf16.mxu0 0
      %1093 = vmatpush1.bf16.msra.mxu0 %v1076
      %1094 = vmatprep.subr.bf16.mxu0 0
      %1095 = vmatpush2.bf16.msra.mxu0 0
      %1096 = vmatprep.subr.bf16.mxu0 0
      %1097 = vmatpush2.bf16.msra.mxu0 0
      %1098 = vmatprep.subr.bf16.mxu0 0
      %1099 = vmatpush2.bf16.msra.mxu0 0
      %1100 = vmatprep.subr.bf16.mxu0 0
      %1101 = vmatpush2.bf16.msra.mxu0 0
      %1102 = vmatprep.subr.bf16.mxu0 0
      %1103 = vmatpush2.bf16.msra.mxu0 0
      %1104 = vmatprep.subr.bf16.mxu0 0
      %1105 = vmatpush2.bf16.msra.mxu0 0
      %1106 = vmatprep.subr.bf16.mxu0 0
      %1107 = vmatpush2.bf16.msra.mxu0 0
      %1108 = vmatprep.subr.bf16.mxu0 0
      %1109 = vmatpush2.bf16.msra.mxu0 0
      %1110 = vmatprep.mubr.bf16.mxu0 0
      %1111 = vmatmul.mubr.bf16.gmra.mxu0 %v1072
      %v1112 = vpop.f32.mrf.mxu0
      %v1113 = vadd.f32 0.0, %v1112
      %v1114 = vpop.f32.mrf.mxu0
      %v1115 = vpop.f32.mrf.mxu0
      %v1116 = vpop.f32.mrf.mxu0
      %1117 = vdwg.mxu0
      %1118 = vrot.lane.b32.xlu0 %v928, 64
      %v1119 = vpop.permute.xlu0 %1118
      %v1121 = vsel %vm1044, %v1068, 0
      %v1124 = vsel %vm1074, %v1119, 0
      %1126 = vmatprep.subr.bf16.mxu0 0
      %1127 = vmatpush1.bf16.msra.mxu0 0
      %1128 = vmatprep.subr.bf16.mxu0 0
      %1129 = vmatpush1.bf16.msra.mxu0 0
      %1130 = vmatprep.subr.bf16.mxu0 0
      %1131 = vmatpush1.bf16.msra.mxu0 0
      %1132 = vmatprep.subr.bf16.mxu0 0
      %1133 = vmatpush1.bf16.msra.mxu0 0
      %1134 = vmatprep.subr.bf16.mxu0 0
      %1135 = vmatpush1.bf16.msra.mxu0 0
      %1136 = vmatprep.subr.bf16.mxu0 0
      %1137 = vmatpush1.bf16.msra.mxu0 0
      %1138 = vmatprep.subr.bf16.mxu0 0
      %1139 = vmatpush1.bf16.msra.mxu0 0
      %1140 = vmatprep.subr.bf16.mxu0 0
      %1141 = vmatpush1.bf16.msra.mxu0 %v1124
      %1142 = vmatprep.subr.bf16.mxu0 0
      %1143 = vmatpush2.bf16.msra.mxu0 0
      %1144 = vmatprep.subr.bf16.mxu0 0
      %1145 = vmatpush2.bf16.msra.mxu0 0
      %1146 = vmatprep.subr.bf16.mxu0 0
      %1147 = vmatpush2.bf16.msra.mxu0 0
      %1148 = vmatprep.subr.bf16.mxu0 0
      %1149 = vmatpush2.bf16.msra.mxu0 0
      %1150 = vmatprep.subr.bf16.mxu0 0
      %1151 = vmatpush2.bf16.msra.mxu0 0
      %1152 = vmatprep.subr.bf16.mxu0 0
      %1153 = vmatpush2.bf16.msra.mxu0 0
      %1154 = vmatprep.subr.bf16.mxu0 0
      %1155 = vmatpush2.bf16.msra.mxu0 0
      %1156 = vmatprep.subr.bf16.mxu0 0
      %1157 = vmatpush2.bf16.msra.mxu0 0
      %1158 = vmatprep.mubr.bf16.mxu0 0
      %1159 = vmatmul.mubr.bf16.gmra.mxu0 %v1121
      %v1160 = vpop.f32.mrf.mxu0
      %v1161 = vadd.f32 0.0, %v1160
      %v1162 = vpop.f32.mrf.mxu0
      %v1163 = vpop.f32.mrf.mxu0
      %v1164 = vpop.f32.mrf.mxu0
      %1165 = vdwg.mxu0
      %1166 = vrot.lane.b32.xlu0 %v927, 112
      %v1167 = vpop.permute.xlu0 %1166
      %1168 = vrot.lane.b32.xlu0 %v927, 80
      %v1169 = vpop.permute.xlu0 %1168
      %v1171 = vsel %vm932, %v1167, 0
      %v1174 = vsel %vm932, %v1169, 0
      %1176 = vmatprep.subr.bf16.mxu0 0
      %1177 = vmatpush1.bf16.xpose.msra.mxu0 0
      %1178 = vmatprep.subr.bf16.mxu0 0
      %1179 = vmatpush1.bf16.xpose.msra.mxu0 0
      %1180 = vmatprep.subr.bf16.mxu0 0
      %1181 = vmatpush1.bf16.xpose.msra.mxu0 0
      %1182 = vmatprep.subr.bf16.mxu0 0
      %1183 = vmatpush1.bf16.xpose.msra.mxu0 0
      %1184 = vmatprep.subr.bf16.mxu0 0
      %1185 = vmatpush1.bf16.xpose.msra.mxu0 0
      %1186 = vmatprep.subr.bf16.mxu0 0
      %1187 = vmatpush1.bf16.xpose.msra.mxu0 0
      %1188 = vmatprep.subr.bf16.mxu0 0
      %1189 = vmatpush1.bf16.xpose.msra.mxu0 0
      %1190 = vmatprep.subr.bf16.mxu0 0
      %1191 = vmatpush1.bf16.xpose.msra.mxu0 %v1174
      %1192 = vmatprep.subr.bf16.mxu0 0
      %1193 = vmatpush2.bf16.xpose.msra.mxu0 0
      %1194 = vmatprep.subr.bf16.mxu0 0
      %1195 = vmatpush2.bf16.xpose.msra.mxu0 0
      %1196 = vmatprep.subr.bf16.mxu0 0
      %1197 = vmatpush2.bf16.xpose.msra.mxu0 0
      %1198 = vmatprep.subr.bf16.mxu0 0
      %1199 = vmatpush2.bf16.xpose.msra.mxu0 0
      %1200 = vmatprep.subr.bf16.mxu0 0
      %1201 = vmatpush2.bf16.xpose.msra.mxu0 0
      %1202 = vmatprep.subr.bf16.mxu0 0
      %1203 = vmatpush2.bf16.xpose.msra.mxu0 0
      %1204 = vmatprep.subr.bf16.mxu0 0
      %1205 = vmatpush2.bf16.xpose.msra.mxu0 0
      %1206 = vmatprep.subr.bf16.mxu0 0
      %1207 = vmatpush2.bf16.xpose.msra.mxu0 0
      %1208 = vmatprep.mubr.bf16.mxu0 0
      %1209 = vmatmul.mubr.bf16.gmra.mxu0 %v1171
      %v1210 = vpop.f32.mrf.mxu0
      %v1211 = vadd.f32 0.0, %v1210
      %v1212 = vpop.f32.mrf.mxu0
      %v1213 = vpop.f32.mrf.mxu0
      %v1214 = vpop.f32.mrf.mxu0
      %1215 = vdwg.mxu0
      %1216 = vrot.lane.b32.xlu0 %v928, 112
      %v1217 = vpop.permute.xlu0 %1216
      %1218 = vrot.lane.b32.xlu0 %v928, 80
      %v1219 = vpop.permute.xlu0 %1218
      %v1221 = vsel %vm932, %v1217, 0
      %v1224 = vsel %vm932, %v1219, 0
      %1226 = vmatprep.subr.bf16.mxu0 0
      %1227 = vmatpush1.bf16.xpose.msra.mxu0 0
      %1228 = vmatprep.subr.bf16.mxu0 0
      %1229 = vmatpush1.bf16.xpose.msra.mxu0 0
      %1230 = vmatprep.subr.bf16.mxu0 0
      %1231 = vmatpush1.bf16.xpose.msra.mxu0 0
      %1232 = vmatprep.subr.bf16.mxu0 0
      %1233 = vmatpush1.bf16.xpose.msra.mxu0 0
      %1234 = vmatprep.subr.bf16.mxu0 0
      %1235 = vmatpush1.bf16.xpose.msra.mxu0 0
      %1236 = vmatprep.subr.bf16.mxu0 0
      %1237 = vmatpush1.bf16.xpose.msra.mxu0 0
      %1238 = vmatprep.subr.bf16.mxu0 0
      %1239 = vmatpush1.bf16.xpose.msra.mxu0 0
      %1240 = vmatprep.subr.bf16.mxu0 0
      %1241 = vmatpush1.bf16.xpose.msra.mxu0 %v1224
      %1242 = vmatprep.subr.bf16.mxu0 0
      %1243 = vmatpush2.bf16.xpose.msra.mxu0 0
      %1244 = vmatprep.subr.bf16.mxu0 0
      %1245 = vmatpush2.bf16.xpose.msra.mxu0 0
      %1246 = vmatprep.subr.bf16.mxu0 0
      %1247 = vmatpush2.bf16.xpose.msra.mxu0 0
      %1248 = vmatprep.subr.bf16.mxu0 0
      %1249 = vmatpush2.bf16.xpose.msra.mxu0 0
      %1250 = vmatprep.subr.bf16.mxu0 0
      %1251 = vmatpush2.bf16.xpose.msra.mxu0 0
      %1252 = vmatprep.subr.bf16.mxu0 0
      %1253 = vmatpush2.bf16.xpose.msra.mxu0 0
      %1254 = vmatprep.subr.bf16.mxu0 0
      %1255 = vmatpush2.bf16.xpose.msra.mxu0 0
      %1256 = vmatprep.subr.bf16.mxu0 0
      %1257 = vmatpush2.bf16.xpose.msra.mxu0 0
      %1258 = vmatprep.mubr.bf16.mxu0 0
      %1259 = vmatmul.mubr.bf16.gmra.mxu0 %v1221
      %v1260 = vpop.f32.mrf.mxu0
      %v1261 = vadd.f32 0.0, %v1260
      %v1262 = vpop.f32.mrf.mxu0
      %v1263 = vpop.f32.mrf.mxu0
      %v1264 = vpop.f32.mrf.mxu0
      %1265 = vdwg.mxu0
      %v1266 = vmul.f32 %v1211, 0.25
      %v1267 = vmul.f32 %v1261, 0.25
      %v1268 = vadd.f32 %v1266, %v1035
      %v1269 = vadd.f32 %v1267, %v1039
      %v1270 = vsel %vm1044, %v1268, -inf
      %1271 = vmax.xlane.f32.xlu0 %v1270
      %v1272 = vpop.xlane.xlu0 %1271
      %v1273 = vsel %vm1044, %v1269, -inf
      %1274 = vmax.xlane.f32.xlu0 %v1273
      %v1275 = vpop.xlane.xlu0 %1274
      %v1276 = vsub.f32 %v1268, %v1272
      %v1277 = vsub.f32 %v1269, %v1275
      %v1278 = vmul.f32 %v1276, 1.442695
      %v1279 = vpow.pop %v1278
      %v1280 = vmul.f32 %v1277, 1.442695
      %v1281 = vpow.pop %v1280
      %v1282 = vsel %vm1044, %v1279, 0.0
      %1283 = vadd.xlane.f32.xlu0 %v1282
      %v1284 = vpop.xlane.xlu0 %1283
      %v1285 = vsel %vm1044, %v1281, 0.0
      %1286 = vadd.xlane.f32.xlu0 %v1285
      %v1287 = vpop.xlane.xlu0 %1286
      %v1288 = vrcp.pop %v1284
      %v1289 = vrcp.pop %v1287
      %v1290 = vmul.f32 %v1279, %v1288
      %v1291 = vmul.f32 %v1281, %v1289
      %v1292 = vpack.c.bf16 %v1290, %v1290
      %v1293 = vpack.c.bf16 %v1291, %v1291
      %1294 = vrot.lane.b32.xlu0 %v927, 48
      %v1295 = vpop.permute.xlu0 %1294
      %v1297 = vsel %vm1044, %v1292, 0
      %v1300 = vsel %vm1074, %v1295, 0
      %1302 = vmatprep.subr.bf16.mxu0 0
      %1303 = vmatpush1.bf16.msra.mxu0 0
      %1304 = vmatprep.subr.bf16.mxu0 0
      %1305 = vmatpush1.bf16.msra.mxu0 0
      %1306 = vmatprep.subr.bf16.mxu0 0
      %1307 = vmatpush1.bf16.msra.mxu0 0
      %1308 = vmatprep.subr.bf16.mxu0 0
      %1309 = vmatpush1.bf16.msra.mxu0 0
      %1310 = vmatprep.subr.bf16.mxu0 0
      %1311 = vmatpush1.bf16.msra.mxu0 0
      %1312 = vmatprep.subr.bf16.mxu0 0
      %1313 = vmatpush1.bf16.msra.mxu0 0
      %1314 = vmatprep.subr.bf16.mxu0 0
      %1315 = vmatpush1.bf16.msra.mxu0 0
      %1316 = vmatprep.subr.bf16.mxu0 0
      %1317 = vmatpush1.bf16.msra.mxu0 %v1300
      %1318 = vmatprep.subr.bf16.mxu0 0
      %1319 = vmatpush2.bf16.msra.mxu0 0
      %1320 = vmatprep.subr.bf16.mxu0 0
      %1321 = vmatpush2.bf16.msra.mxu0 0
      %1322 = vmatprep.subr.bf16.mxu0 0
      %1323 = vmatpush2.bf16.msra.mxu0 0
      %1324 = vmatprep.subr.bf16.mxu0 0
      %1325 = vmatpush2.bf16.msra.mxu0 0
      %1326 = vmatprep.subr.bf16.mxu0 0
      %1327 = vmatpush2.bf16.msra.mxu0 0
      %1328 = vmatprep.subr.bf16.mxu0 0
      %1329 = vmatpush2.bf16.msra.mxu0 0
      %1330 = vmatprep.subr.bf16.mxu0 0
      %1331 = vmatpush2.bf16.msra.mxu0 0
      %1332 = vmatprep.subr.bf16.mxu0 0
      %1333 = vmatpush2.bf16.msra.mxu0 0
      %1334 = vmatprep.mubr.bf16.mxu0 0
      %1335 = vmatmul.mubr.bf16.gmra.mxu0 %v1297
      %v1336 = vpop.f32.mrf.mxu0
      %v1337 = vadd.f32 0.0, %v1336
      %v1338 = vpop.f32.mrf.mxu0
      %v1339 = vpop.f32.mrf.mxu0
      %v1340 = vpop.f32.mrf.mxu0
      %1341 = vdwg.mxu0
      %1342 = vrot.lane.b32.xlu0 %v928, 48
      %v1343 = vpop.permute.xlu0 %1342
      %v1345 = vsel %vm1044, %v1293, 0
      %v1348 = vsel %vm1074, %v1343, 0
      %1350 = vmatprep.subr.bf16.mxu0 0
      %1351 = vmatpush1.bf16.msra.mxu0 0
      %1352 = vmatprep.subr.bf16.mxu0 0
      %1353 = vmatpush1.bf16.msra.mxu0 0
      %1354 = vmatprep.subr.bf16.mxu0 0
      %1355 = vmatpush1.bf16.msra.mxu0 0
      %1356 = vmatprep.subr.bf16.mxu0 0
      %1357 = vmatpush1.bf16.msra.mxu0 0
      %1358 = vmatprep.subr.bf16.mxu0 0
      %1359 = vmatpush1.bf16.msra.mxu0 0
      %1360 = vmatprep.subr.bf16.mxu0 0
      %1361 = vmatpush1.bf16.msra.mxu0 0
      %1362 = vmatprep.subr.bf16.mxu0 0
      %1363 = vmatpush1.bf16.msra.mxu0 0
      %1364 = vmatprep.subr.bf16.mxu0 0
      %1365 = vmatpush1.bf16.msra.mxu0 %v1348
      %1366 = vmatprep.subr.bf16.mxu0 0
      %1367 = vmatpush2.bf16.msra.mxu0 0
      %1368 = vmatprep.subr.bf16.mxu0 0
      %1369 = vmatpush2.bf16.msra.mxu0 0
      %1370 = vmatprep.subr.bf16.mxu0 0
      %1371 = vmatpush2.bf16.msra.mxu0 0
      %1372 = vmatprep.subr.bf16.mxu0 0
      %1373 = vmatpush2.bf16.msra.mxu0 0
      %1374 = vmatprep.subr.bf16.mxu0 0
      %1375 = vmatpush2.bf16.msra.mxu0 0
      %1376 = vmatprep.subr.bf16.mxu0 0
      %1377 = vmatpush2.bf16.msra.mxu0 0
      %1378 = vmatprep.subr.bf16.mxu0 0
      %1379 = vmatpush2.bf16.msra.mxu0 0
      %1380 = vmatprep.subr.bf16.mxu0 0
      %1381 = vmatpush2.bf16.msra.mxu0 0
      %1382 = vmatprep.mubr.bf16.mxu0 0
      %1383 = vmatmul.mubr.bf16.gmra.mxu0 %v1345
      %v1384 = vpop.f32.mrf.mxu0
      %v1385 = vadd.f32 0.0, %v1384
      %v1386 = vpop.f32.mrf.mxu0
      %v1387 = vpop.f32.mrf.mxu0
      %v1388 = vpop.f32.mrf.mxu0
      %1389 = vdwg.mxu0
      %1392 = vrot.lane.b32.xlu0 %v1337, 16
      %v1393 = vpop.permute.xlu0 %1392
      %1394 = vrot.lane.b32.xlu0 %v1385, 16
      %v1395 = vpop.permute.xlu0 %1394
      %v1398 = vsel %vm932, %v1113, %v1393
      %v1399 = vsel %vm932, %v1161, %v1395
      %v1400 = vpack.c.bf16 %v1399, %v1398
      %v1401 = vld [vmem:[%s738] sm:$0xf]
      %v1402 = vld [vmem:[%s738 + $0x4] sm:$0xf]
      %v1403 = vld [vmem:[%s738 + $0x8] sm:$0xf]
      %v1404 = vld [vmem:[%s738 + $0xc] sm:$0xf]
      %v1405 = vld [vmem:[%s742] sm:$0x1]
      %v1407 = vlaneseq
      %v1408 = vshrl.u32 %v1407, 7
      %v1409 = vsub.s32 0, %v1408
      %v1410 = vrot.slane %v1405, %v1409
      %v1416 = vunpack.c.l.b16 %v1401
      %v1417 = vunpack.c.l.b16 %v1402
      %v1418 = vunpack.c.l.b16 %v1403
      %v1419 = vunpack.c.l.b16 %v1404
      %v1420 = vpack.c.b16 %v1417, %v1416
      %v1421 = vpack.c.b16 %v1419, %v1418
      %v1425 = vsel %vm786, %v1400, 0
      %1427 = vmatprep.subr.bf16.mxu0 0
      %1428 = vmatpush1.bf16.msra.mxu0 0
      %1429 = vmatprep.subr.bf16.mxu0 0
      %1430 = vmatpush1.bf16.msra.mxu0 0
      %1431 = vmatprep.subr.bf16.mxu0 0
      %1432 = vmatpush1.bf16.msra.mxu0 0
      %1433 = vmatprep.subr.bf16.mxu0 0
      %1434 = vmatpush1.bf16.msra.mxu0 0
      %1435 = vmatprep.subr.bf16.mxu0 0
      %1436 = vmatpush1.bf16.msra.mxu0 0
      %1437 = vmatprep.subr.bf16.mxu0 0
      %1438 = vmatpush1.bf16.msra.mxu0 0
      %1439 = vmatprep.subr.bf16.mxu0 0
      %1440 = vmatpush1.bf16.msra.mxu0 %v1421
      %1441 = vmatprep.subr.bf16.mxu0 0
      %1442 = vmatpush1.bf16.msra.mxu0 %v1420
      %1443 = vmatprep.subr.bf16.mxu0 0
      %1444 = vmatpush2.bf16.msra.mxu0 0
      %1445 = vmatprep.subr.bf16.mxu0 0
      %1446 = vmatpush2.bf16.msra.mxu0 0
      %1447 = vmatprep.subr.bf16.mxu0 0
      %1448 = vmatpush2.bf16.msra.mxu0 0
      %1449 = vmatprep.subr.bf16.mxu0 0
      %1450 = vmatpush2.bf16.msra.mxu0 0
      %1451 = vmatprep.subr.bf16.mxu0 0
      %1452 = vmatpush2.bf16.msra.mxu0 0
      %1453 = vmatprep.subr.bf16.mxu0 0
      %1454 = vmatpush2.bf16.msra.mxu0 0
      %1455 = vmatprep.subr.bf16.mxu0 0
      %1456 = vmatpush2.bf16.msra.mxu0 0
      %1457 = vmatprep.subr.bf16.mxu0 0
      %1458 = vmatpush2.bf16.msra.mxu0 0
      %1459 = vmatprep.mubr.bf16.mxu0 0
      %1460 = vmatmul.mubr.bf16.gmra.mxu0 %v1425
      %v1461 = vpop.f32.mrf.mxu0
      %v1462 = vadd.f32 %v1410, %v1461
      %v1463 = vpop.f32.mrf.mxu0
      %v1464 = vpop.f32.mrf.mxu0
      %v1465 = vadd.f32 %v1410, %v1464
      %v1466 = vpop.f32.mrf.mxu0
      %1467 = vdwg.mxu0
      %v1468 = vadd.f32 %v828, %v1462
      %v1469 = vadd.f32 %v829, %v1465
      %v1470 = vld [vmem:[%s746] sm:$0x1]
      %v1471 = vld [vmem:[%s750] sm:$0x1]
      %v1472 = vsel %vm786, %v1468, 0.0
      %1473 = vadd.xlane.f32.xlu0 %v1472
      %v1474 = vpop.xlane.xlu0 %1473
      %v1475 = vsel %vm786, %v1469, 0.0
      %1476 = vadd.xlane.f32.xlu0 %v1475
      %v1477 = vpop.xlane.xlu0 %1476
      %v1478 = vmul.f32 %v1474, %v793
      %v1479 = vmul.f32 %v1477, %v793
      %v1480 = vsub.f32 %v1468, %v1478
      %v1481 = vsub.f32 %v1469, %v1479
      %v1482 = vmul.f32 %v1480, %v1480
      %v1483 = vmul.f32 %v1481, %v1481
      %v1484 = vsel %vm786, %v1482, 0.0
      %1485 = vadd.xlane.f32.xlu0 %v1484
      %v1486 = vpop.xlane.xlu0 %1485
      %v1487 = vsel %vm786, %v1483, 0.0
      %1488 = vadd.xlane.f32.xlu0 %v1487
      %v1489 = vpop.xlane.xlu0 %1488
      %v1490 = vmul.f32 %v1486, %v793
      %v1491 = vmul.f32 %v1489, %v793
      %v1492 = vadd.f32 %v1490, 1e-12
      %v1493 = vadd.f32 %v1491, 1e-12
      %v1494 = vrsqrt.pop %v1492
      %v1495 = vrsqrt.pop %v1493
      %v1496 = vmul.f32 %v1480, %v1494
      %v1497 = vmul.f32 %v1481, %v1495
      %v1499 = vlaneseq
      %v1500 = vshrl.u32 %v1499, 7
      %v1501 = vsub.s32 0, %v1500
      %v1502 = vrot.slane %v1470, %v1501
      %v1504 = vmul.f32 %v1496, %v1502
      %v1505 = vmul.f32 %v1497, %v1502
      %v1507 = vlaneseq
      %v1508 = vshrl.u32 %v1507, 7
      %v1509 = vsub.s32 0, %v1508
      %v1510 = vrot.slane %v1471, %v1509
      %v1512 = vadd.f32 %v1504, %v1510
      %v1513 = vadd.f32 %v1505, %v1510
      %v1514 = vpack.c.bf16 %v1513, %v1512
      %v1515 = vld [vmem:[%s755] sm:$0xf]
      %v1516 = vld [vmem:[%s755 + $0x4] sm:$0xf]
      %v1517 = vld [vmem:[%s755 + $0x8] sm:$0xf]
      %v1518 = vld [vmem:[%s755 + $0xc] sm:$0xf]
      %v1519 = vld [vmem:[%s759] sm:$0x1]
      %v1521 = vlaneseq
      %v1522 = vshrl.u32 %v1521, 7
      %v1523 = vsub.s32 0, %v1522
      %v1524 = vrot.slane %v1519, %v1523
      %v1530 = vunpack.c.l.b16 %v1515
      %v1531 = vunpack.c.l.b16 %v1516
      %v1532 = vunpack.c.l.b16 %v1517
      %v1533 = vunpack.c.l.b16 %v1518
      %v1534 = vpack.c.b16 %v1531, %v1530
      %v1535 = vpack.c.b16 %v1533, %v1532
      %v1539 = vsel %vm786, %v1514, 0
      %1541 = vmatprep.subr.bf16.mxu0 0
      %1542 = vmatpush1.bf16.msra.mxu0 0
      %1543 = vmatprep.subr.bf16.mxu0 0
      %1544 = vmatpush1.bf16.msra.mxu0 0
      %1545 = vmatprep.subr.bf16.mxu0 0
      %1546 = vmatpush1.bf16.msra.mxu0 0
      %1547 = vmatprep.subr.bf16.mxu0 0
      %1548 = vmatpush1.bf16.msra.mxu0 0
      %1549 = vmatprep.subr.bf16.mxu0 0
      %1550 = vmatpush1.bf16.msra.mxu0 0
      %1551 = vmatprep.subr.bf16.mxu0 0
      %1552 = vmatpush1.bf16.msra.mxu0 0
      %1553 = vmatprep.subr.bf16.mxu0 0
      %1554 = vmatpush1.bf16.msra.mxu0 %v1535
      %1555 = vmatprep.subr.bf16.mxu0 0
      %1556 = vmatpush1.bf16.msra.mxu0 %v1534
      %1557 = vmatprep.subr.bf16.mxu0 0
      %1558 = vmatpush2.bf16.msra.mxu0 0
      %1559 = vmatprep.subr.bf16.mxu0 0
      %1560 = vmatpush2.bf16.msra.mxu0 0
      %1561 = vmatprep.subr.bf16.mxu0 0
      %1562 = vmatpush2.bf16.msra.mxu0 0
      %1563 = vmatprep.subr.bf16.mxu0 0
      %1564 = vmatpush2.bf16.msra.mxu0 0
      %1565 = vmatprep.subr.bf16.mxu0 0
      %1566 = vmatpush2.bf16.msra.mxu0 0
      %1567 = vmatprep.subr.bf16.mxu0 0
      %1568 = vmatpush2.bf16.msra.mxu0 0
      %1569 = vmatprep.subr.bf16.mxu0 0
      %1570 = vmatpush2.bf16.msra.mxu0 0
      %1571 = vmatprep.subr.bf16.mxu0 0
      %1572 = vmatpush2.bf16.msra.mxu0 0
      %1573 = vmatprep.mubr.bf16.mxu0 0
      %1574 = vmatmul.mubr.bf16.gmra.mxu0 %v1539
      %v1575 = vpop.f32.mrf.mxu0
      %v1576 = vadd.f32 %v1524, %v1575
      %v1577 = vpop.f32.mrf.mxu0
      %v1578 = vpop.f32.mrf.mxu0
      %v1579 = vadd.f32 %v1524, %v1578
      %v1580 = vpop.f32.mrf.mxu0
      %1581 = vdwg.mxu0
      %v1582 = vmul.f32 %v1576, %v1576
      %v1583 = vmul.f32 %v1579, %v1579
      %v1584 = vmul.f32 %v1576, %v1582
      %v1585 = vmul.f32 %v1579, %v1583
      %v1586 = vmul.f32 %v1584, 0.044715
      %v1587 = vmul.f32 %v1585, 0.044715
      %v1588 = vadd.f32 %v1576, %v1586
      %v1589 = vadd.f32 %v1579, %v1587
      %v1590 = vmul.f32 %v1588, 0.7978846
      %v1591 = vmul.f32 %v1589, 0.7978846
      %v1592 = vtanh.pop %v1590
      %v1593 = vtanh.pop %v1591
      %v1594 = vadd.f32 %v1592, 1.0
      %v1595 = vadd.f32 %v1593, 1.0
      %v1596 = vmul.f32 %v1594, 0.5
      %v1597 = vmul.f32 %v1595, 0.5
      %v1598 = vmul.f32 %v1576, %v1596
      %v1599 = vmul.f32 %v1579, %v1597
      %v1600 = vpack.c.bf16 %v1599, %v1598
      %v1601 = vld [vmem:[%s764] sm:$0xf]
      %v1602 = vld [vmem:[%s764 + $0x4] sm:$0xf]
      %v1603 = vld [vmem:[%s764 + $0x8] sm:$0xf]
      %v1604 = vld [vmem:[%s764 + $0xc] sm:$0xf]
      %v1605 = vld [vmem:[%s764 + $0x10] sm:$0xf]
      %v1606 = vld [vmem:[%s764 + $0x14] sm:$0xf]
      %v1607 = vld [vmem:[%s764 + $0x18] sm:$0xf]
      %v1608 = vld [vmem:[%s764 + $0x1c] sm:$0xf]
      %v1609 = vld [vmem:[%s768] sm:$0x1]
      %v1611 = vlaneseq
      %v1612 = vshrl.u32 %v1611, 7
      %v1613 = vsub.s32 0, %v1612
      %v1614 = vrot.slane %v1609, %v1613
      %v1624 = vunpack.c.l.b16 %v1601
      %v1625 = vunpack.c.l.b16 %v1602
      %v1626 = vunpack.c.l.b16 %v1603
      %v1627 = vunpack.c.l.b16 %v1604
      %v1628 = vunpack.c.l.b16 %v1605
      %v1629 = vunpack.c.l.b16 %v1606
      %v1630 = vunpack.c.l.b16 %v1607
      %v1631 = vunpack.c.l.b16 %v1608
      %v1632 = vpack.c.b16 %v1625, %v1624
      %v1633 = vpack.c.b16 %v1627, %v1626
      %v1634 = vpack.c.b16 %v1629, %v1628
      %v1635 = vpack.c.b16 %v1631, %v1630
      %vm1640 = vcmask 523264
      %v1642 = vsel %vm1640, %v1600, 0
      %1644 = vmatprep.subr.bf16.mxu0 0
      %1645 = vmatpush1.bf16.msra.mxu0 0
      %1646 = vmatprep.subr.bf16.mxu0 0
      %1647 = vmatpush1.bf16.msra.mxu0 0
      %1648 = vmatprep.subr.bf16.mxu0 0
      %1649 = vmatpush1.bf16.msra.mxu0 0
      %1650 = vmatprep.subr.bf16.mxu0 0
      %1651 = vmatpush1.bf16.msra.mxu0 0
      %1652 = vmatprep.subr.bf16.mxu0 0
      %1653 = vmatpush1.bf16.msra.mxu0 %v1635
      %1654 = vmatprep.subr.bf16.mxu0 0
      %1655 = vmatpush1.bf16.msra.mxu0 %v1634
      %1656 = vmatprep.subr.bf16.mxu0 0
      %1657 = vmatpush1.bf16.msra.mxu0 %v1633
      %1658 = vmatprep.subr.bf16.mxu0 0
      %1659 = vmatpush1.bf16.msra.mxu0 %v1632
      %1660 = vmatprep.subr.bf16.mxu0 0
      %1661 = vmatpush2.bf16.msra.mxu0 0
      %1662 = vmatprep.subr.bf16.mxu0 0
      %1663 = vmatpush2.bf16.msra.mxu0 0
      %1664 = vmatprep.subr.bf16.mxu0 0
      %1665 = vmatpush2.bf16.msra.mxu0 0
      %1666 = vmatprep.subr.bf16.mxu0 0
      %1667 = vmatpush2.bf16.msra.mxu0 0
      %1668 = vmatprep.subr.bf16.mxu0 0
      %1669 = vmatpush2.bf16.msra.mxu0 0
      %1670 = vmatprep.subr.bf16.mxu0 0
      %1671 = vmatpush2.bf16.msra.mxu0 0
      %1672 = vmatprep.subr.bf16.mxu0 0
      %1673 = vmatpush2.bf16.msra.mxu0 0
      %1674 = vmatprep.subr.bf16.mxu0 0
      %1675 = vmatpush2.bf16.msra.mxu0 0
      %1676 = vmatprep.mubr.bf16.mxu0 0
      %1677 = vmatmul.mubr.bf16.gmra.mxu0 %v1642
      %v1678 = vpop.f32.mrf.mxu0
      %v1679 = vadd.f32 %v1614, %v1678
      %v1680 = vpop.f32.mrf.mxu0
      %v1681 = vpop.f32.mrf.mxu0
      %v1682 = vadd.f32 %v1614, %v1681
      %v1683 = vpop.f32.mrf.mxu0
      %1684 = vdwg.mxu0
      %v1685 = vadd.f32 %v1512, %v1679
      %v1686 = vadd.f32 %v1513, %v1682
      %v1687 = vld [vmem:[%s772] sm:$0x1]
      %v1688 = vld [vmem:[%s776] sm:$0x1]
      %v1689 = vsel %vm786, %v1685, 0.0
      %1690 = vadd.xlane.f32.xlu0 %v1689
      %v1691 = vpop.xlane.xlu0 %1690
      %v1692 = vsel %vm786, %v1686, 0.0
      %1693 = vadd.xlane.f32.xlu0 %v1692
      %v1694 = vpop.xlane.xlu0 %1693
      %v1695 = vmul.f32 %v1691, %v793
      %v1696 = vmul.f32 %v1694, %v793
      %v1697 = vsub.f32 %v1685, %v1695
      %v1698 = vsub.f32 %v1686, %v1696
      %v1699 = vmul.f32 %v1697, %v1697
      %v1700 = vmul.f32 %v1698, %v1698
      %v1701 = vsel %vm786, %v1699, 0.0
      %1702 = vadd.xlane.f32.xlu0 %v1701
      %v1703 = vpop.xlane.xlu0 %1702
      %v1704 = vsel %vm786, %v1700, 0.0
      %1705 = vadd.xlane.f32.xlu0 %v1704
      %v1706 = vpop.xlane.xlu0 %1705
      %v1707 = vmul.f32 %v1703, %v793
      %v1708 = vmul.f32 %v1706, %v793
      %v1709 = vadd.f32 %v1707, 1e-12
      %v1710 = vadd.f32 %v1708, 1e-12
      %v1711 = vrsqrt.pop %v1709
      %v1712 = vrsqrt.pop %v1710
      %v1713 = vmul.f32 %v1697, %v1711
      %v1714 = vmul.f32 %v1698, %v1712
      %v1716 = vlaneseq
      %v1717 = vshrl.u32 %v1716, 7
      %v1718 = vsub.s32 0, %v1717
      %v1719 = vrot.slane %v1687, %v1718
      %v1721 = vmul.f32 %v1713, %v1719
      %v1722 = vmul.f32 %v1714, %v1719
      %v1724 = vlaneseq
      %v1725 = vshrl.u32 %v1724, 7
      %v1726 = vsub.s32 0, %v1725
      %v1727 = vrot.slane %v1688, %v1726
      %v1729 = vadd.f32 %v1721, %v1727
      %v1730 = vadd.f32 %v1722, %v1727
      %v1731 = vpack.c.bf16 %v1730, %v1729
      %s1732 = scalar_lea.vmem %s729, 16
      %v1733 = vld [vmem:[%s1732] sm:$0xf]
      %v1734 = vld [vmem:[%s1732 + $0x4] sm:$0xf]
      %v1735 = vld [vmem:[%s1732 + $0x8] sm:$0xf]
      %v1736 = vld [vmem:[%s1732 + $0xc] sm:$0xf]
      %s1737 = scalar_lea.vmem %s733, 1
      %v1738 = vld [vmem:[%s1737] sm:$0x1]
      %v1740 = vlaneseq
      %v1741 = vshrl.u32 %v1740, 7
      %v1742 = vsub.s32 0, %v1741
      %v1743 = vrot.slane %v1738, %v1742
      %v1749 = vunpack.c.l.b16 %v1733
      %v1750 = vunpack.c.l.b16 %v1734
      %v1751 = vunpack.c.l.b16 %v1735
      %v1752 = vunpack.c.l.b16 %v1736
      %v1753 = vpack.c.b16 %v1750, %v1749
      %v1754 = vpack.c.b16 %v1752, %v1751
      %v1758 = vsel %vm786, %v1731, 0
      %1760 = vmatprep.subr.bf16.mxu0 0
      %1761 = vmatpush1.bf16.msra.mxu0 0
      %1762 = vmatprep.subr.bf16.mxu0 0
      %1763 = vmatpush1.bf16.msra.mxu0 0
      %1764 = vmatprep.subr.bf16.mxu0 0
      %1765 = vmatpush1.bf16.msra.mxu0 0
      %1766 = vmatprep.subr.bf16.mxu0 0
      %1767 = vmatpush1.bf16.msra.mxu0 0
      %1768 = vmatprep.subr.bf16.mxu0 0
      %1769 = vmatpush1.bf16.msra.mxu0 0
      %1770 = vmatprep.subr.bf16.mxu0 0
      %1771 = vmatpush1.bf16.msra.mxu0 0
      %1772 = vmatprep.subr.bf16.mxu0 0
      %1773 = vmatpush1.bf16.msra.mxu0 %v1754
      %1774 = vmatprep.subr.bf16.mxu0 0
      %1775 = vmatpush1.bf16.msra.mxu0 %v1753
      %1776 = vmatprep.subr.bf16.mxu0 0
      %1777 = vmatpush2.bf16.msra.mxu0 0
      %1778 = vmatprep.subr.bf16.mxu0 0
      %1779 = vmatpush2.bf16.msra.mxu0 0
      %1780 = vmatprep.subr.bf16.mxu0 0
      %1781 = vmatpush2.bf16.msra.mxu0 0
      %1782 = vmatprep.subr.bf16.mxu0 0
      %1783 = vmatpush2.bf16.msra.mxu0 0
      %1784 = vmatprep.subr.bf16.mxu0 0
      %1785 = vmatpush2.bf16.msra.mxu0 0
      %1786 = vmatprep.subr.bf16.mxu0 0
      %1787 = vmatpush2.bf16.msra.mxu0 0
      %1788 = vmatprep.subr.bf16.mxu0 0
      %1789 = vmatpush2.bf16.msra.mxu0 0
      %1790 = vmatprep.subr.bf16.mxu0 0
      %1791 = vmatpush2.bf16.msra.mxu0 0
      %1792 = vmatprep.mubr.bf16.mxu0 0
      %1793 = vmatmul.mubr.bf16.gmra.mxu0 %v1758
      %v1794 = vpop.f32.mrf.mxu0
      %v1795 = vadd.f32 %v1743, %v1794
      %v1796 = vpop.f32.mrf.mxu0
      %v1797 = vpop.f32.mrf.mxu0
      %v1798 = vadd.f32 %v1743, %v1797
      %v1799 = vpop.f32.mrf.mxu0
      %1800 = vdwg.mxu0
      %v1801 = vpack.c.bf16 %v1795, %v1795
      %v1802 = vpack.c.bf16 %v1798, %v1798
      %1804 = vrot.lane.b32.xlu0 %v1801, 96
      %v1805 = vpop.permute.xlu0 %1804
      %v1807 = vsel %vm932, %v1801, 0
      %v1810 = vsel %vm932, %v1805, 0
      %1812 = vmatprep.subr.bf16.mxu0 0
      %1813 = vmatpush1.bf16.xpose.msra.mxu0 0
      %1814 = vmatprep.subr.bf16.mxu0 0
      %1815 = vmatpush1.bf16.xpose.msra.mxu0 0
      %1816 = vmatprep.subr.bf16.mxu0 0
      %1817 = vmatpush1.bf16.xpose.msra.mxu0 0
      %1818 = vmatprep.subr.bf16.mxu0 0
      %1819 = vmatpush1.bf16.xpose.msra.mxu0 0
      %1820 = vmatprep.subr.bf16.mxu0 0
      %1821 = vmatpush1.bf16.xpose.msra.mxu0 0
      %1822 = vmatprep.subr.bf16.mxu0 0
      %1823 = vmatpush1.bf16.xpose.msra.mxu0 0
      %1824 = vmatprep.subr.bf16.mxu0 0
      %1825 = vmatpush1.bf16.xpose.msra.mxu0 0
      %1826 = vmatprep.subr.bf16.mxu0 0
      %1827 = vmatpush1.bf16.xpose.msra.mxu0 %v1810
      %1828 = vmatprep.subr.bf16.mxu0 0
      %1829 = vmatpush2.bf16.xpose.msra.mxu0 0
      %1830 = vmatprep.subr.bf16.mxu0 0
      %1831 = vmatpush2.bf16.xpose.msra.mxu0 0
      %1832 = vmatprep.subr.bf16.mxu0 0
      %1833 = vmatpush2.bf16.xpose.msra.mxu0 0
      %1834 = vmatprep.subr.bf16.mxu0 0
      %1835 = vmatpush2.bf16.xpose.msra.mxu0 0
      %1836 = vmatprep.subr.bf16.mxu0 0
      %1837 = vmatpush2.bf16.xpose.msra.mxu0 0
      %1838 = vmatprep.subr.bf16.mxu0 0
      %1839 = vmatpush2.bf16.xpose.msra.mxu0 0
      %1840 = vmatprep.subr.bf16.mxu0 0
      %1841 = vmatpush2.bf16.xpose.msra.mxu0 0
      %1842 = vmatprep.subr.bf16.mxu0 0
      %1843 = vmatpush2.bf16.xpose.msra.mxu0 0
      %1844 = vmatprep.mubr.bf16.mxu0 0
      %1845 = vmatmul.mubr.bf16.gmra.mxu0 %v1807
      %v1846 = vpop.f32.mrf.mxu0
      %v1847 = vadd.f32 0.0, %v1846
      %v1848 = vpop.f32.mrf.mxu0
      %v1849 = vpop.f32.mrf.mxu0
      %v1850 = vpop.f32.mrf.mxu0
      %1851 = vdwg.mxu0
      %1853 = vrot.lane.b32.xlu0 %v1802, 96
      %v1854 = vpop.permute.xlu0 %1853
      %v1856 = vsel %vm932, %v1802, 0
      %v1859 = vsel %vm932, %v1854, 0
      %1861 = vmatprep.subr.bf16.mxu0 0
      %1862 = vmatpush1.bf16.xpose.msra.mxu0 0
      %1863 = vmatprep.subr.bf16.mxu0 0
      %1864 = vmatpush1.bf16.xpose.msra.mxu0 0
      %1865 = vmatprep.subr.bf16.mxu0 0
      %1866 = vmatpush1.bf16.xpose.msra.mxu0 0
      %1867 = vmatprep.subr.bf16.mxu0 0
      %1868 = vmatpush1.bf16.xpose.msra.mxu0 0
      %1869 = vmatprep.subr.bf16.mxu0 0
      %1870 = vmatpush1.bf16.xpose.msra.mxu0 0
      %1871 = vmatprep.subr.bf16.mxu0 0
      %1872 = vmatpush1.bf16.xpose.msra.mxu0 0
      %1873 = vmatprep.subr.bf16.mxu0 0
      %1874 = vmatpush1.bf16.xpose.msra.mxu0 0
      %1875 = vmatprep.subr.bf16.mxu0 0
      %1876 = vmatpush1.bf16.xpose.msra.mxu0 %v1859
      %1877 = vmatprep.subr.bf16.mxu0 0
      %1878 = vmatpush2.bf16.xpose.msra.mxu0 0
      %1879 = vmatprep.subr.bf16.mxu0 0
      %1880 = vmatpush2.bf16.xpose.msra.mxu0 0
      %1881 = vmatprep.subr.bf16.mxu0 0
      %1882 = vmatpush2.bf16.xpose.msra.mxu0 0
      %1883 = vmatprep.subr.bf16.mxu0 0
      %1884 = vmatpush2.bf16.xpose.msra.mxu0 0
      %1885 = vmatprep.subr.bf16.mxu0 0
      %1886 = vmatpush2.bf16.xpose.msra.mxu0 0
      %1887 = vmatprep.subr.bf16.mxu0 0
      %1888 = vmatpush2.bf16.xpose.msra.mxu0 0
      %1889 = vmatprep.subr.bf16.mxu0 0
      %1890 = vmatpush2.bf16.xpose.msra.mxu0 0
      %1891 = vmatprep.subr.bf16.mxu0 0
      %1892 = vmatpush2.bf16.xpose.msra.mxu0 0
      %1893 = vmatprep.mubr.bf16.mxu0 0
      %1894 = vmatmul.mubr.bf16.gmra.mxu0 %v1856
      %v1895 = vpop.f32.mrf.mxu0
      %v1896 = vadd.f32 0.0, %v1895
      %v1897 = vpop.f32.mrf.mxu0
      %v1898 = vpop.f32.mrf.mxu0
      %v1899 = vpop.f32.mrf.mxu0
      %1900 = vdwg.mxu0
      %v1901 = vmul.f32 %v1847, 0.25
      %v1902 = vmul.f32 %v1896, 0.25
      %v1903 = vadd.f32 %v1901, %v1035
      %v1904 = vadd.f32 %v1902, %v1039
      %v1905 = vsel %vm1044, %v1903, -inf
      %1906 = vmax.xlane.f32.xlu0 %v1905
      %v1907 = vpop.xlane.xlu0 %1906
      %v1908 = vsel %vm1044, %v1904, -inf
      %1909 = vmax.xlane.f32.xlu0 %v1908
      %v1910 = vpop.xlane.xlu0 %1909
      %v1911 = vsub.f32 %v1903, %v1907
      %v1912 = vsub.f32 %v1904, %v1910
      %v1913 = vmul.f32 %v1911, 1.442695
      %v1914 = vpow.pop %v1913
      %v1915 = vmul.f32 %v1912, 1.442695
      %v1916 = vpow.pop %v1915
      %v1917 = vsel %vm1044, %v1914, 0.0
      %1918 = vadd.xlane.f32.xlu0 %v1917
      %v1919 = vpop.xlane.xlu0 %1918
      %v1920 = vsel %vm1044, %v1916, 0.0
      %1921 = vadd.xlane.f32.xlu0 %v1920
      %v1922 = vpop.xlane.xlu0 %1921
      %v1923 = vrcp.pop %v1919
      %v1924 = vrcp.pop %v1922
      %v1925 = vmul.f32 %v1914, %v1923
      %v1926 = vmul.f32 %v1916, %v1924
      %v1927 = vpack.c.bf16 %v1925, %v1925
      %v1928 = vpack.c.bf16 %v1926, %v1926
      %1929 = vrot.lane.b32.xlu0 %v1801, 64
      %v1930 = vpop.permute.xlu0 %1929
      %v1932 = vsel %vm1044, %v1927, 0
      %v1935 = vsel %vm1074, %v1930, 0
      %1937 = vmatprep.subr.bf16.mxu0 0
      %1938 = vmatpush1.bf16.msra.mxu0 0
      %1939 = vmatprep.subr.bf16.mxu0 0
      %1940 = vmatpush1.bf16.msra.mxu0 0
      %1941 = vmatprep.subr.bf16.mxu0 0
      %1942 = vmatpush1.bf16.msra.mxu0 0
      %1943 = vmatprep.subr.bf16.mxu0 0
      %1944 = vmatpush1.bf16.msra.mxu0 0
      %1945 = vmatprep.subr.bf16.mxu0 0
      %1946 = vmatpush1.bf16.msra.mxu0 0
      %1947 = vmatprep.subr.bf16.mxu0 0
      %1948 = vmatpush1.bf16.msra.mxu0 0
      %1949 = vmatprep.subr.bf16.mxu0 0
      %1950 = vmatpush1.bf16.msra.mxu0 0
      %1951 = vmatprep.subr.bf16.mxu0 0
      %1952 = vmatpush1.bf16.msra.mxu0 %v1935
      %1953 = vmatprep.subr.bf16.mxu0 0
      %1954 = vmatpush2.bf16.msra.mxu0 0
      %1955 = vmatprep.subr.bf16.mxu0 0
      %1956 = vmatpush2.bf16.msra.mxu0 0
      %1957 = vmatprep.subr.bf16.mxu0 0
      %1958 = vmatpush2.bf16.msra.mxu0 0
      %1959 = vmatprep.subr.bf16.mxu0 0
      %1960 = vmatpush2.bf16.msra.mxu0 0
      %1961 = vmatprep.subr.bf16.mxu0 0
      %1962 = vmatpush2.bf16.msra.mxu0 0
      %1963 = vmatprep.subr.bf16.mxu0 0
      %1964 = vmatpush2.bf16.msra.mxu0 0
      %1965 = vmatprep.subr.bf16.mxu0 0
      %1966 = vmatpush2.bf16.msra.mxu0 0
      %1967 = vmatprep.subr.bf16.mxu0 0
      %1968 = vmatpush2.bf16.msra.mxu0 0
      %1969 = vmatprep.mubr.bf16.mxu0 0
      %1970 = vmatmul.mubr.bf16.gmra.mxu0 %v1932
      %v1971 = vpop.f32.mrf.mxu0
      %v1972 = vadd.f32 0.0, %v1971
      %v1973 = vpop.f32.mrf.mxu0
      %v1974 = vpop.f32.mrf.mxu0
      %v1975 = vpop.f32.mrf.mxu0
      %1976 = vdwg.mxu0
      %1977 = vrot.lane.b32.xlu0 %v1802, 64
      %v1978 = vpop.permute.xlu0 %1977
      %v1980 = vsel %vm1044, %v1928, 0
      %v1983 = vsel %vm1074, %v1978, 0
      %1985 = vmatprep.subr.bf16.mxu0 0
      %1986 = vmatpush1.bf16.msra.mxu0 0
      %1987 = vmatprep.subr.bf16.mxu0 0
      %1988 = vmatpush1.bf16.msra.mxu0 0
      %1989 = vmatprep.subr.bf16.mxu0 0
      %1990 = vmatpush1.bf16.msra.mxu0 0
      %1991 = vmatprep.subr.bf16.mxu0 0
      %1992 = vmatpush1.bf16.msra.mxu0 0
      %1993 = vmatprep.subr.bf16.mxu0 0
      %1994 = vmatpush1.bf16.msra.mxu0 0
      %1995 = vmatprep.subr.bf16.mxu0 0
      %1996 = vmatpush1.bf16.msra.mxu0 0
      %1997 = vmatprep.subr.bf16.mxu0 0
      %1998 = vmatpush1.bf16.msra.mxu0 0
      %1999 = vmatprep.subr.bf16.mxu0 0
      %2000 = vmatpush1.bf16.msra.mxu0 %v1983
      %2001 = vmatprep.subr.bf16.mxu0 0
      %2002 = vmatpush2.bf16.msra.mxu0 0
      %2003 = vmatprep.subr.bf16.mxu0 0
      %2004 = vmatpush2.bf16.msra.mxu0 0
      %2005 = vmatprep.subr.bf16.mxu0 0
      %2006 = vmatpush2.bf16.msra.mxu0 0
      %2007 = vmatprep.subr.bf16.mxu0 0
      %2008 = vmatpush2.bf16.msra.mxu0 0
      %2009 = vmatprep.subr.bf16.mxu0 0
      %2010 = vmatpush2.bf16.msra.mxu0 0
      %2011 = vmatprep.subr.bf16.mxu0 0
      %2012 = vmatpush2.bf16.msra.mxu0 0
      %2013 = vmatprep.subr.bf16.mxu0 0
      %2014 = vmatpush2.bf16.msra.mxu0 0
      %2015 = vmatprep.subr.bf16.mxu0 0
      %2016 = vmatpush2.bf16.msra.mxu0 0
      %2017 = vmatprep.mubr.bf16.mxu0 0
      %2018 = vmatmul.mubr.bf16.gmra.mxu0 %v1980
      %v2019 = vpop.f32.mrf.mxu0
      %v2020 = vadd.f32 0.0, %v2019
      %v2021 = vpop.f32.mrf.mxu0
      %v2022 = vpop.f32.mrf.mxu0
      %v2023 = vpop.f32.mrf.mxu0
      %2024 = vdwg.mxu0
      %2025 = vrot.lane.b32.xlu0 %v1801, 112
      %v2026 = vpop.permute.xlu0 %2025
      %2027 = vrot.lane.b32.xlu0 %v1801, 80
      %v2028 = vpop.permute.xlu0 %2027
      %v2030 = vsel %vm932, %v2026, 0
      %v2033 = vsel %vm932, %v2028, 0
      %2035 = vmatprep.subr.bf16.mxu0 0
      %2036 = vmatpush1.bf16.xpose.msra.mxu0 0
      %2037 = vmatprep.subr.bf16.mxu0 0
      %2038 = vmatpush1.bf16.xpose.msra.mxu0 0
      %2039 = vmatprep.subr.bf16.mxu0 0
      %2040 = vmatpush1.bf16.xpose.msra.mxu0 0
      %2041 = vmatprep.subr.bf16.mxu0 0
      %2042 = vmatpush1.bf16.xpose.msra.mxu0 0
      %2043 = vmatprep.subr.bf16.mxu0 0
      %2044 = vmatpush1.bf16.xpose.msra.mxu0 0
      %2045 = vmatprep.subr.bf16.mxu0 0
      %2046 = vmatpush1.bf16.xpose.msra.mxu0 0
      %2047 = vmatprep.subr.bf16.mxu0 0
      %2048 = vmatpush1.bf16.xpose.msra.mxu0 0
      %2049 = vmatprep.subr.bf16.mxu0 0
      %2050 = vmatpush1.bf16.xpose.msra.mxu0 %v2033
      %2051 = vmatprep.subr.bf16.mxu0 0
      %2052 = vmatpush2.bf16.xpose.msra.mxu0 0
      %2053 = vmatprep.subr.bf16.mxu0 0
      %2054 = vmatpush2.bf16.xpose.msra.mxu0 0
      %2055 = vmatprep.subr.bf16.mxu0 0
      %2056 = vmatpush2.bf16.xpose.msra.mxu0 0
      %2057 = vmatprep.subr.bf16.mxu0 0
      %2058 = vmatpush2.bf16.xpose.msra.mxu0 0
      %2059 = vmatprep.subr.bf16.mxu0 0
      %2060 = vmatpush2.bf16.xpose.msra.mxu0 0
      %2061 = vmatprep.subr.bf16.mxu0 0
      %2062 = vmatpush2.bf16.xpose.msra.mxu0 0
      %2063 = vmatprep.subr.bf16.mxu0 0
      %2064 = vmatpush2.bf16.xpose.msra.mxu0 0
      %2065 = vmatprep.subr.bf16.mxu0 0
      %2066 = vmatpush2.bf16.xpose.msra.mxu0 0
      %2067 = vmatprep.mubr.bf16.mxu0 0
      %2068 = vmatmul.mubr.bf16.gmra.mxu0 %v2030
      %v2069 = vpop.f32.mrf.mxu0
      %v2070 = vadd.f32 0.0, %v2069
      %v2071 = vpop.f32.mrf.mxu0
      %v2072 = vpop.f32.mrf.mxu0
      %v2073 = vpop.f32.mrf.mxu0
      %2074 = vdwg.mxu0
      %2075 = vrot.lane.b32.xlu0 %v1802, 112
      %v2076 = vpop.permute.xlu0 %2075
      %2077 = vrot.lane.b32.xlu0 %v1802, 80
      %v2078 = vpop.permute.xlu0 %2077
      %v2080 = vsel %vm932, %v2076, 0
      %v2083 = vsel %vm932, %v2078, 0
      %2085 = vmatprep.subr.bf16.mxu0 0
      %2086 = vmatpush1.bf16.xpose.msra.mxu0 0
      %2087 = vmatprep.subr.bf16.mxu0 0
      %2088 = vmatpush1.bf16.xpose.msra.mxu0 0
      %2089 = vmatprep.subr.bf16.mxu0 0
      %2090 = vmatpush1.bf16.xpose.msra.mxu0 0
      %2091 = vmatprep.subr.bf16.mxu0 0
      %2092 = vmatpush1.bf16.xpose.msra.mxu0 0
      %2093 = vmatprep.subr.bf16.mxu0 0
      %2094 = vmatpush1.bf16.xpose.msra.mxu0 0
      %2095 = vmatprep.subr.bf16.mxu0 0
      %2096 = vmatpush1.bf16.xpose.msra.mxu0 0
      %2097 = vmatprep.subr.bf16.mxu0 0
      %2098 = vmatpush1.bf16.xpose.msra.mxu0 0
      %2099 = vmatprep.subr.bf16.mxu0 0
      %2100 = vmatpush1.bf16.xpose.msra.mxu0 %v2083
      %2101 = vmatprep.subr.bf16.mxu0 0
      %2102 = vmatpush2.bf16.xpose.msra.mxu0 0
      %2103 = vmatprep.subr.bf16.mxu0 0
      %2104 = vmatpush2.bf16.xpose.msra.mxu0 0
      %2105 = vmatprep.subr.bf16.mxu0 0
      %2106 = vmatpush2.bf16.xpose.msra.mxu0 0
      %2107 = vmatprep.subr.bf16.mxu0 0
      %2108 = vmatpush2.bf16.xpose.msra.mxu0 0
      %2109 = vmatprep.subr.bf16.mxu0 0
      %2110 = vmatpush2.bf16.xpose.msra.mxu0 0
      %2111 = vmatprep.subr.bf16.mxu0 0
      %2112 = vmatpush2.bf16.xpose.msra.mxu0 0
      %2113 = vmatprep.subr.bf16.mxu0 0
      %2114 = vmatpush2.bf16.xpose.msra.mxu0 0
      %2115 = vmatprep.subr.bf16.mxu0 0
      %2116 = vmatpush2.bf16.xpose.msra.mxu0 0
      %2117 = vmatprep.mubr.bf16.mxu0 0
      %2118 = vmatmul.mubr.bf16.gmra.mxu0 %v2080
      %v2119 = vpop.f32.mrf.mxu0
      %v2120 = vadd.f32 0.0, %v2119
      %v2121 = vpop.f32.mrf.mxu0
      %v2122 = vpop.f32.mrf.mxu0
      %v2123 = vpop.f32.mrf.mxu0
      %2124 = vdwg.mxu0
      %v2125 = vmul.f32 %v2070, 0.25
      %v2126 = vmul.f32 %v2120, 0.25
      %v2127 = vadd.f32 %v2125, %v1035
      %v2128 = vadd.f32 %v2126, %v1039
      %v2129 = vsel %vm1044, %v2127, -inf
      %2130 = vmax.xlane.f32.xlu0 %v2129
      %v2131 = vpop.xlane.xlu0 %2130
      %v2132 = vsel %vm1044, %v2128, -inf
      %2133 = vmax.xlane.f32.xlu0 %v2132
      %v2134 = vpop.xlane.xlu0 %2133
      %v2135 = vsub.f32 %v2127, %v2131
      %v2136 = vsub.f32 %v2128, %v2134
      %v2137 = vmul.f32 %v2135, 1.442695
      %v2138 = vpow.pop %v2137
      %v2139 = vmul.f32 %v2136, 1.442695
      %v2140 = vpow.pop %v2139
      %v2141 = vsel %vm1044, %v2138, 0.0
      %2142 = vadd.xlane.f32.xlu0 %v2141
      %v2143 = vpop.xlane.xlu0 %2142
      %v2144 = vsel %vm1044, %v2140, 0.0
      %2145 = vadd.xlane.f32.xlu0 %v2144
      %v2146 = vpop.xlane.xlu0 %2145
      %v2147 = vrcp.pop %v2143
      %v2148 = vrcp.pop %v2146
      %v2149 = vmul.f32 %v2138, %v2147
      %v2150 = vmul.f32 %v2140, %v2148
      %v2151 = vpack.c.bf16 %v2149, %v2149
      %v2152 = vpack.c.bf16 %v2150, %v2150
      %2153 = vrot.lane.b32.xlu0 %v1801, 48
      %v2154 = vpop.permute.xlu0 %2153
      %v2156 = vsel %vm1044, %v2151, 0
      %v2159 = vsel %vm1074, %v2154, 0
      %2161 = vmatprep.subr.bf16.mxu0 0
      %2162 = vmatpush1.bf16.msra.mxu0 0
      %2163 = vmatprep.subr.bf16.mxu0 0
      %2164 = vmatpush1.bf16.msra.mxu0 0
      %2165 = vmatprep.subr.bf16.mxu0 0
      %2166 = vmatpush1.bf16.msra.mxu0 0
      %2167 = vmatprep.subr.bf16.mxu0 0
      %2168 = vmatpush1.bf16.msra.mxu0 0
      %2169 = vmatprep.subr.bf16.mxu0 0
      %2170 = vmatpush1.bf16.msra.mxu0 0
      %2171 = vmatprep.subr.bf16.mxu0 0
      %2172 = vmatpush1.bf16.msra.mxu0 0
      %2173 = vmatprep.subr.bf16.mxu0 0
      %2174 = vmatpush1.bf16.msra.mxu0 0
      %2175 = vmatprep.subr.bf16.mxu0 0
      %2176 = vmatpush1.bf16.msra.mxu0 %v2159
      %2177 = vmatprep.subr.bf16.mxu0 0
      %2178 = vmatpush2.bf16.msra.mxu0 0
      %2179 = vmatprep.subr.bf16.mxu0 0
      %2180 = vmatpush2.bf16.msra.mxu0 0
      %2181 = vmatprep.subr.bf16.mxu0 0
      %2182 = vmatpush2.bf16.msra.mxu0 0
      %2183 = vmatprep.subr.bf16.mxu0 0
      %2184 = vmatpush2.bf16.msra.mxu0 0
      %2185 = vmatprep.subr.bf16.mxu0 0
      %2186 = vmatpush2.bf16.msra.mxu0 0
      %2187 = vmatprep.subr.bf16.mxu0 0
      %2188 = vmatpush2.bf16.msra.mxu0 0
      %2189 = vmatprep.subr.bf16.mxu0 0
      %2190 = vmatpush2.bf16.msra.mxu0 0
      %2191 = vmatprep.subr.bf16.mxu0 0
      %2192 = vmatpush2.bf16.msra.mxu0 0
      %2193 = vmatprep.mubr.bf16.mxu0 0
      %2194 = vmatmul.mubr.bf16.gmra.mxu0 %v2156
      %v2195 = vpop.f32.mrf.mxu0
      %v2196 = vadd.f32 0.0, %v2195
      %v2197 = vpop.f32.mrf.mxu0
      %v2198 = vpop.f32.mrf.mxu0
      %v2199 = vpop.f32.mrf.mxu0
      %2200 = vdwg.mxu0
      %2201 = vrot.lane.b32.xlu0 %v1802, 48
      %v2202 = vpop.permute.xlu0 %2201
      %v2204 = vsel %vm1044, %v2152, 0
      %v2207 = vsel %vm1074, %v2202, 0
      %2209 = vmatprep.subr.bf16.mxu0 0
      %2210 = vmatpush1.bf16.msra.mxu0 0
      %2211 = vmatprep.subr.bf16.mxu0 0
      %2212 = vmatpush1.bf16.msra.mxu0 0
      %2213 = vmatprep.subr.bf16.mxu0 0
      %2214 = vmatpush1.bf16.msra.mxu0 0
      %2215 = vmatprep.subr.bf16.mxu0 0
      %2216 = vmatpush1.bf16.msra.mxu0 0
      %2217 = vmatprep.subr.bf16.mxu0 0
      %2218 = vmatpush1.bf16.msra.mxu0 0
      %2219 = vmatprep.subr.bf16.mxu0 0
      %2220 = vmatpush1.bf16.msra.mxu0 0
      %2221 = vmatprep.subr.bf16.mxu0 0
      %2222 = vmatpush1.bf16.msra.mxu0 0
      %2223 = vmatprep.subr.bf16.mxu0 0
      %2224 = vmatpush1.bf16.msra.mxu0 %v2207
      %2225 = vmatprep.subr.bf16.mxu0 0
      %2226 = vmatpush2.bf16.msra.mxu0 0
      %2227 = vmatprep.subr.bf16.mxu0 0
      %2228 = vmatpush2.bf16.msra.mxu0 0
      %2229 = vmatprep.subr.bf16.mxu0 0
      %2230 = vmatpush2.bf16.msra.mxu0 0
      %2231 = vmatprep.subr.bf16.mxu0 0
      %2232 = vmatpush2.bf16.msra.mxu0 0
      %2233 = vmatprep.subr.bf16.mxu0 0
      %2234 = vmatpush2.bf16.msra.mxu0 0
      %2235 = vmatprep.subr.bf16.mxu0 0
      %2236 = vmatpush2.bf16.msra.mxu0 0
      %2237 = vmatprep.subr.bf16.mxu0 0
      %2238 = vmatpush2.bf16.msra.mxu0 0
      %2239 = vmatprep.subr.bf16.mxu0 0
      %2240 = vmatpush2.bf16.msra.mxu0 0
      %2241 = vmatprep.mubr.bf16.mxu0 0
      %2242 = vmatmul.mubr.bf16.gmra.mxu0 %v2204
      %v2243 = vpop.f32.mrf.mxu0
      %v2244 = vadd.f32 0.0, %v2243
      %v2245 = vpop.f32.mrf.mxu0
      %v2246 = vpop.f32.mrf.mxu0
      %v2247 = vpop.f32.mrf.mxu0
      %2248 = vdwg.mxu0
      %2251 = vrot.lane.b32.xlu0 %v2196, 16
      %v2252 = vpop.permute.xlu0 %2251
      %2253 = vrot.lane.b32.xlu0 %v2244, 16
      %v2254 = vpop.permute.xlu0 %2253
      %v2257 = vsel %vm932, %v1972, %v2252
      %v2258 = vsel %vm932, %v2020, %v2254
      %v2259 = vpack.c.bf16 %v2258, %v2257
      %s2260 = scalar_lea.vmem %s738, 16
      %v2261 = vld [vmem:[%s2260] sm:$0xf]
      %v2262 = vld [vmem:[%s2260 + $0x4] sm:$0xf]
      %v2263 = vld [vmem:[%s2260 + $0x8] sm:$0xf]
      %v2264 = vld [vmem:[%s2260 + $0xc] sm:$0xf]
      %s2265 = scalar_lea.vmem %s742, 1
      %v2266 = vld [vmem:[%s2265] sm:$0x1]
      %v2268 = vlaneseq
      %v2269 = vshrl.u32 %v2268, 7
      %v2270 = vsub.s32 0, %v2269
      %v2271 = vrot.slane %v2266, %v2270
      %v2277 = vunpack.c.l.b16 %v2261
      %v2278 = vunpack.c.l.b16 %v2262
      %v2279 = vunpack.c.l.b16 %v2263
      %v2280 = vunpack.c.l.b16 %v2264
      %v2281 = vpack.c.b16 %v2278, %v2277
      %v2282 = vpack.c.b16 %v2280, %v2279
      %v2286 = vsel %vm786, %v2259, 0
      %2288 = vmatprep.subr.bf16.mxu0 0
      %2289 = vmatpush1.bf16.msra.mxu0 0
      %2290 = vmatprep.subr.bf16.mxu0 0
      %2291 = vmatpush1.bf16.msra.mxu0 0
      %2292 = vmatprep.subr.bf16.mxu0 0
      %2293 = vmatpush1.bf16.msra.mxu0 0
      %2294 = vmatprep.subr.bf16.mxu0 0
      %2295 = vmatpush1.bf16.msra.mxu0 0
      %2296 = vmatprep.subr.bf16.mxu0 0
      %2297 = vmatpush1.bf16.msra.mxu0 0
      %2298 = vmatprep.subr.bf16.mxu0 0
      %2299 = vmatpush1.bf16.msra.mxu0 0
      %2300 = vmatprep.subr.bf16.mxu0 0
      %2301 = vmatpush1.bf16.msra.mxu0 %v2282
      %2302 = vmatprep.subr.bf16.mxu0 0
      %2303 = vmatpush1.bf16.msra.mxu0 %v2281
      %2304 = vmatprep.subr.bf16.mxu0 0
      %2305 = vmatpush2.bf16.msra.mxu0 0
      %2306 = vmatprep.subr.bf16.mxu0 0
      %2307 = vmatpush2.bf16.msra.mxu0 0
      %2308 = vmatprep.subr.bf16.mxu0 0
      %2309 = vmatpush2.bf16.msra.mxu0 0
      %2310 = vmatprep.subr.bf16.mxu0 0
      %2311 = vmatpush2.bf16.msra.mxu0 0
      %2312 = vmatprep.subr.bf16.mxu0 0
      %2313 = vmatpush2.bf16.msra.mxu0 0
      %2314 = vmatprep.subr.bf16.mxu0 0
      %2315 = vmatpush2.bf16.msra.mxu0 0
      %2316 = vmatprep.subr.bf16.mxu0 0
      %2317 = vmatpush2.bf16.msra.mxu0 0
      %2318 = vmatprep.subr.bf16.mxu0 0
      %2319 = vmatpush2.bf16.msra.mxu0 0
      %2320 = vmatprep.mubr.bf16.mxu0 0
      %2321 = vmatmul.mubr.bf16.gmra.mxu0 %v2286
      %v2322 = vpop.f32.mrf.mxu0
      %v2323 = vadd.f32 %v2271, %v2322
      %v2324 = vpop.f32.mrf.mxu0
      %v2325 = vpop.f32.mrf.mxu0
      %v2326 = vadd.f32 %v2271, %v2325
      %v2327 = vpop.f32.mrf.mxu0
      %2328 = vdwg.mxu0
      %v2329 = vadd.f32 %v1729, %v2323
      %v2330 = vadd.f32 %v1730, %v2326
      %s2331 = scalar_lea.vmem %s746, 1
      %v2332 = vld [vmem:[%s2331] sm:$0x1]
      %s2333 = scalar_lea.vmem %s750, 1
      %v2334 = vld [vmem:[%s2333] sm:$0x1]
      %v2335 = vsel %vm786, %v2329, 0.0
      %2336 = vadd.xlane.f32.xlu0 %v2335
      %v2337 = vpop.xlane.xlu0 %2336
      %v2338 = vsel %vm786, %v2330, 0.0
      %2339 = vadd.xlane.f32.xlu0 %v2338
      %v2340 = vpop.xlane.xlu0 %2339
      %v2341 = vmul.f32 %v2337, %v793
      %v2342 = vmul.f32 %v2340, %v793
      %v2343 = vsub.f32 %v2329, %v2341
      %v2344 = vsub.f32 %v2330, %v2342
      %v2345 = vmul.f32 %v2343, %v2343
      %v2346 = vmul.f32 %v2344, %v2344
      %v2347 = vsel %vm786, %v2345, 0.0
      %2348 = vadd.xlane.f32.xlu0 %v2347
      %v2349 = vpop.xlane.xlu0 %2348
      %v2350 = vsel %vm786, %v2346, 0.0
      %2351 = vadd.xlane.f32.xlu0 %v2350
      %v2352 = vpop.xlane.xlu0 %2351
      %v2353 = vmul.f32 %v2349, %v793
      %v2354 = vmul.f32 %v2352, %v793
      %v2355 = vadd.f32 %v2353, 1e-12
      %v2356 = vadd.f32 %v2354, 1e-12
      %v2357 = vrsqrt.pop %v2355
      %v2358 = vrsqrt.pop %v2356
      %v2359 = vmul.f32 %v2343, %v2357
      %v2360 = vmul.f32 %v2344, %v2358
      %v2362 = vlaneseq
      %v2363 = vshrl.u32 %v2362, 7
      %v2364 = vsub.s32 0, %v2363
      %v2365 = vrot.slane %v2332, %v2364
      %v2367 = vmul.f32 %v2359, %v2365
      %v2368 = vmul.f32 %v2360, %v2365
      %v2370 = vlaneseq
      %v2371 = vshrl.u32 %v2370, 7
      %v2372 = vsub.s32 0, %v2371
      %v2373 = vrot.slane %v2334, %v2372
      %v2375 = vadd.f32 %v2367, %v2373
      %v2376 = vadd.f32 %v2368, %v2373
      %v2377 = vpack.c.bf16 %v2376, %v2375
      %s2378 = scalar_lea.vmem %s755, 16
      %v2379 = vld [vmem:[%s2378] sm:$0xf]
      %v2380 = vld [vmem:[%s2378 + $0x4] sm:$0xf]
      %v2381 = vld [vmem:[%s2378 + $0x8] sm:$0xf]
      %v2382 = vld [vmem:[%s2378 + $0xc] sm:$0xf]
      %s2383 = scalar_lea.vmem %s759, 1
      %v2384 = vld [vmem:[%s2383] sm:$0x1]
      %v2386 = vlaneseq
      %v2387 = vshrl.u32 %v2386, 7
      %v2388 = vsub.s32 0, %v2387
      %v2389 = vrot.slane %v2384, %v2388
      %v2395 = vunpack.c.l.b16 %v2379
      %v2396 = vunpack.c.l.b16 %v2380
      %v2397 = vunpack.c.l.b16 %v2381
      %v2398 = vunpack.c.l.b16 %v2382
      %v2399 = vpack.c.b16 %v2396, %v2395
      %v2400 = vpack.c.b16 %v2398, %v2397
      %v2404 = vsel %vm786, %v2377, 0
      %2406 = vmatprep.subr.bf16.mxu0 0
      %2407 = vmatpush1.bf16.msra.mxu0 0
      %2408 = vmatprep.subr.bf16.mxu0 0
      %2409 = vmatpush1.bf16.msra.mxu0 0
      %2410 = vmatprep.subr.bf16.mxu0 0
      %2411 = vmatpush1.bf16.msra.mxu0 0
      %2412 = vmatprep.subr.bf16.mxu0 0
      %2413 = vmatpush1.bf16.msra.mxu0 0
      %2414 = vmatprep.subr.bf16.mxu0 0
      %2415 = vmatpush1.bf16.msra.mxu0 0
      %2416 = vmatprep.subr.bf16.mxu0 0
      %2417 = vmatpush1.bf16.msra.mxu0 0
      %2418 = vmatprep.subr.bf16.mxu0 0
      %2419 = vmatpush1.bf16.msra.mxu0 %v2400
      %2420 = vmatprep.subr.bf16.mxu0 0
      %2421 = vmatpush1.bf16.msra.mxu0 %v2399
      %2422 = vmatprep.subr.bf16.mxu0 0
      %2423 = vmatpush2.bf16.msra.mxu0 0
      %2424 = vmatprep.subr.bf16.mxu0 0
      %2425 = vmatpush2.bf16.msra.mxu0 0
      %2426 = vmatprep.subr.bf16.mxu0 0
      %2427 = vmatpush2.bf16.msra.mxu0 0
      %2428 = vmatprep.subr.bf16.mxu0 0
      %2429 = vmatpush2.bf16.msra.mxu0 0
      %2430 = vmatprep.subr.bf16.mxu0 0
      %2431 = vmatpush2.bf16.msra.mxu0 0
      %2432 = vmatprep.subr.bf16.mxu0 0
      %2433 = vmatpush2.bf16.msra.mxu0 0
      %2434 = vmatprep.subr.bf16.mxu0 0
      %2435 = vmatpush2.bf16.msra.mxu0 0
      %2436 = vmatprep.subr.bf16.mxu0 0
      %2437 = vmatpush2.bf16.msra.mxu0 0
      %2438 = vmatprep.mubr.bf16.mxu0 0
      %2439 = vmatmul.mubr.bf16.gmra.mxu0 %v2404
      %v2440 = vpop.f32.mrf.mxu0
      %v2441 = vadd.f32 %v2389, %v2440
      %v2442 = vpop.f32.mrf.mxu0
      %v2443 = vpop.f32.mrf.mxu0
      %v2444 = vadd.f32 %v2389, %v2443
      %v2445 = vpop.f32.mrf.mxu0
      %2446 = vdwg.mxu0
      %v2447 = vmul.f32 %v2441, %v2441
      %v2448 = vmul.f32 %v2444, %v2444
      %v2449 = vmul.f32 %v2441, %v2447
      %v2450 = vmul.f32 %v2444, %v2448
      %v2451 = vmul.f32 %v2449, 0.044715
      %v2452 = vmul.f32 %v2450, 0.044715
      %v2453 = vadd.f32 %v2441, %v2451
      %v2454 = vadd.f32 %v2444, %v2452
      %v2455 = vmul.f32 %v2453, 0.7978846
      %v2456 = vmul.f32 %v2454, 0.7978846
      %v2457 = vtanh.pop %v2455
      %v2458 = vtanh.pop %v2456
      %v2459 = vadd.f32 %v2457, 1.0
      %v2460 = vadd.f32 %v2458, 1.0
      %v2461 = vmul.f32 %v2459, 0.5
      %v2462 = vmul.f32 %v2460, 0.5
      %v2463 = vmul.f32 %v2441, %v2461
      %v2464 = vmul.f32 %v2444, %v2462
      %v2465 = vpack.c.bf16 %v2464, %v2463
      %s2466 = scalar_lea.vmem %s764, 32
      %v2467 = vld [vmem:[%s2466] sm:$0xf]
      %v2468 = vld [vmem:[%s2466 + $0x4] sm:$0xf]
      %v2469 = vld [vmem:[%s2466 + $0x8] sm:$0xf]
      %v2470 = vld [vmem:[%s2466 + $0xc] sm:$0xf]
      %v2471 = vld [vmem:[%s2466 + $0x10] sm:$0xf]
      %v2472 = vld [vmem:[%s2466 + $0x14] sm:$0xf]
      %v2473 = vld [vmem:[%s2466 + $0x18] sm:$0xf]
      %v2474 = vld [vmem:[%s2466 + $0x1c] sm:$0xf]
      %s2475 = scalar_lea.vmem %s768, 1
      %v2476 = vld [vmem:[%s2475] sm:$0x1]
      %v2478 = vlaneseq
      %v2479 = vshrl.u32 %v2478, 7
      %v2480 = vsub.s32 0, %v2479
      %v2481 = vrot.slane %v2476, %v2480
      %v2491 = vunpack.c.l.b16 %v2467
      %v2492 = vunpack.c.l.b16 %v2468
      %v2493 = vunpack.c.l.b16 %v2469
      %v2494 = vunpack.c.l.b16 %v2470
      %v2495 = vunpack.c.l.b16 %v2471
      %v2496 = vunpack.c.l.b16 %v2472
      %v2497 = vunpack.c.l.b16 %v2473
      %v2498 = vunpack.c.l.b16 %v2474
      %v2499 = vpack.c.b16 %v2492, %v2491
      %v2500 = vpack.c.b16 %v2494, %v2493
      %v2501 = vpack.c.b16 %v2496, %v2495
      %v2502 = vpack.c.b16 %v2498, %v2497
      %v2508 = vsel %vm1640, %v2465, 0
      %2510 = vmatprep.subr.bf16.mxu0 0
      %2511 = vmatpush1.bf16.msra.mxu0 0
      %2512 = vmatprep.subr.bf16.mxu0 0
      %2513 = vmatpush1.bf16.msra.mxu0 0
      %2514 = vmatprep.subr.bf16.mxu0 0
      %2515 = vmatpush1.bf16.msra.mxu0 0
      %2516 = vmatprep.subr.bf16.mxu0 0
      %2517 = vmatpush1.bf16.msra.mxu0 0
      %2518 = vmatprep.subr.bf16.mxu0 0
      %2519 = vmatpush1.bf16.msra.mxu0 %v2502
      %2520 = vmatprep.subr.bf16.mxu0 0
      %2521 = vmatpush1.bf16.msra.mxu0 %v2501
      %2522 = vmatprep.subr.bf16.mxu0 0
      %2523 = vmatpush1.bf16.msra.mxu0 %v2500
      %2524 = vmatprep.subr.bf16.mxu0 0
      %2525 = vmatpush1.bf16.msra.mxu0 %v2499
      %2526 = vmatprep.subr.bf16.mxu0 0
      %2527 = vmatpush2.bf16.msra.mxu0 0
      %2528 = vmatprep.subr.bf16.mxu0 0
      %2529 = vmatpush2.bf16.msra.mxu0 0
      %2530 = vmatprep.subr.bf16.mxu0 0
      %2531 = vmatpush2.bf16.msra.mxu0 0
      %2532 = vmatprep.subr.bf16.mxu0 0
      %2533 = vmatpush2.bf16.msra.mxu0 0
      %2534 = vmatprep.subr.bf16.mxu0 0
      %2535 = vmatpush2.bf16.msra.mxu0 0
      %2536 = vmatprep.subr.bf16.mxu0 0
      %2537 = vmatpush2.bf16.msra.mxu0 0
      %2538 = vmatprep.subr.bf16.mxu0 0
      %2539 = vmatpush2.bf16.msra.mxu0 0
      %2540 = vmatprep.subr.bf16.mxu0 0
      %2541 = vmatpush2.bf16.msra.mxu0 0
      %2542 = vmatprep.mubr.bf16.mxu0 0
      %2543 = vmatmul.mubr.bf16.gmra.mxu0 %v2508
      %v2544 = vpop.f32.mrf.mxu0
      %v2545 = vadd.f32 %v2481, %v2544
      %v2546 = vpop.f32.mrf.mxu0
      %v2547 = vpop.f32.mrf.mxu0
      %v2548 = vadd.f32 %v2481, %v2547
      %v2549 = vpop.f32.mrf.mxu0
      %2550 = vdwg.mxu0
      %v2551 = vadd.f32 %v2375, %v2545
      %v2552 = vadd.f32 %v2376, %v2548
      %s2553 = scalar_lea.vmem %s772, 1
      %v2554 = vld [vmem:[%s2553] sm:$0x1]
      %s2555 = scalar_lea.vmem %s776, 1
      %v2556 = vld [vmem:[%s2555] sm:$0x1]
      %v2557 = vsel %vm786, %v2551, 0.0
      %2558 = vadd.xlane.f32.xlu0 %v2557
      %v2559 = vpop.xlane.xlu0 %2558
      %v2560 = vsel %vm786, %v2552, 0.0
      %2561 = vadd.xlane.f32.xlu0 %v2560
      %v2562 = vpop.xlane.xlu0 %2561
      %v2563 = vmul.f32 %v2559, %v793
      %v2564 = vmul.f32 %v2562, %v793
      %v2565 = vsub.f32 %v2551, %v2563
      %v2566 = vsub.f32 %v2552, %v2564
      %v2567 = vmul.f32 %v2565, %v2565
      %v2568 = vmul.f32 %v2566, %v2566
      %v2569 = vsel %vm786, %v2567, 0.0
      %2570 = vadd.xlane.f32.xlu0 %v2569
      %v2571 = vpop.xlane.xlu0 %2570
      %v2572 = vsel %vm786, %v2568, 0.0
      %2573 = vadd.xlane.f32.xlu0 %v2572
      %v2574 = vpop.xlane.xlu0 %2573
      %v2575 = vmul.f32 %v2571, %v793
      %v2576 = vmul.f32 %v2574, %v793
      %v2577 = vadd.f32 %v2575, 1e-12
      %v2578 = vadd.f32 %v2576, 1e-12
      %v2579 = vrsqrt.pop %v2577
      %v2580 = vrsqrt.pop %v2578
      %v2581 = vmul.f32 %v2565, %v2579
      %v2582 = vmul.f32 %v2566, %v2580
      %v2584 = vlaneseq
      %v2585 = vshrl.u32 %v2584, 7
      %v2586 = vsub.s32 0, %v2585
      %v2587 = vrot.slane %v2554, %v2586
      %v2589 = vmul.f32 %v2581, %v2587
      %v2590 = vmul.f32 %v2582, %v2587
      %v2592 = vlaneseq
      %v2593 = vshrl.u32 %v2592, 7
      %v2594 = vsub.s32 0, %v2593
      %v2595 = vrot.slane %v2556, %v2594
      %v2597 = vadd.f32 %v2589, %v2595
      %v2598 = vadd.f32 %v2590, %v2595
      %v2601 = vrot.slane %v2598, 7
      %vm2602 = vcmask 1041409
      %v2603 = vsel %vm2602, %v2601, %v2597
      %vm2605 = vcmask 254976
      %2606 = vst.msk [vmem:[%s780] sm:$0x3] %vm2605, %v2603
      %p2607 = scmp.lt.s32.totalorder %s27, 1
      %s2608 = scalar_select %p2607, %s27, 1
      %s2609 = smul.addr %s2608, 2
      %s2610 = scalar_lea.vmem %s16, %s2609
      // Predicated region
      $region85: #{text_based_similarity.2} parent=83 // pred_check
        %p2611 = pneg %p461
      $region86: #{text_based_similarity.2} parent=83 // pred_check_branch
        %2613 = sbr.rel (%p2611) target = $region88
      $region87: #{text_based_similarity.2} parent=83 // pred_region
        _
      $region88: #{text_based_similarity.2} parent=83 // pred_fallthru
        _
    $region84: #{text_based_similarity.2} parent=5 // pred_fallthru
      _
    %p2614 = scmp.le.s32.totalorder 2, %s22
    // Predicated region
    $region89: #{text_based_similarity.2} parent=5 // pred_check
      %p2615 = pneg %p2614
    $region90: #{text_based_similarity.2} parent=5 // pred_check_branch
      %2617 = sbr.rel (%p2615) target = $region92
    $region91: #{text_based_similarity.2} parent=5 // pred_region
      %s2618 = ssub.s32 %s22, 2
      // Predicated region
      $region93: #{text_based_similarity.2} parent=91 // pred_check
        %p2619 = pneg %p467
      $region94: #{text_based_similarity.2} parent=91 // pred_check_branch
        %2621 = sbr.rel (%p2619) target = $region96
      $region95: #{text_based_similarity.2} parent=91 // pred_region
        %p2622 = scmp.lt.s32.totalorder %s28, 1
        %s2623 = scalar_select %p2622, %s28, 1
        %s2624 = smul.addr %s2623, 2
        %s2625 = scalar_lea.vmem %s16, %s2624
      $region96: #{text_based_similarity.2} parent=91 // pred_fallthru
        _
    $region92: #{text_based_similarity.2} parent=5 // pred_fallthru
      _
  $region6: #{text_based_similarity.2} parent=0 // loop_footer
    %s26 = sadd.s32 1, %s22
  $region7: #{text_based_similarity.2} parent=0 // loop_footer_branch
    %21 = sbr.rel target = $region3
  $region8: #{text_based_similarity.2} parent=0 // loop_exit
    _

</llo_original>
